<compile_context>
chip_gen: v7x
topology: tpu7x:2x2x1
jax: 0.10.0
libtpu: 0.0.40
codegen_flags: <defaults>
</compile_context>

<pallas_src>
import functools

import numpy as np

import jax
import jax.numpy as jnp
from jax.experimental import pallas as pl
from jax.experimental.pallas import tpu as pltpu

# ----------------------------- configuration ------------------------------
C_FEAT = 16          # backbone / rpn channel width (real channels)
N_ANCHOR = 9         # 3 ratios x 3 scales
N_CLASS = 4          # background + 3 foreground classes
N_ROIS = 8           # proposals kept after RPN
ROI_SIZE = 7         # RoI pooling output size
FC_DIM = 32          # detection-head hidden width

LANE = 128           # lane width of every kernel operand / output slab
K_EXT = 32           # 3x3x3 = 27 image-patch taps, padded to 32
BBOX_XFORM_CLIP = float(np.log(1000.0 / 16.0))   # clamp dh/dw before exp
NEG_INF = -1e9

# RPN kernel output lane layout (128-wide f32 slab, one row per pixel):
#   [dy(9) | dx(9) | dh(9) | dw(9) | fg-bg logit(9) | zero pad]
# Detection-head output lane layout:
#   [cls_loc(N_CLASS*4) | score(N_CLASS) | zero pad]


# ------------------------- device-aware knobs ------------------------------
def _on_tpu():
    try:
        return jax.devices()[0].platform == "tpu"
    except Exception:  # pragma: no cover
        return False


def _device_kind():
    try:
        return jax.devices()[0].device_kind.lower()
    except Exception:  # pragma: no cover
        return ""


def _default_compute_dtype():
    # bf16 MXU operands on every TPU generation (the MXU is bf16-native on
    # v5e too); all accumulation / vector math stays f32.
    return jnp.bfloat16 if _on_tpu() else jnp.float32


def _vmem_limit_bytes():
    # v7x has 64 MiB physical VMEM per TensorCore -> leave headroom.
    return (48 * 1024 * 1024) if "v7" in _device_kind() else (64 * 1024 * 1024)


def _compiler_params(parallel=True):
    sem = ("parallel",) if parallel else ("arbitrary",)
    return pltpu.CompilerParams(dimension_semantics=sem,
                                vmem_limit_bytes=_vmem_limit_bytes())


def _round_up(v, m):
    return ((v + m - 1) // m) * m


def _pick_row_tile(H, WP, target_m, vmem_bytes):
    """Largest divisor `th` of H with th*WP close to target_m, VMEM-capped."""
    max_m = max(WP, vmem_bytes // (LANE * 40))   # ~40 B / flattened pixel live
    tgt = min(max(target_m, WP), max_m)
    th = max(1, min(H, tgt // WP))
    while H % th != 0:
        th -= 1
    return th


# ----------------------------- Pallas kernels -----------------------------
def _extractor_kernel(pt_ref, w_ref, b_ref, m_ref, o_ref):
    """conv3x3(image)+ReLU as one flat matmul per tile.

    pt_ref: (M, K_EXT)   im2col patches for M = te*WP flattened pixels
    w_ref : (K_EXT, 128) conv weights (tap*cin rows; cols >= C_FEAT zero)
    b_ref : (1, 128)     f32 bias
    m_ref : (M, 1)       f32 width mask (1 on real feature columns)
    o_ref : (M, 128)     feature rows (padded-width layout), compute dtype
    """
    h = jnp.dot(pt_ref[...], w_ref[...], preferred_element_type=jnp.float32)
    h = jnp.maximum(h + b_ref[...], 0.0) * m_ref[...]
    o_ref[...] = h.astype(o_ref.dtype)          # single lane-dense store


def _rpn_kernel(fi_ref, halo_ref, wm_ref, bm_ref, wh_ref, bh_ref, msk_ref,
                o_ref, *, M, WP, cdtype):
    """Fused RPN: conv3x3+ReLU -> packed 1x1 loc/score head, one tile at a time.

    fi_ref  : (M, 128)        M = th*WP feature pixels (padded-width layout)
    halo_ref: (1, 2*WP, 128)  row above / row below this tile (zeros at edges)
    wm_ref  : (9, 128, 128)   mid conv3x3 weights, tap major
    bm_ref  : (1, 128)        f32 mid bias
    wh_ref  : (128, 128)      packed head weights [dy|dx|dh|dw|fg-bg|0...]
    bh_ref  : (1, 128)        f32 head bias, same packing
    msk_ref : (M, 1)          f32: 1 on real output columns, 0 on width pad
    o_ref   : (M, 128)        f32 [dy|dx|dh|dw|score|0]; pad columns = NEG_INF
    """
    halo_top = halo_ref[0, :WP, :]
    halo_bot = halo_ref[0, WP:, :]
    stack = jnp.concatenate(
        [halo_top, fi_ref[...], halo_bot,
         jnp.zeros((WP, LANE), fi_ref.dtype)], axis=0)      # (M + 3*WP, 128)
    flat = stack.astype(jnp.float32)   # f32 for cheap unaligned tap slices

    acc = jnp.zeros((M, LANE), jnp.float32)
    for t in range(9):                 # 9 MXU pushes, each with M rows
        dy, dx = t // 3, t % 3
        s = dy * WP + dx
        tap = flat[s:s + M, :].astype(cdtype)
        acc = acc + jnp.dot(tap, wm_ref[t],
                            preferred_element_type=jnp.float32)
    mid = jnp.maximum(acc + bm_ref[...], 0.0).astype(cdtype)        # (M, 128)
    head = jnp.dot(mid, wh_ref[...],
                   preferred_element_type=jnp.float32) + bh_ref[...]
    # width-pad columns get a very negative score so top-k never picks them
    o_ref[...] = jnp.where(msk_ref[...] > 0.0, head, NEG_INF)


def _head_kernel(p_ref, w1_ref, b1_ref, w2_ref, b2_ref, w3_ref, b3_ref, o_ref,
                 *, cdtype):
    """Fused detection head: fc1 -> ReLU -> fc2 -> ReLU -> [cls_loc | score]."""
    h1 = jnp.dot(p_ref[...], w1_ref[...],
                 preferred_element_type=jnp.float32) + b1_ref[...]
    h1 = jnp.maximum(h1, 0.0).astype(cdtype)
    h2 = jnp.dot(h1, w2_ref[...],
                 preferred_element_type=jnp.float32) + b2_ref[...]
    h2 = jnp.maximum(h2, 0.0).astype(cdtype)
    out = jnp.dot(h2, w3_ref[...],
                  preferred_element_type=jnp.float32) + b3_ref[...]
    o_ref[...] = out.astype(o_ref.dtype)


# --------------------------- pallas_call wrappers ---------------------------
def extractor_conv(pt, w, b, mask, te, H, WP, out_dtype):
    m_rows = te * WP
    return pl.pallas_call(
        _extractor_kernel,
        out_shape=jax.ShapeDtypeStruct((H * WP, LANE), out_dtype),
        grid=(H // te,),
        in_specs=[
            pl.BlockSpec((m_rows, K_EXT), lambda i: (i, 0)),
            pl.BlockSpec(w.shape, lambda i: (0, 0)),
            pl.BlockSpec(b.shape, lambda i: (0, 0)),
            pl.BlockSpec((m_rows, 1), lambda i: (i, 0)),
        ],
        out_specs=pl.BlockSpec((m_rows, LANE), lambda i: (i, 0)),
        compiler_params=_compiler_params(parallel=True),
    )(pt, w, b, mask)


def rpn_forward(fi, halo, wm, bm, wh, bh, msk, th, H, WP, cdtype):
    m_rows = th * WP
    return pl.pallas_call(
        functools.partial(_rpn_kernel, M=m_rows, WP=WP, cdtype=cdtype),
        out_shape=jax.ShapeDtypeStruct((H * WP, LANE), jnp.float32),
        grid=(H // th,),
        in_specs=[
            pl.BlockSpec((m_rows, LANE), lambda i: (i, 0)),
            pl.BlockSpec((1, 2 * WP, LANE), lambda i: (i, 0, 0)),
            pl.BlockSpec(wm.shape, lambda i: (0, 0, 0)),
            pl.BlockSpec(bm.shape, lambda i: (0, 0)),
            pl.BlockSpec(wh.shape, lambda i: (0, 0)),
            pl.BlockSpec(bh.shape, lambda i: (0, 0)),
            pl.BlockSpec((m_rows, 1), lambda i: (i, 0)),
        ],
        out_specs=pl.BlockSpec((m_rows, LANE), lambda i: (i, 0)),
        compiler_params=_compiler_params(parallel=True),
    )(fi, halo, wm, bm, wh, bh, msk)


def head_forward(pooled, w1, b1, w2, b2, w3, b3, cdtype):
    # R = 8 rows: this kernel is launch-overhead dominated; kept fused in
    # Pallas so intermediates never touch HBM.
    R, K = pooled.shape
    return pl.pallas_call(
        functools.partial(_head_kernel, cdtype=cdtype),
        out_shape=jax.ShapeDtypeStruct((R, LANE), jnp.float32),
        grid=(1,),
        in_specs=[
            pl.BlockSpec((R, K), lambda i: (0, 0)),
            pl.BlockSpec(w1.shape, lambda i: (0, 0)),
            pl.BlockSpec(b1.shape, lambda i: (0, 0)),
            pl.BlockSpec(w2.shape, lambda i: (0, 0)),
            pl.BlockSpec(b2.shape, lambda i: (0, 0)),
            pl.BlockSpec(w3.shape, lambda i: (0, 0)),
            pl.BlockSpec(b3.shape, lambda i: (0, 0)),
        ],
        out_specs=pl.BlockSpec((R, LANE), lambda i: (0, 0)),
        compiler_params=_compiler_params(parallel=False),
    )(pooled, w1, b1, w2, b2, w3, b3)


# ------------------------------ JAX glue ----------------------------------
def _base_anchors(base_size=2.0, ratios=(0.5, 1.0, 2.0), scales=(2.0, 4.0, 8.0)):
    # TODO(synk): anchor base (stride=1, base_size=2) matches the toy stride-1
    #             extractor, not a real backbone stride.
    cy = cx = base_size / 2.0
    rows = []
    for r in ratios:
        for s in scales:
            bh = base_size * s * (r ** 0.5)
            bw = base_size * s * ((1.0 / r) ** 0.5)
            rows.append([cy - bh / 2.0, cx - bw / 2.0, cy + bh / 2.0, cx + bw / 2.0])
    return np.asarray(rows, dtype=np.float32)               # (9, 4)


def _image_patches(x_hw3, H, W, WP, cdtype):
    """im2col of the (H, W, Cin) image -> flat (H*WP, K_EXT) patch rows."""
    cin = x_hw3.shape[-1]
    assert 9 * cin <= K_EXT
    xpad = jnp.pad(x_hw3, ((1, 1), (1, 1), (0, 0)))
    taps = [xpad[dy:dy + H, dx:dx + W, :] for dy in range(3) for dx in range(3)]
    core = jnp.concatenate(taps, axis=-1)                   # (H, W, 9*Cin)
    pt = jnp.zeros((H, WP, K_EXT), jnp.float32)
    pt = pt.at[:, 1:W + 1, :9 * cin].set(core)
    return pt.reshape(H * WP, K_EXT).astype(cdtype)


def _build_halo(fi, th, H, WP):
    """Per-tile halo rows: [row above tile | row below tile], zeros at edges."""
    n = H // th
    fi3 = fi.reshape(H, WP, LANE)
    zero = jnp.zeros((1, WP, LANE), fi.dtype)
    top = jnp.concatenate([zero, fi3[th - 1::th][:n - 1]], axis=0)   # (n,WP,128)
    bot = jnp.concatenate([fi3[th::th][:n - 1], zero], axis=0)       # (n,WP,128)
    return jnp.concatenate([top, bot], axis=1)                       # (n,2WP,128)


def roi_pool(feat_hwc, rois, out_size=ROI_SIZE):
    """Simplified RoI pooling: one nearest-neighbor sample per bin center."""
    # TODO(synk): exact torchvision RoIPool max-pooling (dynamic bin extents)
    #             has no clean static Pallas formulation; the data-dependent
    #             gather stays in XLA.
    H, W, C = feat_hwc.shape
    y1, x1, y2, x2 = rois[:, 0], rois[:, 1], rois[:, 2], rois[:, 3]
    bins = (jnp.arange(out_size, dtype=jnp.float32) + 0.5) / out_size
    ys = y1[:, None] + bins[None, :] * (y2 - y1)[:, None]
    xs = x1[:, None] + bins[None, :] * (x2 - x1)[:, None]
    yi = jnp.clip(jnp.round(ys).astype(jnp.int32), 0, H - 1)
    xi = jnp.clip(jnp.round(xs).astype(jnp.int32), 0, W - 1)
    pooled = feat_hwc[yi[:, :, None], xi[:, None, :], :]
    return pooled.reshape(rois.shape[0], out_size * out_size * C)


# --------------------------- parameter creation ----------------------------
def init_params(key):
    ks = jax.random.split(key, 10)

    def rnd(k, shape):
        return 0.01 * jax.random.normal(k, shape, dtype=jnp.float32)

    ext_w = jnp.zeros((K_EXT, LANE), jnp.float32)
    ext_w = ext_w.at[:27, :C_FEAT].set(rnd(ks[0], (27, C_FEAT)))
    ext_b = jnp.zeros((1, LANE), jnp.float32)
    ext_b = ext_b.at[:, :C_FEAT].set(rnd(ks[1], (1, C_FEAT)))

    mid_w = jnp.zeros((9, LANE, LANE), jnp.float32)
    mid_w = mid_w.at[:, :C_FEAT, :C_FEAT].set(rnd(ks[2], (9, C_FEAT, C_FEAT)))
    mid_b = jnp.zeros((1, LANE), jnp.float32)
    mid_b = mid_b.at[:, :C_FEAT].set(rnd(ks[3], (1, C_FEAT)))

    # packed RPN head: cols [dy(9)|dx(9)|dh(9)|dw(9)|fg-bg logit(9)|0...]
    head_w = jnp.zeros((LANE, LANE), jnp.float32)
    head_w = head_w.at[:C_FEAT, :5 * N_ANCHOR].set(
        rnd(ks[4], (C_FEAT, 5 * N_ANCHOR)))
    head_b = jnp.zeros((1, LANE), jnp.float32)
    head_b = head_b.at[:, :5 * N_ANCHOR].set(rnd(ks[5], (1, 5 * N_ANCHOR)))

    out_w = jnp.zeros((FC_DIM, LANE), jnp.float32)
    out_w = out_w.at[:, :N_CLASS * 5].set(rnd(ks[8], (FC_DIM, N_CLASS * 5)))
    out_b = jnp.zeros((1, LANE), jnp.float32)
    out_b = out_b.at[:, :N_CLASS * 5].set(rnd(ks[9], (1, N_CLASS * 5)))

    return {
        "ext_w": ext_w, "ext_b": ext_b,
        "rpn_mid_w": mid_w, "rpn_mid_b": mid_b,
        "rpn_head_w": head_w, "rpn_head_b": head_b,
        "fc1_w": rnd(ks[6], (ROI_SIZE * ROI_SIZE * C_FEAT, FC_DIM)),
        "fc1_b": jnp.zeros((1, FC_DIM), jnp.float32),
        "fc2_w": rnd(ks[7], (FC_DIM, FC_DIM)),
        "fc2_b": jnp.zeros((1, FC_DIM), jnp.float32),
        "out_w": out_w, "out_b": out_b,
    }


# ------------------------------ forward pass -------------------------------
def base_faster_rcnn_forward(params, x_nchw, scale=1.0, *,
                             target_rows=2048, compute_dtype=None):
    """Mirrors BaseFasterRCNN.forward: returns (roi_cls_locs, roi_scores, rois)."""
    del scale  # TODO(synk): proposal min-size filtering by `scale` and NMS
    #            (data-dependent set sizes) stay outside the Pallas path; a
    #            fixed score top-k proposal set is used instead.
    if compute_dtype is None:
        compute_dtype = _default_compute_dtype()
    cd = compute_dtype

    N, Cin, H, W = x_nchw.shape
    assert N == 1, "Faster-RCNN forward path assumes batch=1 (rois = rois[0])"
    img_h, img_w = float(H), float(W)

    WP = _round_up(W + 2, 16)            # padded width (keeps tiles aligned)
    vmem = _vmem_limit_bytes()
    te = _pick_row_tile(H, WP, target_rows, vmem)
    th = _pick_row_tile(H, WP, target_rows, vmem)

    # ---- extractor: conv3x3 + ReLU as a flat tiled matmul
    x_hw3 = jnp.transpose(x_nchw[0], (1, 2, 0)).astype(jnp.float32)
    pt = _image_patches(x_hw3, H, W, WP, cd)                 # (H*WP, 32)

    col = jnp.arange(WP)
    mask_ext = jnp.tile(((col >= 1) & (col <= W)).astype(jnp.float32), (H,))
    mask_ext = mask_ext[:, None]                             # (H*WP, 1)
    mask_rpn = jnp.tile((col < W).astype(jnp.float32), (H,))[:, None]

    fi = extractor_conv(pt, params["ext_w"].astype(cd), params["ext_b"],
                        mask_ext, te, H, WP, cd)             # (H*WP, 128)

    # ---- fused RPN: mid conv3x3 + ReLU + packed loc/score 1x1 heads
    halo = _build_halo(fi, th, H, WP)                        # (H//th, 2WP, 128)
    rpn_out = rpn_forward(fi, halo,
                          params["rpn_mid_w"].astype(cd), params["rpn_mid_b"],
                          params["rpn_head_w"].astype(cd), params["rpn_head_b"],
                          mask_rpn, th, H, WP, cd)           # (H*WP, 128) f32

    # ---- proposal selection on the monotone fg-bg logit, then decode only
    #      the N_ROIS selected proposals (anchors generated analytically).
    scores = rpn_out[:, 4 * N_ANCHOR:5 * N_ANCHOR].reshape(-1)   # (H*WP*9,)
    _, top_idx = jax.lax.top_k(scores, N_ROIS)
    pix = top_idx // N_ANCHOR
    aidx = top_idx % N_ANCHOR
    yidx = (pix // WP).astype(jnp.float32)
    xidx = (pix % WP).astype(jnp.float32)

    loc = rpn_out[pix]                                       # (R, 128)
    r = jnp.arange(N_ROIS)
    t_dy = loc[r, aidx]
    t_dx = loc[r, N_ANCHOR + aidx]
    t_dh = loc[r, 2 * N_ANCHOR + aidx]
    t_dw = loc[r, 3 * N_ANCHOR + aidx]

    base = jnp.asarray(_base_anchors())[aidx]                # (R, 4), stride=1
    ay1, ax1 = yidx + base[:, 0], xidx + base[:, 1]
    ay2, ax2 = yidx + base[:, 2], xidx + base[:, 3]
    ah, aw = ay2 - ay1, ax2 - ax1
    acy, acx = ay1 + 0.5 * ah, ax1 + 0.5 * aw
    t_dh = jnp.clip(t_dh, -BBOX_XFORM_CLIP, BBOX_XFORM_CLIP)
    t_dw = jnp.clip(t_dw, -BBOX_XFORM_CLIP, BBOX_XFORM_CLIP)
    cy, cx = t_dy * ah + acy, t_dx * aw + acx
    hh, ww = jnp.exp(t_dh) * ah, jnp.exp(t_dw) * aw
    y1 = jnp.clip(cy - 0.5 * hh, 0.0, img_h)
    x1 = jnp.clip(cx - 0.5 * ww, 0.0, img_w)
    y2 = jnp.clip(cy + 0.5 * hh, 0.0, img_h)
    x2 = jnp.clip(cx + 0.5 * ww, 0.0, img_w)
    rois = jnp.stack([y1, x1, y2, x2], axis=-1)              # (R, 4)

    # ---- fused detection head (RoI gather stays in XLA)
    feat_hwc = fi.reshape(H, WP, LANE)[:, 1:W + 1, :C_FEAT].astype(jnp.float32)
    pooled = roi_pool(feat_hwc, rois)                        # (R, 49*C_FEAT)
    head_out = head_forward(pooled.astype(cd),
                            params["fc1_w"].astype(cd), params["fc1_b"],
                            params["fc2_w"].astype(cd), params["fc2_b"],
                            params["out_w"].astype(cd), params["out_b"],
                            cd)                              # (R, 128) f32
    roi_cls_locs = head_out[:, :N_CLASS * 4]
    roi_scores = head_out[:, N_CLASS * 4:N_CLASS * 5]
    return roi_cls_locs, roi_scores, rois


# --------------------------------- main ------------------------------------
if __name__ == "__main__":
    key = jax.random.PRNGKey(0)
    k_img, k_params = jax.random.split(key)

    x = jax.random.normal(k_img, (1, 3, 16, 16), dtype=jnp.float32)  # NCHW
    params = init_params(k_params)

    # target_rows=64 -> 2-row tiles (M = 64 flattened pixels) -> 8 grid steps,
    # exercising the pipelined tiling at this toy size.
    fwd = jax.jit(functools.partial(base_faster_rcnn_forward, target_rows=64))
    roi_cls_locs, roi_scores, rois = fwd(params, x)
    jax.block_until_ready((roi_cls_locs, roi_scores, rois))

    assert roi_cls_locs.shape == (N_ROIS, N_CLASS * 4)
    assert roi_scores.shape == (N_ROIS, N_CLASS)
    assert rois.shape == (N_ROIS, 4)
    assert bool(jnp.all(jnp.isfinite(rois)))
    assert bool(jnp.all(jnp.isfinite(roi_cls_locs)))
    assert bool(jnp.all(jnp.isfinite(roi_scores)))
    print("KERNEL_OK")
</pallas_src>

<mosaic_0001>
module attributes {stable_mosaic.version = 11 : i64} {
  func.func @_extractor_kernel(%arg0: i32, %arg1: memref<64x32xf32, #tpu.memory_space<vmem>>, %arg2: memref<32x128xf32, #tpu.memory_space<vmem>>, %arg3: memref<1x128xf32, #tpu.memory_space<vmem>>, %arg4: memref<64x1xf32, #tpu.memory_space<vmem>>, %arg5: memref<64x128xf32, #tpu.memory_space<vmem>>) attributes {dimension_semantics = [#tpu.dimension_semantics<parallel>], iteration_bounds = array<i64: 8>, scalar_prefetch = 0 : i64, scratch_operands = 0 : i64, tpu.core_type = #tpu.core_type<tc>, window_params = [{transform_indices = @transform_0, window_bounds = array<i64: 64, 32>}, {pipeline_mode = #tpu.pipeline_mode<synchronous>, transform_indices = @transform_1, window_bounds = array<i64: 32, 128>}, {pipeline_mode = #tpu.pipeline_mode<synchronous>, transform_indices = @transform_2, window_bounds = array<i64: 1, 128>}, {transform_indices = @transform_3, window_bounds = array<i64: 64, 1>}, {transform_indices = @transform_4, window_bounds = array<i64: 64, 128>}]} {
    %c0 = arith.constant 0 : index
    %c0_0 = arith.constant 0 : index
    %0 = vector.load %arg1[%c0, %c0_0] : memref<64x32xf32, #tpu.memory_space<vmem>>, vector<64x32xf32>
    %c0_1 = arith.constant 0 : index
    %c0_2 = arith.constant 0 : index
    %1 = vector.load %arg2[%c0_1, %c0_2] : memref<32x128xf32, #tpu.memory_space<vmem>>, vector<32x128xf32>
    %cst = arith.constant dense<0.000000e+00> : vector<64x128xf32>
    %2 = tpu.matmul %0, %1, %cst {dimension_numbers = #tpu.dot_dimension_numbers<[1], [0], [0], [1], [0, 0, 1, 1], [], []>} : vector<64x32xf32>, vector<32x128xf32>, vector<64x128xf32> -> vector<64x128xf32>
    %c0_3 = arith.constant 0 : index
    %c0_4 = arith.constant 0 : index
    %3 = vector.load %arg3[%c0_3, %c0_4] : memref<1x128xf32, #tpu.memory_space<vmem>>, vector<1x128xf32>
    %4 = vector.broadcast %3 : vector<1x128xf32> to vector<64x128xf32>
    %5 = arith.addf %2, %4 : vector<64x128xf32>
    %cst_5 = arith.constant 0.000000e+00 : f32
    %6 = vector.broadcast %cst_5 : f32 to vector<64x128xf32>
    %7 = arith.maximumf %5, %6 : vector<64x128xf32>
    %c0_6 = arith.constant 0 : index
    %c0_7 = arith.constant 0 : index
    %8 = vector.load %arg4[%c0_6, %c0_7] : memref<64x1xf32, #tpu.memory_space<vmem>>, vector<64x1xf32>
    %9 = vector.broadcast %8 : vector<64x1xf32> to vector<64x128xf32>
    %10 = arith.mulf %7, %9 : vector<64x128xf32>
    %c0_8 = arith.constant 0 : index
    %c0_9 = arith.constant 0 : index
    %11 = vector.load %arg5[%c0_8, %c0_9] : memref<64x128xf32, #tpu.memory_space<vmem>>, vector<64x128xf32>
    tpu.vector_store %arg5[%c0_8, %c0_9], %10 {strides = array<i32>} : memref<64x128xf32, #tpu.memory_space<vmem>>, vector<64x128xf32>,
    return
  }
  func.func @transform_0(%arg0: i32) -> (i32, i32) {
    %c0_i32 = arith.constant 0 : i32
    %c0_i32_0 = arith.constant 0 : i32
    return %arg0, %c0_i32 : i32, i32
  }
  func.func @transform_1(%arg0: i32) -> (i32, i32) {
    %c0_i32 = arith.constant 0 : i32
    %c0_i32_0 = arith.constant 0 : i32
    %c0_i32_1 = arith.constant 0 : i32
    return %c0_i32, %c0_i32_0 : i32, i32
  }
  func.func @transform_2(%arg0: i32) -> (i32, i32) {
    %c0_i32 = arith.constant 0 : i32
    %c0_i32_0 = arith.constant 0 : i32
    %c0_i32_1 = arith.constant 0 : i32
    return %c0_i32, %c0_i32_0 : i32, i32
  }
  func.func @transform_3(%arg0: i32) -> (i32, i32) {
    %c0_i32 = arith.constant 0 : i32
    %c0_i32_0 = arith.constant 0 : i32
    return %arg0, %c0_i32 : i32, i32
  }
  func.func @transform_4(%arg0: i32) -> (i32, i32) {
    %c0_i32 = arith.constant 0 : i32
    %c0_i32_0 = arith.constant 0 : i32
    return %arg0, %c0_i32 : i32, i32
  }
}

module attributes {stable_mosaic.version = 11 : i64} {
  func.func @_rpn_kernel(%arg0: i32, %arg1: memref<64x128xf32, #tpu.memory_space<vmem>>, %arg2: memref<1x64x128xf32, #tpu.memory_space<vmem>>, %arg3: memref<9x128x128xf32, #tpu.memory_space<vmem>>, %arg4: memref<1x128xf32, #tpu.memory_space<vmem>>, %arg5: memref<128x128xf32, #tpu.memory_space<vmem>>, %arg6: memref<1x128xf32, #tpu.memory_space<vmem>>, %arg7: memref<64x1xf32, #tpu.memory_space<vmem>>, %arg8: memref<64x128xf32, #tpu.memory_space<vmem>>) attributes {dimension_semantics = [#tpu.dimension_semantics<parallel>], iteration_bounds = array<i64: 8>, scalar_prefetch = 0 : i64, scratch_operands = 0 : i64, tpu.core_type = #tpu.core_type<tc>, window_params = [{transform_indices = @transform_0, window_bounds = array<i64: 64, 128>}, {transform_indices = @transform_1, window_bounds = array<i64: 1, 64, 128>}, {pipeline_mode = #tpu.pipeline_mode<synchronous>, transform_indices = @transform_2, window_bounds = array<i64: 9, 128, 128>}, {pipeline_mode = #tpu.pipeline_mode<synchronous>, transform_indices = @transform_3, window_bounds = array<i64: 1, 128>}, {pipeline_mode = #tpu.pipeline_mode<synchronous>, transform_indices = @transform_4, window_bounds = array<i64: 128, 128>}, {pipeline_mode = #tpu.pipeline_mode<synchronous>, transform_indices = @transform_5, window_bounds = array<i64: 1, 128>}, {transform_indices = @transform_6, window_bounds = array<i64: 64, 1>}, {transform_indices = @transform_7, window_bounds = array<i64: 64, 128>}]} {
    %c0 = arith.constant 0 : index
    %c0_0 = arith.constant 0 : index
    %c0_1 = arith.constant 0 : index
    %0 = vector.load %arg2[%c0, %c0_0, %c0_1] : memref<1x64x128xf32, #tpu.memory_space<vmem>>, vector<1x32x128xf32>
    %1 = vector.shape_cast %0 : vector<1x32x128xf32> to vector<32x128xf32>
    %c0_2 = arith.constant 0 : index
    %c32 = arith.constant 32 : index
    %c0_3 = arith.constant 0 : index
    %2 = vector.load %arg2[%c0_2, %c32, %c0_3] : memref<1x64x128xf32, #tpu.memory_space<vmem>>, vector<1x32x128xf32>
    %3 = vector.shape_cast %2 : vector<1x32x128xf32> to vector<32x128xf32>
    %c0_4 = arith.constant 0 : index
    %c0_5 = arith.constant 0 : index
    %4 = vector.load %arg1[%c0_4, %c0_5] : memref<64x128xf32, #tpu.memory_space<vmem>>, vector<64x128xf32>
    %cst = arith.constant 0.000000e+00 : f32
    %5 = vector.broadcast %cst : f32 to vector<32x128xf32>
    %6 = tpu.concatenate %1, %4, %3, %5 in 0 : vector<32x128xf32>, vector<64x128xf32>, vector<32x128xf32>, vector<32x128xf32> -> vector<160x128xf32>
    %cst_6 = arith.constant 0.000000e+00 : f32
    %7 = vector.broadcast %cst_6 : f32 to vector<64x128xf32>
    %8 = vector.extract_strided_slice %6 {offsets = [0, 0], sizes = [64, 128], strides = [1, 1]} : vector<160x128xf32> to vector<64x128xf32>
    %c0_7 = arith.constant 0 : index
    %c0_8 = arith.constant 0 : index
    %c0_9 = arith.constant 0 : index
    %9 = vector.load %arg3[%c0_7, %c0_8, %c0_9] : memref<9x128x128xf32, #tpu.memory_space<vmem>>, vector<1x128x128xf32>
    %10 = vector.shape_cast %9 : vector<1x128x128xf32> to vector<128x128xf32>
    %cst_10 = arith.constant dense<0.000000e+00> : vector<64x128xf32>
    %11 = tpu.matmul %8, %10, %cst_10 {dimension_numbers = #tpu.dot_dimension_numbers<[1], [0], [0], [1], [0, 0, 1, 1], [], []>} : vector<64x128xf32>, vector<128x128xf32>, vector<64x128xf32> -> vector<64x128xf32>
    %12 = arith.addf %7, %11 : vector<64x128xf32>
    %13 = vector.extract_strided_slice %6 {offsets = [1, 0], sizes = [64, 128], strides = [1, 1]} : vector<160x128xf32> to vector<64x128xf32>
    %c1 = arith.constant 1 : index
    %c0_11 = arith.constant 0 : index
    %c0_12 = arith.constant 0 : index
    %14 = vector.load %arg3[%c1, %c0_11, %c0_12] : memref<9x128x128xf32, #tpu.memory_space<vmem>>, vector<1x128x128xf32>
    %15 = vector.shape_cast %14 : vector<1x128x128xf32> to vector<128x128xf32>
    %cst_13 = arith.constant dense<0.000000e+00> : vector<64x128xf32>
    %16 = tpu.matmul %13, %15, %cst_13 {dimension_numbers = #tpu.dot_dimension_numbers<[1], [0], [0], [1], [0, 0, 1, 1], [], []>} : vector<64x128xf32>, vector<128x128xf32>, vector<64x128xf32> -> vector<64x128xf32>
    %17 = arith.addf %12, %16 : vector<64x128xf32>
    %18 = vector.extract_strided_slice %6 {offsets = [2, 0], sizes = [64, 128], strides = [1, 1]} : vector<160x128xf32> to vector<64x128xf32>
    %c2 = arith.constant 2 : index
    %c0_14 = arith.constant 0 : index
    %c0_15 = arith.constant 0 : index
    %19 = vector.load %arg3[%c2, %c0_14, %c0_15] : memref<9x128x128xf32, #tpu.memory_space<vmem>>, vector<1x128x128xf32>
    %20 = vector.shape_cast %19 : vector<1x128x128xf32> to vector<128x128xf32>
    %cst_16 = arith.constant dense<0.000000e+00> : vector<64x128xf32>
    %21 = tpu.matmul %18, %20, %cst_16 {dimension_numbers = #tpu.dot_dimension_numbers<[1], [0], [0], [1], [0, 0, 1, 1], [], []>} : vector<64x128xf32>, vector<128x128xf32>, vector<64x128xf32> -> vector<64x128xf32>
    %22 = arith.addf %17, %21 : vector<64x128xf32>
    %23 = vector.extract_strided_slice %6 {offsets = [32, 0], sizes = [64, 128], strides = [1, 1]} : vector<160x128xf32> to vector<64x128xf32>
    %c3 = arith.constant 3 : index
    %c0_17 = arith.constant 0 : index
    %c0_18 = arith.constant 0 : index
    %24 = vector.load %arg3[%c3, %c0_17, %c0_18] : memref<9x128x128xf32, #tpu.memory_space<vmem>>, vector<1x128x128xf32>
    %25 = vector.shape_cast %24 : vector<1x128x128xf32> to vector<128x128xf32>
    %cst_19 = arith.constant dense<0.000000e+00> : vector<64x128xf32>
    %26 = tpu.matmul %23, %25, %cst_19 {dimension_numbers = #tpu.dot_dimension_numbers<[1], [0], [0], [1], [0, 0, 1, 1], [], []>} : vector<64x128xf32>, vector<128x128xf32>, vector<64x128xf32> -> vector<64x128xf32>
    %27 = arith.addf %22, %26 : vector<64x128xf32>
    %28 = vector.extract_strided_slice %6 {offsets = [33, 0], sizes = [64, 128], strides = [1, 1]} : vector<160x128xf32> to vector<64x128xf32>
    %c4 = arith.constant 4 : index
    %c0_20 = arith.constant 0 : index
    %c0_21 = arith.constant 0 : index
    %29 = vector.load %arg3[%c4, %c0_20, %c0_21] : memref<9x128x128xf32, #tpu.memory_space<vmem>>, vector<1x128x128xf32>
    %30 = vector.shape_cast %29 : vector<1x128x128xf32> to vector<128x128xf32>
    %cst_22 = arith.constant dense<0.000000e+00> : vector<64x128xf32>
    %31 = tpu.matmul %28, %30, %cst_22 {dimension_numbers = #tpu.dot_dimension_numbers<[1], [0], [0], [1], [0, 0, 1, 1], [], []>} : vector<64x128xf32>, vector<128x128xf32>, vector<64x128xf32> -> vector<64x128xf32>
    %32 = arith.addf %27, %31 : vector<64x128xf32>
    %33 = vector.extract_strided_slice %6 {offsets = [34, 0], sizes = [64, 128], strides = [1, 1]} : vector<160x128xf32> to vector<64x128xf32>
    %c5 = arith.constant 5 : index
    %c0_23 = arith.constant 0 : index
    %c0_24 = arith.constant 0 : index
    %34 = vector.load %arg3[%c5, %c0_23, %c0_24] : memref<9x128x128xf32, #tpu.memory_space<vmem>>, vector<1x128x128xf32>
    %35 = vector.shape_cast %34 : vector<1x128x128xf32> to vector<128x128xf32>
    %cst_25 = arith.constant dense<0.000000e+00> : vector<64x128xf32>
    %36 = tpu.matmul %33, %35, %cst_25 {dimension_numbers = #tpu.dot_dimension_numbers<[1], [0], [0], [1], [0, 0, 1, 1], [], []>} : vector<64x128xf32>, vector<128x128xf32>, vector<64x128xf32> -> vector<64x128xf32>
    %37 = arith.addf %32, %36 : vector<64x128xf32>
    %38 = vector.extract_strided_slice %6 {offsets = [64, 0], sizes = [64, 128], strides = [1, 1]} : vector<160x128xf32> to vector<64x128xf32>
    %c6 = arith.constant 6 : index
    %c0_26 = arith.constant 0 : index
    %c0_27 = arith.constant 0 : index
    %39 = vector.load %arg3[%c6, %c0_26, %c0_27] : memref<9x128x128xf32, #tpu.memory_space<vmem>>, vector<1x128x128xf32>
    %40 = vector.shape_cast %39 : vector<1x128x128xf32> to vector<128x128xf32>
    %cst_28 = arith.constant dense<0.000000e+00> : vector<64x128xf32>
    %41 = tpu.matmul %38, %40, %cst_28 {dimension_numbers = #tpu.dot_dimension_numbers<[1], [0], [0], [1], [0, 0, 1, 1], [], []>} : vector<64x128xf32>, vector<128x128xf32>, vector<64x128xf32> -> vector<64x128xf32>
    %42 = arith.addf %37, %41 : vector<64x128xf32>
    %43 = vector.extract_strided_slice %6 {offsets = [65, 0], sizes = [64, 128], strides = [1, 1]} : vector<160x128xf32> to vector<64x128xf32>
    %c7 = arith.constant 7 : index
    %c0_29 = arith.constant 0 : index
    %c0_30 = arith.constant 0 : index
    %44 = vector.load %arg3[%c7, %c0_29, %c0_30] : memref<9x128x128xf32, #tpu.memory_space<vmem>>, vector<1x128x128xf32>
    %45 = vector.shape_cast %44 : vector<1x128x128xf32> to vector<128x128xf32>
    %cst_31 = arith.constant dense<0.000000e+00> : vector<64x128xf32>
    %46 = tpu.matmul %43, %45, %cst_31 {dimension_numbers = #tpu.dot_dimension_numbers<[1], [0], [0], [1], [0, 0, 1, 1], [], []>} : vector<64x128xf32>, vector<128x128xf32>, vector<64x128xf32> -> vector<64x128xf32>
    %47 = arith.addf %42, %46 : vector<64x128xf32>
    %48 = vector.extract_strided_slice %6 {offsets = [66, 0], sizes = [64, 128], strides = [1, 1]} : vector<160x128xf32> to vector<64x128xf32>
    %c8 = arith.constant 8 : index
    %c0_32 = arith.constant 0 : index
    %c0_33 = arith.constant 0 : index
    %49 = vector.load %arg3[%c8, %c0_32, %c0_33] : memref<9x128x128xf32, #tpu.memory_space<vmem>>, vector<1x128x128xf32>
    %50 = vector.shape_cast %49 : vector<1x128x128xf32> to vector<128x128xf32>
    %cst_34 = arith.constant dense<0.000000e+00> : vector<64x128xf32>
    %51 = tpu.matmul %48, %50, %cst_34 {dimension_numbers = #tpu.dot_dimension_numbers<[1], [0], [0], [1], [0, 0, 1, 1], [], []>} : vector<64x128xf32>, vector<128x128xf32>, vector<64x128xf32> -> vector<64x128xf32>
    %52 = arith.addf %47, %51 : vector<64x128xf32>
    %c0_35 = arith.constant 0 : index
    %c0_36 = arith.constant 0 : index
    %53 = vector.load %arg4[%c0_35, %c0_36] : memref<1x128xf32, #tpu.memory_space<vmem>>, vector<1x128xf32>
    %54 = vector.broadcast %53 : vector<1x128xf32> to vector<64x128xf32>
    %55 = arith.addf %52, %54 : vector<64x128xf32>
    %cst_37 = arith.constant 0.000000e+00 : f32
    %56 = vector.broadcast %cst_37 : f32 to vector<64x128xf32>
    %57 = arith.maximumf %55, %56 : vector<64x128xf32>
    %c0_38 = arith.constant 0 : index
    %c0_39 = arith.constant 0 : index
    %58 = vector.load %arg5[%c0_38, %c0_39] : memref<128x128xf32, #tpu.memory_space<vmem>>, vector<128x128xf32>
    %cst_40 = arith.constant dense<0.000000e+00> : vector<64x128xf32>
    %59 = tpu.matmul %57, %58, %cst_40 {dimension_numbers = #tpu.dot_dimension_numbers<[1], [0], [0], [1], [0, 0, 1, 1], [], []>} : vector<64x128xf32>, vector<128x128xf32>, vector<64x128xf32> -> vector<64x128xf32>
    %c0_41 = arith.constant 0 : index
    %c0_42 = arith.constant 0 : index
    %60 = vector.load %arg6[%c0_41, %c0_42] : memref<1x128xf32, #tpu.memory_space<vmem>>, vector<1x128xf32>
    %61 = vector.broadcast %60 : vector<1x128xf32> to vector<64x128xf32>
    %62 = arith.addf %59, %61 : vector<64x128xf32>
    %c0_43 = arith.constant 0 : index
    %c0_44 = arith.constant 0 : index
    %63 = vector.load %arg7[%c0_43, %c0_44] : memref<64x1xf32, #tpu.memory_space<vmem>>, vector<64x1xf32>
    %cst_45 = arith.constant 0.000000e+00 : f32
    %64 = vector.broadcast %cst_45 : f32 to vector<64x1xf32>
    %65 = arith.cmpf ogt, %63, %64 : vector<64x1xf32>
    %cst_46 = arith.constant -1.000000e+09 : f32
    %66 = vector.shape_cast %65 : vector<64x1xi1> to vector<64x1xi1>
    %67 = vector.broadcast %66 : vector<64x1xi1> to vector<64x128xi1>
    %68 = vector.broadcast %cst_46 : f32 to vector<64x128xf32>
    %69 = arith.select %67, %62, %68 : vector<64x128xi1>, vector<64x128xf32>
    %c0_47 = arith.constant 0 : index
    %c0_48 = arith.constant 0 : index
    %70 = vector.load %arg8[%c0_47, %c0_48] : memref<64x128xf32, #tpu.memory_space<vmem>>, vector<64x128xf32>
    tpu.vector_store %arg8[%c0_47, %c0_48], %69 {strides = array<i32>} : memref<64x128xf32, #tpu.memory_space<vmem>>, vector<64x128xf32>,
    return
  }
  func.func @transform_0(%arg0: i32) -> (i32, i32) {
    %c0_i32 = arith.constant 0 : i32
    %c0_i32_0 = arith.constant 0 : i32
    return %arg0, %c0_i32 : i32, i32
  }
  func.func @transform_1(%arg0: i32) -> (i32, i32, i32) {
    %c0_i32 = arith.constant 0 : i32
    %c0_i32_0 = arith.constant 0 : i32
    %c0_i32_1 = arith.constant 0 : i32
    return %arg0, %c0_i32, %c0_i32_0 : i32, i32, i32
  }
  func.func @transform_2(%arg0: i32) -> (i32, i32, i32) {
    %c0_i32 = arith.constant 0 : i32
    %c0_i32_0 = arith.constant 0 : i32
    %c0_i32_1 = arith.constant 0 : i32
    %c0_i32_2 = arith.constant 0 : i32
    return %c0_i32, %c0_i32_0, %c0_i32_1 : i32, i32, i32
  }
  func.func @transform_3(%arg0: i32) -> (i32, i32) {
    %c0_i32 = arith.constant 0 : i32
    %c0_i32_0 = arith.constant 0 : i32
    %c0_i32_1 = arith.constant 0 : i32
    return %c0_i32, %c0_i32_0 : i32, i32
  }
  func.func @transform_4(%arg0: i32) -> (i32, i32) {
    %c0_i32 = arith.constant 0 : i32
    %c0_i32_0 = arith.constant 0 : i32
    %c0_i32_1 = arith.constant 0 : i32
    return %c0_i32, %c0_i32_0 : i32, i32
  }
  func.func @transform_5(%arg0: i32) -> (i32, i32) {
    %c0_i32 = arith.constant 0 : i32
    %c0_i32_0 = arith.constant 0 : i32
    %c0_i32_1 = arith.constant 0 : i32
    return %c0_i32, %c0_i32_0 : i32, i32
  }
  func.func @transform_6(%arg0: i32) -> (i32, i32) {
    %c0_i32 = arith.constant 0 : i32
    %c0_i32_0 = arith.constant 0 : i32
    return %arg0, %c0_i32 : i32, i32
  }
  func.func @transform_7(%arg0: i32) -> (i32, i32) {
    %c0_i32 = arith.constant 0 : i32
    %c0_i32_0 = arith.constant 0 : i32
    return %arg0, %c0_i32 : i32, i32
  }
}

module attributes {stable_mosaic.version = 11 : i64} {
  func.func @_head_kernel(%arg0: i32, %arg1: memref<8x784xf32, #tpu.memory_space<vmem>>, %arg2: memref<784x32xf32, #tpu.memory_space<vmem>>, %arg3: memref<1x32xf32, #tpu.memory_space<vmem>>, %arg4: memref<32x32xf32, #tpu.memory_space<vmem>>, %arg5: memref<1x32xf32, #tpu.memory_space<vmem>>, %arg6: memref<32x128xf32, #tpu.memory_space<vmem>>, %arg7: memref<1x128xf32, #tpu.memory_space<vmem>>, %arg8: memref<8x128xf32, #tpu.memory_space<vmem>>) attributes {dimension_semantics = [#tpu.dimension_semantics<arbitrary>], iteration_bounds = array<i64: 1>, scalar_prefetch = 0 : i64, scratch_operands = 0 : i64, tpu.core_type = #tpu.core_type<tc>, window_params = [{pipeline_mode = #tpu.pipeline_mode<synchronous>, transform_indices = @transform_0, window_bounds = array<i64: 8, 784>}, {pipeline_mode = #tpu.pipeline_mode<synchronous>, transform_indices = @transform_1, window_bounds = array<i64: 784, 32>}, {pipeline_mode = #tpu.pipeline_mode<synchronous>, transform_indices = @transform_2, window_bounds = array<i64: 1, 32>}, {pipeline_mode = #tpu.pipeline_mode<synchronous>, transform_indices = @transform_3, window_bounds = array<i64: 32, 32>}, {pipeline_mode = #tpu.pipeline_mode<synchronous>, transform_indices = @transform_4, window_bounds = array<i64: 1, 32>}, {pipeline_mode = #tpu.pipeline_mode<synchronous>, transform_indices = @transform_5, window_bounds = array<i64: 32, 128>}, {pipeline_mode = #tpu.pipeline_mode<synchronous>, transform_indices = @transform_6, window_bounds = array<i64: 1, 128>}, {pipeline_mode = #tpu.pipeline_mode<synchronous>, transform_indices = @transform_7, window_bounds = array<i64: 8, 128>}]} {
    %c0 = arith.constant 0 : index
    %c0_0 = arith.constant 0 : index
    %0 = vector.load %arg1[%c0, %c0_0] : memref<8x784xf32, #tpu.memory_space<vmem>>, vector<8x784xf32>
    %c0_1 = arith.constant 0 : index
    %c0_2 = arith.constant 0 : index
    %1 = vector.load %arg2[%c0_1, %c0_2] : memref<784x32xf32, #tpu.memory_space<vmem>>, vector<784x32xf32>
    %cst = arith.constant dense<0.000000e+00> : vector<8x32xf32>
    %2 = tpu.matmul %0, %1, %cst {dimension_numbers = #tpu.dot_dimension_numbers<[1], [0], [0], [1], [0, 0, 1, 1], [], []>} : vector<8x784xf32>, vector<784x32xf32>, vector<8x32xf32> -> vector<8x32xf32>
    %c0_3 = arith.constant 0 : index
    %c0_4 = arith.constant 0 : index
    %3 = vector.load %arg3[%c0_3, %c0_4] : memref<1x32xf32, #tpu.memory_space<vmem>>, vector<1x32xf32>
    %4 = vector.broadcast %3 : vector<1x32xf32> to vector<8x32xf32>
    %5 = arith.addf %2, %4 : vector<8x32xf32>
    %cst_5 = arith.constant 0.000000e+00 : f32
    %6 = vector.broadcast %cst_5 : f32 to vector<8x32xf32>
    %7 = arith.maximumf %5, %6 : vector<8x32xf32>
    %c0_6 = arith.constant 0 : index
    %c0_7 = arith.constant 0 : index
    %8 = vector.load %arg4[%c0_6, %c0_7] : memref<32x32xf32, #tpu.memory_space<vmem>>, vector<32x32xf32>
    %cst_8 = arith.constant dense<0.000000e+00> : vector<8x32xf32>
    %9 = tpu.matmul %7, %8, %cst_8 {dimension_numbers = #tpu.dot_dimension_numbers<[1], [0], [0], [1], [0, 0, 1, 1], [], []>} : vector<8x32xf32>, vector<32x32xf32>, vector<8x32xf32> -> vector<8x32xf32>
    %c0_9 = arith.constant 0 : index
    %c0_10 = arith.constant 0 : index
    %10 = vector.load %arg5[%c0_9, %c0_10] : memref<1x32xf32, #tpu.memory_space<vmem>>, vector<1x32xf32>
    %11 = vector.broadcast %10 : vector<1x32xf32> to vector<8x32xf32>
    %12 = arith.addf %9, %11 : vector<8x32xf32>
    %cst_11 = arith.constant 0.000000e+00 : f32
    %13 = vector.broadcast %cst_11 : f32 to vector<8x32xf32>
    %14 = arith.maximumf %12, %13 : vector<8x32xf32>
    %c0_12 = arith.constant 0 : index
    %c0_13 = arith.constant 0 : index
    %15 = vector.load %arg6[%c0_12, %c0_13] : memref<32x128xf32, #tpu.memory_space<vmem>>, vector<32x128xf32>
    %cst_14 = arith.constant dense<0.000000e+00> : vector<8x128xf32>
    %16 = tpu.matmul %14, %15, %cst_14 {dimension_numbers = #tpu.dot_dimension_numbers<[1], [0], [0], [1], [0, 0, 1, 1], [], []>} : vector<8x32xf32>, vector<32x128xf32>, vector<8x128xf32> -> vector<8x128xf32>
    %c0_15 = arith.constant 0 : index
    %c0_16 = arith.constant 0 : index
    %17 = vector.load %arg7[%c0_15, %c0_16] : memref<1x128xf32, #tpu.memory_space<vmem>>, vector<1x128xf32>
    %18 = vector.broadcast %17 : vector<1x128xf32> to vector<8x128xf32>
    %19 = arith.addf %16, %18 : vector<8x128xf32>
    %c0_17 = arith.constant 0 : index
    %c0_18 = arith.constant 0 : index
    %20 = vector.load %arg8[%c0_17, %c0_18] : memref<8x128xf32, #tpu.memory_space<vmem>>, vector<8x128xf32>
    tpu.vector_store %arg8[%c0_17, %c0_18], %19 {strides = array<i32>} : memref<8x128xf32, #tpu.memory_space<vmem>>, vector<8x128xf32>,
    return
  }
  func.func @transform_0(%arg0: i32) -> (i32, i32) {
    %c0_i32 = arith.constant 0 : i32
    %c0_i32_0 = arith.constant 0 : i32
    %c0_i32_1 = arith.constant 0 : i32
    return %c0_i32, %c0_i32_0 : i32, i32
  }
  func.func @transform_1(%arg0: i32) -> (i32, i32) {
    %c0_i32 = arith.constant 0 : i32
    %c0_i32_0 = arith.constant 0 : i32
    %c0_i32_1 = arith.constant 0 : i32
    return %c0_i32, %c0_i32_0 : i32, i32
  }
  func.func @transform_2(%arg0: i32) -> (i32, i32) {
    %c0_i32 = arith.constant 0 : i32
    %c0_i32_0 = arith.constant 0 : i32
    %c0_i32_1 = arith.constant 0 : i32
    return %c0_i32, %c0_i32_0 : i32, i32
  }
  func.func @transform_3(%arg0: i32) -> (i32, i32) {
    %c0_i32 = arith.constant 0 : i32
    %c0_i32_0 = arith.constant 0 : i32
    %c0_i32_1 = arith.constant 0 : i32
    return %c0_i32, %c0_i32_0 : i32, i32
  }
  func.func @transform_4(%arg0: i32) -> (i32, i32) {
    %c0_i32 = arith.constant 0 : i32
    %c0_i32_0 = arith.constant 0 : i32
    %c0_i32_1 = arith.constant 0 : i32
    return %c0_i32, %c0_i32_0 : i32, i32
  }
  func.func @transform_5(%arg0: i32) -> (i32, i32) {
    %c0_i32 = arith.constant 0 : i32
    %c0_i32_0 = arith.constant 0 : i32
    %c0_i32_1 = arith.constant 0 : i32
    return %c0_i32, %c0_i32_0 : i32, i32
  }
  func.func @transform_6(%arg0: i32) -> (i32, i32) {
    %c0_i32 = arith.constant 0 : i32
    %c0_i32_0 = arith.constant 0 : i32
    %c0_i32_1 = arith.constant 0 : i32
    return %c0_i32, %c0_i32_0 : i32, i32
  }
  func.func @transform_7(%arg0: i32) -> (i32, i32) {
    %c0_i32 = arith.constant 0 : i32
    %c0_i32_0 = arith.constant 0 : i32
    %c0_i32_1 = arith.constant 0 : i32
    return %c0_i32, %c0_i32_0 : i32, i32
  }
}

</mosaic_0001>

<llo_original>
// kernel: tile.13
$region0: #{tile.13}
  #allocation0 [shape = 's32[1]{0}', space=sflag, size = 0x4, scoped, tag = 'scoped memory for tile.13']
  %s0 = inlined_call_operand.vmem [shape: f32[32], index: 0, kind: input, shape index: {}]
  %s1 = inlined_call_operand.vmem [shape: f32[16,32], index: 1, kind: output, shape index: {}]
  // Predicated region
  $region2: #{tile.13} parent=0 // pred_check
    _
  $region3: #{tile.13} parent=0 // pred_check_branch
    %3 = sbr.rel (0) target = $region5
  $region4: #{tile.13} parent=0 // pred_region
    _
  $region5: #{tile.13} parent=0 // pred_fallthru
    _
  %v4 = vld [vmem:[%s0] ss:$0 sm:$0xff]
  %5 = vst [vmem:[%s1] sm:$0xff] %v4
  %s6 = scalar_lea.vmem %s1, 8
  %7 = vst [vmem:[%s6] sm:$0xff] %v4

// kernel: tile.0
$region0: #{tile.0}
  %s0 = inlined_call_operand.vmem [shape: f32[16,32], index: 0, kind: input, shape index: {}]
  %s1 = inlined_call_operand.hbm [shape: f32[512,1], index: 1, kind: output, shape index: {}]
  $region1: #{tile.0} parent=0
    #allocation0 [shape = 'u8[262144]{0}', space=vmem, size = 0x40000, scoped, tag = 'operand span for operand 1']
    #allocation1 [shape = 's32[1]{0}', space=sflag, size = 0x4, scoped, tag = 'scoped memory for tile.0']
    %2 = vsyncpa [#allocation1], 0
    %v3 = vld [vmem:[%s0] sm:$0xff]
    %vm4 = vcmask 7168
    %5 = vst.msk [vmem:[#allocation0] sm:$0x1] %vm4, %v3
    %s6 = scalar_lea.vmem [#allocation0], 31
    %7 = vst.msk [vmem:[%s6] sm:$0x2] %vm4, %v3
    %s8 = scalar_lea.vmem [#allocation0], 62
    %9 = vst.msk [vmem:[%s8] sm:$0x4] %vm4, %v3
    %s10 = scalar_lea.vmem [#allocation0], 93
    %11 = vst.msk [vmem:[%s10] sm:$0x8] %vm4, %v3
    %s12 = scalar_lea.vmem [#allocation0], 124
    %13 = vst.msk [vmem:[%s12] sm:$0x10] %vm4, %v3
    %s14 = scalar_lea.vmem [#allocation0], 155
    %15 = vst.msk [vmem:[%s14] sm:$0x20] %vm4, %v3
    %s16 = scalar_lea.vmem [#allocation0], 186
    %17 = vst.msk [vmem:[%s16] sm:$0x40] %vm4, %v3
    %s18 = scalar_lea.vmem [#allocation0], 217
    %19 = vst.msk [vmem:[%s18] sm:$0x80] %vm4, %v3
    %s20 = scalar_lea.vmem %s0, 8
    %v21 = vld [vmem:[%s20] sm:$0xff]
    %vm22 = vcmask 7168
    %s23 = scalar_lea.vmem [#allocation0], 256
    %24 = vst.msk [vmem:[%s23] sm:$0x1] %vm22, %v21
    %s25 = scalar_lea.vmem [#allocation0], 287
    %26 = vst.msk [vmem:[%s25] sm:$0x2] %vm22, %v21
    %s27 = scalar_lea.vmem [#allocation0], 318
    %28 = vst.msk [vmem:[%s27] sm:$0x4] %vm22, %v21
    %s29 = scalar_lea.vmem [#allocation0], 349
    %30 = vst.msk [vmem:[%s29] sm:$0x8] %vm22, %v21
    %s31 = scalar_lea.vmem [#allocation0], 380
    %32 = vst.msk [vmem:[%s31] sm:$0x10] %vm22, %v21
    %s33 = scalar_lea.vmem [#allocation0], 411
    %34 = vst.msk [vmem:[%s33] sm:$0x20] %vm22, %v21
    %s35 = scalar_lea.vmem [#allocation0], 442
    %36 = vst.msk [vmem:[%s35] sm:$0x40] %vm22, %v21
    %s37 = scalar_lea.vmem [#allocation0], 473
    %38 = vst.msk [vmem:[%s37] sm:$0x80] %vm22, %v21
    %v39 = vld [vmem:[%s0] sm:$0xff]
    %40 = vrot.lane.b32.xlu0 %v39, 127
    %v41 = vpop.permute.xlu0 %40
    %vm42 = vcmask 7168
    %s43 = scalar_lea.vmem [#allocation0], 1
    %44 = vst.msk [vmem:[%s43] sm:$0x1] %vm42, %v41
    %s45 = scalar_lea.vmem [#allocation0], 32
    %46 = vst.msk [vmem:[%s45] sm:$0x2] %vm42, %v41
    %s47 = scalar_lea.vmem [#allocation0], 63
    %48 = vst.msk [vmem:[%s47] sm:$0x4] %vm42, %v41
    %s49 = scalar_lea.vmem [#allocation0], 94
    %50 = vst.msk [vmem:[%s49] sm:$0x8] %vm42, %v41
    %s51 = scalar_lea.vmem [#allocation0], 125
    %52 = vst.msk [vmem:[%s51] sm:$0x10] %vm42, %v41
    %s53 = scalar_lea.vmem [#allocation0], 156
    %54 = vst.msk [vmem:[%s53] sm:$0x20] %vm42, %v41
    %s55 = scalar_lea.vmem [#allocation0], 187
    %56 = vst.msk [vmem:[%s55] sm:$0x40] %vm42, %v41
    %s57 = scalar_lea.vmem [#allocation0], 218
    %58 = vst.msk [vmem:[%s57] sm:$0x80] %vm42, %v41
    %s59 = scalar_lea.vmem %s0, 8
    %v60 = vld [vmem:[%s59] sm:$0xff]
    %61 = vrot.lane.b32.xlu0 %v60, 127
    %v62 = vpop.permute.xlu0 %61
    %vm63 = vcmask 7168
    %s64 = scalar_lea.vmem [#allocation0], 257
    %65 = vst.msk [vmem:[%s64] sm:$0x1] %vm63, %v62
    %s66 = scalar_lea.vmem [#allocation0], 288
    %67 = vst.msk [vmem:[%s66] sm:$0x2] %vm63, %v62
    %s68 = scalar_lea.vmem [#allocation0], 319
    %69 = vst.msk [vmem:[%s68] sm:$0x4] %vm63, %v62
    %s70 = scalar_lea.vmem [#allocation0], 350
    %71 = vst.msk [vmem:[%s70] sm:$0x8] %vm63, %v62
    %s72 = scalar_lea.vmem [#allocation0], 381
    %73 = vst.msk [vmem:[%s72] sm:$0x10] %vm63, %v62
    %s74 = scalar_lea.vmem [#allocation0], 412
    %75 = vst.msk [vmem:[%s74] sm:$0x20] %vm63, %v62
    %s76 = scalar_lea.vmem [#allocation0], 443
    %77 = vst.msk [vmem:[%s76] sm:$0x40] %vm63, %v62
    %s78 = scalar_lea.vmem [#allocation0], 474
    %79 = vst.msk [vmem:[%s78] sm:$0x80] %vm63, %v62
    %v80 = vld [vmem:[%s0] sm:$0xff]
    %81 = vrot.lane.b32.xlu0 %v80, 126
    %v82 = vpop.permute.xlu0 %81
    %vm83 = vcmask 7168
    %s84 = scalar_lea.vmem [#allocation0], 2
    %85 = vst.msk [vmem:[%s84] sm:$0x1] %vm83, %v82
    %s86 = scalar_lea.vmem [#allocation0], 33
    %87 = vst.msk [vmem:[%s86] sm:$0x2] %vm83, %v82
    %s88 = scalar_lea.vmem [#allocation0], 64
    %89 = vst.msk [vmem:[%s88] sm:$0x4] %vm83, %v82
    %s90 = scalar_lea.vmem [#allocation0], 95
    %91 = vst.msk [vmem:[%s90] sm:$0x8] %vm83, %v82
    %s92 = scalar_lea.vmem [#allocation0], 126
    %93 = vst.msk [vmem:[%s92] sm:$0x10] %vm83, %v82
    %s94 = scalar_lea.vmem [#allocation0], 157
    %95 = vst.msk [vmem:[%s94] sm:$0x20] %vm83, %v82
    %s96 = scalar_lea.vmem [#allocation0], 188
    %97 = vst.msk [vmem:[%s96] sm:$0x40] %vm83, %v82
    %s98 = scalar_lea.vmem [#allocation0], 219
    %99 = vst.msk [vmem:[%s98] sm:$0x80] %vm83, %v82
    %s100 = scalar_lea.vmem %s0, 8
    %v101 = vld [vmem:[%s100] sm:$0xff]
    %102 = vrot.lane.b32.xlu0 %v101, 126
    %v103 = vpop.permute.xlu0 %102
    %vm104 = vcmask 7168
    %s105 = scalar_lea.vmem [#allocation0], 258
    %106 = vst.msk [vmem:[%s105] sm:$0x1] %vm104, %v103
    %s107 = scalar_lea.vmem [#allocation0], 289
    %108 = vst.msk [vmem:[%s107] sm:$0x2] %vm104, %v103
    %s109 = scalar_lea.vmem [#allocation0], 320
    %110 = vst.msk [vmem:[%s109] sm:$0x4] %vm104, %v103
    %s111 = scalar_lea.vmem [#allocation0], 351
    %112 = vst.msk [vmem:[%s111] sm:$0x8] %vm104, %v103
    %s113 = scalar_lea.vmem [#allocation0], 382
    %114 = vst.msk [vmem:[%s113] sm:$0x10] %vm104, %v103
    %s115 = scalar_lea.vmem [#allocation0], 413
    %116 = vst.msk [vmem:[%s115] sm:$0x20] %vm104, %v103
    %s117 = scalar_lea.vmem [#allocation0], 444
    %118 = vst.msk [vmem:[%s117] sm:$0x40] %vm104, %v103
    %s119 = scalar_lea.vmem [#allocation0], 475
    %120 = vst.msk [vmem:[%s119] sm:$0x80] %vm104, %v103
    %v121 = vld [vmem:[%s0] sm:$0xff]
    %122 = vrot.lane.b32.xlu0 %v121, 125
    %v123 = vpop.permute.xlu0 %122
    %vm124 = vcmask 7168
    %s125 = scalar_lea.vmem [#allocation0], 3
    %126 = vst.msk [vmem:[%s125] sm:$0x1] %vm124, %v123
    %s127 = scalar_lea.vmem [#allocation0], 34
    %128 = vst.msk [vmem:[%s127] sm:$0x2] %vm124, %v123
    %s129 = scalar_lea.vmem [#allocation0], 65
    %130 = vst.msk [vmem:[%s129] sm:$0x4] %vm124, %v123
    %s131 = scalar_lea.vmem [#allocation0], 96
    %132 = vst.msk [vmem:[%s131] sm:$0x8] %vm124, %v123
    %s133 = scalar_lea.vmem [#allocation0], 127
    %134 = vst.msk [vmem:[%s133] sm:$0x10] %vm124, %v123
    %s135 = scalar_lea.vmem [#allocation0], 158
    %136 = vst.msk [vmem:[%s135] sm:$0x20] %vm124, %v123
    %s137 = scalar_lea.vmem [#allocation0], 189
    %138 = vst.msk [vmem:[%s137] sm:$0x40] %vm124, %v123
    %s139 = scalar_lea.vmem [#allocation0], 220
    %140 = vst.msk [vmem:[%s139] sm:$0x80] %vm124, %v123
    %s141 = scalar_lea.vmem %s0, 8
    %v142 = vld [vmem:[%s141] sm:$0xff]
    %143 = vrot.lane.b32.xlu0 %v142, 125
    %v144 = vpop.permute.xlu0 %143
    %vm145 = vcmask 7168
    %s146 = scalar_lea.vmem [#allocation0], 259
    %147 = vst.msk [vmem:[%s146] sm:$0x1] %vm145, %v144
    %s148 = scalar_lea.vmem [#allocation0], 290
    %149 = vst.msk [vmem:[%s148] sm:$0x2] %vm145, %v144
    %s150 = scalar_lea.vmem [#allocation0], 321
    %151 = vst.msk [vmem:[%s150] sm:$0x4] %vm145, %v144
    %s152 = scalar_lea.vmem [#allocation0], 352
    %153 = vst.msk [vmem:[%s152] sm:$0x8] %vm145, %v144
    %s154 = scalar_lea.vmem [#allocation0], 383
    %155 = vst.msk [vmem:[%s154] sm:$0x10] %vm145, %v144
    %s156 = scalar_lea.vmem [#allocation0], 414
    %157 = vst.msk [vmem:[%s156] sm:$0x20] %vm145, %v144
    %s158 = scalar_lea.vmem [#allocation0], 445
    %159 = vst.msk [vmem:[%s158] sm:$0x40] %vm145, %v144
    %s160 = scalar_lea.vmem [#allocation0], 476
    %161 = vst.msk [vmem:[%s160] sm:$0x80] %vm145, %v144
    %v162 = vld [vmem:[%s0] sm:$0xff]
    %163 = vrot.lane.b32.xlu0 %v162, 124
    %v164 = vpop.permute.xlu0 %163
    %vm165 = vcmask 7168
    %s166 = scalar_lea.vmem [#allocation0], 4
    %167 = vst.msk [vmem:[%s166] sm:$0x1] %vm165, %v164
    %s168 = scalar_lea.vmem [#allocation0], 35
    %169 = vst.msk [vmem:[%s168] sm:$0x2] %vm165, %v164
    %s170 = scalar_lea.vmem [#allocation0], 66
    %171 = vst.msk [vmem:[%s170] sm:$0x4] %vm165, %v164
    %s172 = scalar_lea.vmem [#allocation0], 97
    %173 = vst.msk [vmem:[%s172] sm:$0x8] %vm165, %v164
    %s174 = scalar_lea.vmem [#allocation0], 128
    %175 = vst.msk [vmem:[%s174] sm:$0x10] %vm165, %v164
    %s176 = scalar_lea.vmem [#allocation0], 159
    %177 = vst.msk [vmem:[%s176] sm:$0x20] %vm165, %v164
    %s178 = scalar_lea.vmem [#allocation0], 190
    %179 = vst.msk [vmem:[%s178] sm:$0x40] %vm165, %v164
    %s180 = scalar_lea.vmem [#allocation0], 221
    %181 = vst.msk [vmem:[%s180] sm:$0x80] %vm165, %v164
    %s182 = scalar_lea.vmem %s0, 8
    %v183 = vld [vmem:[%s182] sm:$0xff]
    %184 = vrot.lane.b32.xlu0 %v183, 124
    %v185 = vpop.permute.xlu0 %184
    %vm186 = vcmask 7168
    %s187 = scalar_lea.vmem [#allocation0], 260
    %188 = vst.msk [vmem:[%s187] sm:$0x1] %vm186, %v185
    %s189 = scalar_lea.vmem [#allocation0], 291
    %190 = vst.msk [vmem:[%s189] sm:$0x2] %vm186, %v185
    %s191 = scalar_lea.vmem [#allocation0], 322
    %192 = vst.msk [vmem:[%s191] sm:$0x4] %vm186, %v185
    %s193 = scalar_lea.vmem [#allocation0], 353
    %194 = vst.msk [vmem:[%s193] sm:$0x8] %vm186, %v185
    %s195 = scalar_lea.vmem [#allocation0], 384
    %196 = vst.msk [vmem:[%s195] sm:$0x10] %vm186, %v185
    %s197 = scalar_lea.vmem [#allocation0], 415
    %198 = vst.msk [vmem:[%s197] sm:$0x20] %vm186, %v185
    %s199 = scalar_lea.vmem [#allocation0], 446
    %200 = vst.msk [vmem:[%s199] sm:$0x40] %vm186, %v185
    %s201 = scalar_lea.vmem [#allocation0], 477
    %202 = vst.msk [vmem:[%s201] sm:$0x80] %vm186, %v185
    %v203 = vld [vmem:[%s0] sm:$0xff]
    %204 = vrot.lane.b32.xlu0 %v203, 123
    %v205 = vpop.permute.xlu0 %204
    %vm206 = vcmask 7168
    %s207 = scalar_lea.vmem [#allocation0], 5
    %208 = vst.msk [vmem:[%s207] sm:$0x1] %vm206, %v205
    %s209 = scalar_lea.vmem [#allocation0], 36
    %210 = vst.msk [vmem:[%s209] sm:$0x2] %vm206, %v205
    %s211 = scalar_lea.vmem [#allocation0], 67
    %212 = vst.msk [vmem:[%s211] sm:$0x4] %vm206, %v205
    %s213 = scalar_lea.vmem [#allocation0], 98
    %214 = vst.msk [vmem:[%s213] sm:$0x8] %vm206, %v205
    %s215 = scalar_lea.vmem [#allocation0], 129
    %216 = vst.msk [vmem:[%s215] sm:$0x10] %vm206, %v205
    %s217 = scalar_lea.vmem [#allocation0], 160
    %218 = vst.msk [vmem:[%s217] sm:$0x20] %vm206, %v205
    %s219 = scalar_lea.vmem [#allocation0], 191
    %220 = vst.msk [vmem:[%s219] sm:$0x40] %vm206, %v205
    %s221 = scalar_lea.vmem [#allocation0], 222
    %222 = vst.msk [vmem:[%s221] sm:$0x80] %vm206, %v205
    %s223 = scalar_lea.vmem %s0, 8
    %v224 = vld [vmem:[%s223] sm:$0xff]
    %225 = vrot.lane.b32.xlu0 %v224, 123
    %v226 = vpop.permute.xlu0 %225
    %vm227 = vcmask 7168
    %s228 = scalar_lea.vmem [#allocation0], 261
    %229 = vst.msk [vmem:[%s228] sm:$0x1] %vm227, %v226
    %s230 = scalar_lea.vmem [#allocation0], 292
    %231 = vst.msk [vmem:[%s230] sm:$0x2] %vm227, %v226
    %s232 = scalar_lea.vmem [#allocation0], 323
    %233 = vst.msk [vmem:[%s232] sm:$0x4] %vm227, %v226
    %s234 = scalar_lea.vmem [#allocation0], 354
    %235 = vst.msk [vmem:[%s234] sm:$0x8] %vm227, %v226
    %s236 = scalar_lea.vmem [#allocation0], 385
    %237 = vst.msk [vmem:[%s236] sm:$0x10] %vm227, %v226
    %s238 = scalar_lea.vmem [#allocation0], 416
    %239 = vst.msk [vmem:[%s238] sm:$0x20] %vm227, %v226
    %s240 = scalar_lea.vmem [#allocation0], 447
    %241 = vst.msk [vmem:[%s240] sm:$0x40] %vm227, %v226
    %s242 = scalar_lea.vmem [#allocation0], 478
    %243 = vst.msk [vmem:[%s242] sm:$0x80] %vm227, %v226
    %v244 = vld [vmem:[%s0] sm:$0xff]
    %245 = vrot.lane.b32.xlu0 %v244, 122
    %v246 = vpop.permute.xlu0 %245
    %vm247 = vcmask 7168
    %s248 = scalar_lea.vmem [#allocation0], 6
    %249 = vst.msk [vmem:[%s248] sm:$0x1] %vm247, %v246
    %s250 = scalar_lea.vmem [#allocation0], 37
    %251 = vst.msk [vmem:[%s250] sm:$0x2] %vm247, %v246
    %s252 = scalar_lea.vmem [#allocation0], 68
    %253 = vst.msk [vmem:[%s252] sm:$0x4] %vm247, %v246
    %s254 = scalar_lea.vmem [#allocation0], 99
    %255 = vst.msk [vmem:[%s254] sm:$0x8] %vm247, %v246
    %s256 = scalar_lea.vmem [#allocation0], 130
    %257 = vst.msk [vmem:[%s256] sm:$0x10] %vm247, %v246
    %s258 = scalar_lea.vmem [#allocation0], 161
    %259 = vst.msk [vmem:[%s258] sm:$0x20] %vm247, %v246
    %s260 = scalar_lea.vmem [#allocation0], 192
    %261 = vst.msk [vmem:[%s260] sm:$0x40] %vm247, %v246
    %s262 = scalar_lea.vmem [#allocation0], 223
    %263 = vst.msk [vmem:[%s262] sm:$0x80] %vm247, %v246
    %s264 = scalar_lea.vmem %s0, 8
    %v265 = vld [vmem:[%s264] sm:$0xff]
    %266 = vrot.lane.b32.xlu0 %v265, 122
    %v267 = vpop.permute.xlu0 %266
    %vm268 = vcmask 7168
    %s269 = scalar_lea.vmem [#allocation0], 262
    %270 = vst.msk [vmem:[%s269] sm:$0x1] %vm268, %v267
    %s271 = scalar_lea.vmem [#allocation0], 293
    %272 = vst.msk [vmem:[%s271] sm:$0x2] %vm268, %v267
    %s273 = scalar_lea.vmem [#allocation0], 324
    %274 = vst.msk [vmem:[%s273] sm:$0x4] %vm268, %v267
    %s275 = scalar_lea.vmem [#allocation0], 355
    %276 = vst.msk [vmem:[%s275] sm:$0x8] %vm268, %v267
    %s277 = scalar_lea.vmem [#allocation0], 386
    %278 = vst.msk [vmem:[%s277] sm:$0x10] %vm268, %v267
    %s279 = scalar_lea.vmem [#allocation0], 417
    %280 = vst.msk [vmem:[%s279] sm:$0x20] %vm268, %v267
    %s281 = scalar_lea.vmem [#allocation0], 448
    %282 = vst.msk [vmem:[%s281] sm:$0x40] %vm268, %v267
    %s283 = scalar_lea.vmem [#allocation0], 479
    %284 = vst.msk [vmem:[%s283] sm:$0x80] %vm268, %v267
    %v285 = vld [vmem:[%s0] sm:$0xff]
    %286 = vrot.lane.b32.xlu0 %v285, 121
    %v287 = vpop.permute.xlu0 %286
    %vm288 = vcmask 7168
    %s289 = scalar_lea.vmem [#allocation0], 7
    %290 = vst.msk [vmem:[%s289] sm:$0x1] %vm288, %v287
    %s291 = scalar_lea.vmem [#allocation0], 38
    %292 = vst.msk [vmem:[%s291] sm:$0x2] %vm288, %v287
    %s293 = scalar_lea.vmem [#allocation0], 69
    %294 = vst.msk [vmem:[%s293] sm:$0x4] %vm288, %v287
    %s295 = scalar_lea.vmem [#allocation0], 100
    %296 = vst.msk [vmem:[%s295] sm:$0x8] %vm288, %v287
    %s297 = scalar_lea.vmem [#allocation0], 131
    %298 = vst.msk [vmem:[%s297] sm:$0x10] %vm288, %v287
    %s299 = scalar_lea.vmem [#allocation0], 162
    %300 = vst.msk [vmem:[%s299] sm:$0x20] %vm288, %v287
    %s301 = scalar_lea.vmem [#allocation0], 193
    %302 = vst.msk [vmem:[%s301] sm:$0x40] %vm288, %v287
    %s303 = scalar_lea.vmem [#allocation0], 224
    %304 = vst.msk [vmem:[%s303] sm:$0x80] %vm288, %v287
    %s305 = scalar_lea.vmem %s0, 8
    %v306 = vld [vmem:[%s305] sm:$0xff]
    %307 = vrot.lane.b32.xlu0 %v306, 121
    %v308 = vpop.permute.xlu0 %307
    %vm309 = vcmask 7168
    %s310 = scalar_lea.vmem [#allocation0], 263
    %311 = vst.msk [vmem:[%s310] sm:$0x1] %vm309, %v308
    %s312 = scalar_lea.vmem [#allocation0], 294
    %313 = vst.msk [vmem:[%s312] sm:$0x2] %vm309, %v308
    %s314 = scalar_lea.vmem [#allocation0], 325
    %315 = vst.msk [vmem:[%s314] sm:$0x4] %vm309, %v308
    %s316 = scalar_lea.vmem [#allocation0], 356
    %317 = vst.msk [vmem:[%s316] sm:$0x8] %vm309, %v308
    %s318 = scalar_lea.vmem [#allocation0], 387
    %319 = vst.msk [vmem:[%s318] sm:$0x10] %vm309, %v308
    %s320 = scalar_lea.vmem [#allocation0], 418
    %321 = vst.msk [vmem:[%s320] sm:$0x20] %vm309, %v308
    %s322 = scalar_lea.vmem [#allocation0], 449
    %323 = vst.msk [vmem:[%s322] sm:$0x40] %vm309, %v308
    %s324 = scalar_lea.vmem [#allocation0], 480
    %325 = vst.msk [vmem:[%s324] sm:$0x80] %vm309, %v308
    %v326 = vld [vmem:[%s0] sm:$0xff]
    %327 = vrot.lane.b32.xlu0 %v326, 120
    %v328 = vpop.permute.xlu0 %327
    %vm329 = vcmask 7168
    %s330 = scalar_lea.vmem [#allocation0], 8
    %331 = vst.msk [vmem:[%s330] sm:$0x1] %vm329, %v328
    %s332 = scalar_lea.vmem [#allocation0], 39
    %333 = vst.msk [vmem:[%s332] sm:$0x2] %vm329, %v328
    %s334 = scalar_lea.vmem [#allocation0], 70
    %335 = vst.msk [vmem:[%s334] sm:$0x4] %vm329, %v328
    %s336 = scalar_lea.vmem [#allocation0], 101
    %337 = vst.msk [vmem:[%s336] sm:$0x8] %vm329, %v328
    %s338 = scalar_lea.vmem [#allocation0], 132
    %339 = vst.msk [vmem:[%s338] sm:$0x10] %vm329, %v328
    %s340 = scalar_lea.vmem [#allocation0], 163
    %341 = vst.msk [vmem:[%s340] sm:$0x20] %vm329, %v328
    %s342 = scalar_lea.vmem [#allocation0], 194
    %343 = vst.msk [vmem:[%s342] sm:$0x40] %vm329, %v328
    %s344 = scalar_lea.vmem [#allocation0], 225
    %345 = vst.msk [vmem:[%s344] sm:$0x80] %vm329, %v328
    %s346 = scalar_lea.vmem %s0, 8
    %v347 = vld [vmem:[%s346] sm:$0xff]
    %348 = vrot.lane.b32.xlu0 %v347, 120
    %v349 = vpop.permute.xlu0 %348
    %vm350 = vcmask 7168
    %s351 = scalar_lea.vmem [#allocation0], 264
    %352 = vst.msk [vmem:[%s351] sm:$0x1] %vm350, %v349
    %s353 = scalar_lea.vmem [#allocation0], 295
    %354 = vst.msk [vmem:[%s353] sm:$0x2] %vm350, %v349
    %s355 = scalar_lea.vmem [#allocation0], 326
    %356 = vst.msk [vmem:[%s355] sm:$0x4] %vm350, %v349
    %s357 = scalar_lea.vmem [#allocation0], 357
    %358 = vst.msk [vmem:[%s357] sm:$0x8] %vm350, %v349
    %s359 = scalar_lea.vmem [#allocation0], 388
    %360 = vst.msk [vmem:[%s359] sm:$0x10] %vm350, %v349
    %s361 = scalar_lea.vmem [#allocation0], 419
    %362 = vst.msk [vmem:[%s361] sm:$0x20] %vm350, %v349
    %s363 = scalar_lea.vmem [#allocation0], 450
    %364 = vst.msk [vmem:[%s363] sm:$0x40] %vm350, %v349
    %s365 = scalar_lea.vmem [#allocation0], 481
    %366 = vst.msk [vmem:[%s365] sm:$0x80] %vm350, %v349
    %v367 = vld [vmem:[%s0] sm:$0xff]
    %368 = vrot.lane.b32.xlu0 %v367, 119
    %v369 = vpop.permute.xlu0 %368
    %vm370 = vcmask 7168
    %s371 = scalar_lea.vmem [#allocation0], 9
    %372 = vst.msk [vmem:[%s371] sm:$0x1] %vm370, %v369
    %s373 = scalar_lea.vmem [#allocation0], 40
    %374 = vst.msk [vmem:[%s373] sm:$0x2] %vm370, %v369
    %s375 = scalar_lea.vmem [#allocation0], 71
    %376 = vst.msk [vmem:[%s375] sm:$0x4] %vm370, %v369
    %s377 = scalar_lea.vmem [#allocation0], 102
    %378 = vst.msk [vmem:[%s377] sm:$0x8] %vm370, %v369
    %s379 = scalar_lea.vmem [#allocation0], 133
    %380 = vst.msk [vmem:[%s379] sm:$0x10] %vm370, %v369
    %s381 = scalar_lea.vmem [#allocation0], 164
    %382 = vst.msk [vmem:[%s381] sm:$0x20] %vm370, %v369
    %s383 = scalar_lea.vmem [#allocation0], 195
    %384 = vst.msk [vmem:[%s383] sm:$0x40] %vm370, %v369
    %s385 = scalar_lea.vmem [#allocation0], 226
    %386 = vst.msk [vmem:[%s385] sm:$0x80] %vm370, %v369
    %s387 = scalar_lea.vmem %s0, 8
    %v388 = vld [vmem:[%s387] sm:$0xff]
    %389 = vrot.lane.b32.xlu0 %v388, 119
    %v390 = vpop.permute.xlu0 %389
    %vm391 = vcmask 7168
    %s392 = scalar_lea.vmem [#allocation0], 265
    %393 = vst.msk [vmem:[%s392] sm:$0x1] %vm391, %v390
    %s394 = scalar_lea.vmem [#allocation0], 296
    %395 = vst.msk [vmem:[%s394] sm:$0x2] %vm391, %v390
    %s396 = scalar_lea.vmem [#allocation0], 327
    %397 = vst.msk [vmem:[%s396] sm:$0x4] %vm391, %v390
    %s398 = scalar_lea.vmem [#allocation0], 358
    %399 = vst.msk [vmem:[%s398] sm:$0x8] %vm391, %v390
    %s400 = scalar_lea.vmem [#allocation0], 389
    %401 = vst.msk [vmem:[%s400] sm:$0x10] %vm391, %v390
    %s402 = scalar_lea.vmem [#allocation0], 420
    %403 = vst.msk [vmem:[%s402] sm:$0x20] %vm391, %v390
    %s404 = scalar_lea.vmem [#allocation0], 451
    %405 = vst.msk [vmem:[%s404] sm:$0x40] %vm391, %v390
    %s406 = scalar_lea.vmem [#allocation0], 482
    %407 = vst.msk [vmem:[%s406] sm:$0x80] %vm391, %v390
    %v408 = vld [vmem:[%s0] sm:$0xff]
    %409 = vrot.lane.b32.xlu0 %v408, 118
    %v410 = vpop.permute.xlu0 %409
    %vm411 = vcmask 7168
    %s412 = scalar_lea.vmem [#allocation0], 10
    %413 = vst.msk [vmem:[%s412] sm:$0x1] %vm411, %v410
    %s414 = scalar_lea.vmem [#allocation0], 41
    %415 = vst.msk [vmem:[%s414] sm:$0x2] %vm411, %v410
    %s416 = scalar_lea.vmem [#allocation0], 72
    %417 = vst.msk [vmem:[%s416] sm:$0x4] %vm411, %v410
    %s418 = scalar_lea.vmem [#allocation0], 103
    %419 = vst.msk [vmem:[%s418] sm:$0x8] %vm411, %v410
    %s420 = scalar_lea.vmem [#allocation0], 134
    %421 = vst.msk [vmem:[%s420] sm:$0x10] %vm411, %v410
    %s422 = scalar_lea.vmem [#allocation0], 165
    %423 = vst.msk [vmem:[%s422] sm:$0x20] %vm411, %v410
    %s424 = scalar_lea.vmem [#allocation0], 196
    %425 = vst.msk [vmem:[%s424] sm:$0x40] %vm411, %v410
    %s426 = scalar_lea.vmem [#allocation0], 227
    %427 = vst.msk [vmem:[%s426] sm:$0x80] %vm411, %v410
    %s428 = scalar_lea.vmem %s0, 8
    %v429 = vld [vmem:[%s428] sm:$0xff]
    %430 = vrot.lane.b32.xlu0 %v429, 118
    %v431 = vpop.permute.xlu0 %430
    %vm432 = vcmask 7168
    %s433 = scalar_lea.vmem [#allocation0], 266
    %434 = vst.msk [vmem:[%s433] sm:$0x1] %vm432, %v431
    %s435 = scalar_lea.vmem [#allocation0], 297
    %436 = vst.msk [vmem:[%s435] sm:$0x2] %vm432, %v431
    %s437 = scalar_lea.vmem [#allocation0], 328
    %438 = vst.msk [vmem:[%s437] sm:$0x4] %vm432, %v431
    %s439 = scalar_lea.vmem [#allocation0], 359
    %440 = vst.msk [vmem:[%s439] sm:$0x8] %vm432, %v431
    %s441 = scalar_lea.vmem [#allocation0], 390
    %442 = vst.msk [vmem:[%s441] sm:$0x10] %vm432, %v431
    %s443 = scalar_lea.vmem [#allocation0], 421
    %444 = vst.msk [vmem:[%s443] sm:$0x20] %vm432, %v431
    %s445 = scalar_lea.vmem [#allocation0], 452
    %446 = vst.msk [vmem:[%s445] sm:$0x40] %vm432, %v431
    %s447 = scalar_lea.vmem [#allocation0], 483
    %448 = vst.msk [vmem:[%s447] sm:$0x80] %vm432, %v431
    %v449 = vld [vmem:[%s0] sm:$0xff]
    %450 = vrot.lane.b32.xlu0 %v449, 117
    %v451 = vpop.permute.xlu0 %450
    %vm452 = vcmask 7168
    %s453 = scalar_lea.vmem [#allocation0], 11
    %454 = vst.msk [vmem:[%s453] sm:$0x1] %vm452, %v451
    %s455 = scalar_lea.vmem [#allocation0], 42
    %456 = vst.msk [vmem:[%s455] sm:$0x2] %vm452, %v451
    %s457 = scalar_lea.vmem [#allocation0], 73
    %458 = vst.msk [vmem:[%s457] sm:$0x4] %vm452, %v451
    %s459 = scalar_lea.vmem [#allocation0], 104
    %460 = vst.msk [vmem:[%s459] sm:$0x8] %vm452, %v451
    %s461 = scalar_lea.vmem [#allocation0], 135
    %462 = vst.msk [vmem:[%s461] sm:$0x10] %vm452, %v451
    %s463 = scalar_lea.vmem [#allocation0], 166
    %464 = vst.msk [vmem:[%s463] sm:$0x20] %vm452, %v451
    %s465 = scalar_lea.vmem [#allocation0], 197
    %466 = vst.msk [vmem:[%s465] sm:$0x40] %vm452, %v451
    %s467 = scalar_lea.vmem [#allocation0], 228
    %468 = vst.msk [vmem:[%s467] sm:$0x80] %vm452, %v451
    %s469 = scalar_lea.vmem %s0, 8
    %v470 = vld [vmem:[%s469] sm:$0xff]
    %471 = vrot.lane.b32.xlu0 %v470, 117
    %v472 = vpop.permute.xlu0 %471
    %vm473 = vcmask 7168
    %s474 = scalar_lea.vmem [#allocation0], 267
    %475 = vst.msk [vmem:[%s474] sm:$0x1] %vm473, %v472
    %s476 = scalar_lea.vmem [#allocation0], 298
    %477 = vst.msk [vmem:[%s476] sm:$0x2] %vm473, %v472
    %s478 = scalar_lea.vmem [#allocation0], 329
    %479 = vst.msk [vmem:[%s478] sm:$0x4] %vm473, %v472
    %s480 = scalar_lea.vmem [#allocation0], 360
    %481 = vst.msk [vmem:[%s480] sm:$0x8] %vm473, %v472
    %s482 = scalar_lea.vmem [#allocation0], 391
    %483 = vst.msk [vmem:[%s482] sm:$0x10] %vm473, %v472
    %s484 = scalar_lea.vmem [#allocation0], 422
    %485 = vst.msk [vmem:[%s484] sm:$0x20] %vm473, %v472
    %s486 = scalar_lea.vmem [#allocation0], 453
    %487 = vst.msk [vmem:[%s486] sm:$0x40] %vm473, %v472
    %s488 = scalar_lea.vmem [#allocation0], 484
    %489 = vst.msk [vmem:[%s488] sm:$0x80] %vm473, %v472
    %v490 = vld [vmem:[%s0] sm:$0xff]
    %491 = vrot.lane.b32.xlu0 %v490, 116
    %v492 = vpop.permute.xlu0 %491
    %vm493 = vcmask 7168
    %s494 = scalar_lea.vmem [#allocation0], 12
    %495 = vst.msk [vmem:[%s494] sm:$0x1] %vm493, %v492
    %s496 = scalar_lea.vmem [#allocation0], 43
    %497 = vst.msk [vmem:[%s496] sm:$0x2] %vm493, %v492
    %s498 = scalar_lea.vmem [#allocation0], 74
    %499 = vst.msk [vmem:[%s498] sm:$0x4] %vm493, %v492
    %s500 = scalar_lea.vmem [#allocation0], 105
    %501 = vst.msk [vmem:[%s500] sm:$0x8] %vm493, %v492
    %s502 = scalar_lea.vmem [#allocation0], 136
    %503 = vst.msk [vmem:[%s502] sm:$0x10] %vm493, %v492
    %s504 = scalar_lea.vmem [#allocation0], 167
    %505 = vst.msk [vmem:[%s504] sm:$0x20] %vm493, %v492
    %s506 = scalar_lea.vmem [#allocation0], 198
    %507 = vst.msk [vmem:[%s506] sm:$0x40] %vm493, %v492
    %s508 = scalar_lea.vmem [#allocation0], 229
    %509 = vst.msk [vmem:[%s508] sm:$0x80] %vm493, %v492
    %s510 = scalar_lea.vmem %s0, 8
    %v511 = vld [vmem:[%s510] sm:$0xff]
    %512 = vrot.lane.b32.xlu0 %v511, 116
    %v513 = vpop.permute.xlu0 %512
    %vm514 = vcmask 7168
    %s515 = scalar_lea.vmem [#allocation0], 268
    %516 = vst.msk [vmem:[%s515] sm:$0x1] %vm514, %v513
    %s517 = scalar_lea.vmem [#allocation0], 299
    %518 = vst.msk [vmem:[%s517] sm:$0x2] %vm514, %v513
    %s519 = scalar_lea.vmem [#allocation0], 330
    %520 = vst.msk [vmem:[%s519] sm:$0x4] %vm514, %v513
    %s521 = scalar_lea.vmem [#allocation0], 361
    %522 = vst.msk [vmem:[%s521] sm:$0x8] %vm514, %v513
    %s523 = scalar_lea.vmem [#allocation0], 392
    %524 = vst.msk [vmem:[%s523] sm:$0x10] %vm514, %v513
    %s525 = scalar_lea.vmem [#allocation0], 423
    %526 = vst.msk [vmem:[%s525] sm:$0x20] %vm514, %v513
    %s527 = scalar_lea.vmem [#allocation0], 454
    %528 = vst.msk [vmem:[%s527] sm:$0x40] %vm514, %v513
    %s529 = scalar_lea.vmem [#allocation0], 485
    %530 = vst.msk [vmem:[%s529] sm:$0x80] %vm514, %v513
    %v531 = vld [vmem:[%s0] sm:$0xff]
    %532 = vrot.lane.b32.xlu0 %v531, 115
    %v533 = vpop.permute.xlu0 %532
    %vm534 = vcmask 7168
    %s535 = scalar_lea.vmem [#allocation0], 13
    %536 = vst.msk [vmem:[%s535] sm:$0x1] %vm534, %v533
    %s537 = scalar_lea.vmem [#allocation0], 44
    %538 = vst.msk [vmem:[%s537] sm:$0x2] %vm534, %v533
    %s539 = scalar_lea.vmem [#allocation0], 75
    %540 = vst.msk [vmem:[%s539] sm:$0x4] %vm534, %v533
    %s541 = scalar_lea.vmem [#allocation0], 106
    %542 = vst.msk [vmem:[%s541] sm:$0x8] %vm534, %v533
    %s543 = scalar_lea.vmem [#allocation0], 137
    %544 = vst.msk [vmem:[%s543] sm:$0x10] %vm534, %v533
    %s545 = scalar_lea.vmem [#allocation0], 168
    %546 = vst.msk [vmem:[%s545] sm:$0x20] %vm534, %v533
    %s547 = scalar_lea.vmem [#allocation0], 199
    %548 = vst.msk [vmem:[%s547] sm:$0x40] %vm534, %v533
    %s549 = scalar_lea.vmem [#allocation0], 230
    %550 = vst.msk [vmem:[%s549] sm:$0x80] %vm534, %v533
    %s551 = scalar_lea.vmem %s0, 8
    %v552 = vld [vmem:[%s551] sm:$0xff]
    %553 = vrot.lane.b32.xlu0 %v552, 115
    %v554 = vpop.permute.xlu0 %553
    %vm555 = vcmask 7168
    %s556 = scalar_lea.vmem [#allocation0], 269
    %557 = vst.msk [vmem:[%s556] sm:$0x1] %vm555, %v554
    %s558 = scalar_lea.vmem [#allocation0], 300
    %559 = vst.msk [vmem:[%s558] sm:$0x2] %vm555, %v554
    %s560 = scalar_lea.vmem [#allocation0], 331
    %561 = vst.msk [vmem:[%s560] sm:$0x4] %vm555, %v554
    %s562 = scalar_lea.vmem [#allocation0], 362
    %563 = vst.msk [vmem:[%s562] sm:$0x8] %vm555, %v554
    %s564 = scalar_lea.vmem [#allocation0], 393
    %565 = vst.msk [vmem:[%s564] sm:$0x10] %vm555, %v554
    %s566 = scalar_lea.vmem [#allocation0], 424
    %567 = vst.msk [vmem:[%s566] sm:$0x20] %vm555, %v554
    %s568 = scalar_lea.vmem [#allocation0], 455
    %569 = vst.msk [vmem:[%s568] sm:$0x40] %vm555, %v554
    %s570 = scalar_lea.vmem [#allocation0], 486
    %571 = vst.msk [vmem:[%s570] sm:$0x80] %vm555, %v554
    %v572 = vld [vmem:[%s0] sm:$0xff]
    %573 = vrot.lane.b32.xlu0 %v572, 114
    %v574 = vpop.permute.xlu0 %573
    %vm575 = vcmask 7168
    %s576 = scalar_lea.vmem [#allocation0], 14
    %577 = vst.msk [vmem:[%s576] sm:$0x1] %vm575, %v574
    %s578 = scalar_lea.vmem [#allocation0], 45
    %579 = vst.msk [vmem:[%s578] sm:$0x2] %vm575, %v574
    %s580 = scalar_lea.vmem [#allocation0], 76
    %581 = vst.msk [vmem:[%s580] sm:$0x4] %vm575, %v574
    %s582 = scalar_lea.vmem [#allocation0], 107
    %583 = vst.msk [vmem:[%s582] sm:$0x8] %vm575, %v574
    %s584 = scalar_lea.vmem [#allocation0], 138
    %585 = vst.msk [vmem:[%s584] sm:$0x10] %vm575, %v574
    %s586 = scalar_lea.vmem [#allocation0], 169
    %587 = vst.msk [vmem:[%s586] sm:$0x20] %vm575, %v574
    %s588 = scalar_lea.vmem [#allocation0], 200
    %589 = vst.msk [vmem:[%s588] sm:$0x40] %vm575, %v574
    %s590 = scalar_lea.vmem [#allocation0], 231
    %591 = vst.msk [vmem:[%s590] sm:$0x80] %vm575, %v574
    %s592 = scalar_lea.vmem %s0, 8
    %v593 = vld [vmem:[%s592] sm:$0xff]
    %594 = vrot.lane.b32.xlu0 %v593, 114
    %v595 = vpop.permute.xlu0 %594
    %vm596 = vcmask 7168
    %s597 = scalar_lea.vmem [#allocation0], 270
    %598 = vst.msk [vmem:[%s597] sm:$0x1] %vm596, %v595
    %s599 = scalar_lea.vmem [#allocation0], 301
    %600 = vst.msk [vmem:[%s599] sm:$0x2] %vm596, %v595
    %s601 = scalar_lea.vmem [#allocation0], 332
    %602 = vst.msk [vmem:[%s601] sm:$0x4] %vm596, %v595
    %s603 = scalar_lea.vmem [#allocation0], 363
    %604 = vst.msk [vmem:[%s603] sm:$0x8] %vm596, %v595
    %s605 = scalar_lea.vmem [#allocation0], 394
    %606 = vst.msk [vmem:[%s605] sm:$0x10] %vm596, %v595
    %s607 = scalar_lea.vmem [#allocation0], 425
    %608 = vst.msk [vmem:[%s607] sm:$0x20] %vm596, %v595
    %s609 = scalar_lea.vmem [#allocation0], 456
    %610 = vst.msk [vmem:[%s609] sm:$0x40] %vm596, %v595
    %s611 = scalar_lea.vmem [#allocation0], 487
    %612 = vst.msk [vmem:[%s611] sm:$0x80] %vm596, %v595
    %v613 = vld [vmem:[%s0] sm:$0xff]
    %614 = vrot.lane.b32.xlu0 %v613, 113
    %v615 = vpop.permute.xlu0 %614
    %vm616 = vcmask 7168
    %s617 = scalar_lea.vmem [#allocation0], 15
    %618 = vst.msk [vmem:[%s617] sm:$0x1] %vm616, %v615
    %s619 = scalar_lea.vmem [#allocation0], 46
    %620 = vst.msk [vmem:[%s619] sm:$0x2] %vm616, %v615
    %s621 = scalar_lea.vmem [#allocation0], 77
    %622 = vst.msk [vmem:[%s621] sm:$0x4] %vm616, %v615
    %s623 = scalar_lea.vmem [#allocation0], 108
    %624 = vst.msk [vmem:[%s623] sm:$0x8] %vm616, %v615
    %s625 = scalar_lea.vmem [#allocation0], 139
    %626 = vst.msk [vmem:[%s625] sm:$0x10] %vm616, %v615
    %s627 = scalar_lea.vmem [#allocation0], 170
    %628 = vst.msk [vmem:[%s627] sm:$0x20] %vm616, %v615
    %s629 = scalar_lea.vmem [#allocation0], 201
    %630 = vst.msk [vmem:[%s629] sm:$0x40] %vm616, %v615
    %s631 = scalar_lea.vmem [#allocation0], 232
    %632 = vst.msk [vmem:[%s631] sm:$0x80] %vm616, %v615
    %s633 = scalar_lea.vmem %s0, 8
    %v634 = vld [vmem:[%s633] sm:$0xff]
    %635 = vrot.lane.b32.xlu0 %v634, 113
    %v636 = vpop.permute.xlu0 %635
    %vm637 = vcmask 7168
    %s638 = scalar_lea.vmem [#allocation0], 271
    %639 = vst.msk [vmem:[%s638] sm:$0x1] %vm637, %v636
    %s640 = scalar_lea.vmem [#allocation0], 302
    %641 = vst.msk [vmem:[%s640] sm:$0x2] %vm637, %v636
    %s642 = scalar_lea.vmem [#allocation0], 333
    %643 = vst.msk [vmem:[%s642] sm:$0x4] %vm637, %v636
    %s644 = scalar_lea.vmem [#allocation0], 364
    %645 = vst.msk [vmem:[%s644] sm:$0x8] %vm637, %v636
    %s646 = scalar_lea.vmem [#allocation0], 395
    %647 = vst.msk [vmem:[%s646] sm:$0x10] %vm637, %v636
    %s648 = scalar_lea.vmem [#allocation0], 426
    %649 = vst.msk [vmem:[%s648] sm:$0x20] %vm637, %v636
    %s650 = scalar_lea.vmem [#allocation0], 457
    %651 = vst.msk [vmem:[%s650] sm:$0x40] %vm637, %v636
    %s652 = scalar_lea.vmem [#allocation0], 488
    %653 = vst.msk [vmem:[%s652] sm:$0x80] %vm637, %v636
    %v654 = vld [vmem:[%s0] sm:$0xff]
    %655 = vrot.lane.b32.xlu0 %v654, 112
    %v656 = vpop.permute.xlu0 %655
    %vm657 = vcmask 7168
    %s658 = scalar_lea.vmem [#allocation0], 16
    %659 = vst.msk [vmem:[%s658] sm:$0x1] %vm657, %v656
    %s660 = scalar_lea.vmem [#allocation0], 47
    %661 = vst.msk [vmem:[%s660] sm:$0x2] %vm657, %v656
    %s662 = scalar_lea.vmem [#allocation0], 78
    %663 = vst.msk [vmem:[%s662] sm:$0x4] %vm657, %v656
    %s664 = scalar_lea.vmem [#allocation0], 109
    %665 = vst.msk [vmem:[%s664] sm:$0x8] %vm657, %v656
    %s666 = scalar_lea.vmem [#allocation0], 140
    %667 = vst.msk [vmem:[%s666] sm:$0x10] %vm657, %v656
    %s668 = scalar_lea.vmem [#allocation0], 171
    %669 = vst.msk [vmem:[%s668] sm:$0x20] %vm657, %v656
    %s670 = scalar_lea.vmem [#allocation0], 202
    %671 = vst.msk [vmem:[%s670] sm:$0x40] %vm657, %v656
    %s672 = scalar_lea.vmem [#allocation0], 233
    %673 = vst.msk [vmem:[%s672] sm:$0x80] %vm657, %v656
    %s674 = scalar_lea.vmem %s0, 8
    %v675 = vld [vmem:[%s674] sm:$0xff]
    %676 = vrot.lane.b32.xlu0 %v675, 112
    %v677 = vpop.permute.xlu0 %676
    %vm678 = vcmask 7168
    %s679 = scalar_lea.vmem [#allocation0], 272
    %680 = vst.msk [vmem:[%s679] sm:$0x1] %vm678, %v677
    %s681 = scalar_lea.vmem [#allocation0], 303
    %682 = vst.msk [vmem:[%s681] sm:$0x2] %vm678, %v677
    %s683 = scalar_lea.vmem [#allocation0], 334
    %684 = vst.msk [vmem:[%s683] sm:$0x4] %vm678, %v677
    %s685 = scalar_lea.vmem [#allocation0], 365
    %686 = vst.msk [vmem:[%s685] sm:$0x8] %vm678, %v677
    %s687 = scalar_lea.vmem [#allocation0], 396
    %688 = vst.msk [vmem:[%s687] sm:$0x10] %vm678, %v677
    %s689 = scalar_lea.vmem [#allocation0], 427
    %690 = vst.msk [vmem:[%s689] sm:$0x20] %vm678, %v677
    %s691 = scalar_lea.vmem [#allocation0], 458
    %692 = vst.msk [vmem:[%s691] sm:$0x40] %vm678, %v677
    %s693 = scalar_lea.vmem [#allocation0], 489
    %694 = vst.msk [vmem:[%s693] sm:$0x80] %vm678, %v677
    %v695 = vld [vmem:[%s0] sm:$0xff]
    %696 = vrot.lane.b32.xlu0 %v695, 111
    %v697 = vpop.permute.xlu0 %696
    %vm698 = vcmask 7168
    %s699 = scalar_lea.vmem [#allocation0], 17
    %700 = vst.msk [vmem:[%s699] sm:$0x1] %vm698, %v697
    %s701 = scalar_lea.vmem [#allocation0], 48
    %702 = vst.msk [vmem:[%s701] sm:$0x2] %vm698, %v697
    %s703 = scalar_lea.vmem [#allocation0], 79
    %704 = vst.msk [vmem:[%s703] sm:$0x4] %vm698, %v697
    %s705 = scalar_lea.vmem [#allocation0], 110
    %706 = vst.msk [vmem:[%s705] sm:$0x8] %vm698, %v697
    %s707 = scalar_lea.vmem [#allocation0], 141
    %708 = vst.msk [vmem:[%s707] sm:$0x10] %vm698, %v697
    %s709 = scalar_lea.vmem [#allocation0], 172
    %710 = vst.msk [vmem:[%s709] sm:$0x20] %vm698, %v697
    %s711 = scalar_lea.vmem [#allocation0], 203
    %712 = vst.msk [vmem:[%s711] sm:$0x40] %vm698, %v697
    %s713 = scalar_lea.vmem [#allocation0], 234
    %714 = vst.msk [vmem:[%s713] sm:$0x80] %vm698, %v697
    %s715 = scalar_lea.vmem %s0, 8
    %v716 = vld [vmem:[%s715] sm:$0xff]
    %717 = vrot.lane.b32.xlu0 %v716, 111
    %v718 = vpop.permute.xlu0 %717
    %vm719 = vcmask 7168
    %s720 = scalar_lea.vmem [#allocation0], 273
    %721 = vst.msk [vmem:[%s720] sm:$0x1] %vm719, %v718
    %s722 = scalar_lea.vmem [#allocation0], 304
    %723 = vst.msk [vmem:[%s722] sm:$0x2] %vm719, %v718
    %s724 = scalar_lea.vmem [#allocation0], 335
    %725 = vst.msk [vmem:[%s724] sm:$0x4] %vm719, %v718
    %s726 = scalar_lea.vmem [#allocation0], 366
    %727 = vst.msk [vmem:[%s726] sm:$0x8] %vm719, %v718
    %s728 = scalar_lea.vmem [#allocation0], 397
    %729 = vst.msk [vmem:[%s728] sm:$0x10] %vm719, %v718
    %s730 = scalar_lea.vmem [#allocation0], 428
    %731 = vst.msk [vmem:[%s730] sm:$0x20] %vm719, %v718
    %s732 = scalar_lea.vmem [#allocation0], 459
    %733 = vst.msk [vmem:[%s732] sm:$0x40] %vm719, %v718
    %s734 = scalar_lea.vmem [#allocation0], 490
    %735 = vst.msk [vmem:[%s734] sm:$0x80] %vm719, %v718
    %v736 = vld [vmem:[%s0] sm:$0xff]
    %737 = vrot.lane.b32.xlu0 %v736, 110
    %v738 = vpop.permute.xlu0 %737
    %vm739 = vcmask 7168
    %s740 = scalar_lea.vmem [#allocation0], 18
    %741 = vst.msk [vmem:[%s740] sm:$0x1] %vm739, %v738
    %s742 = scalar_lea.vmem [#allocation0], 49
    %743 = vst.msk [vmem:[%s742] sm:$0x2] %vm739, %v738
    %s744 = scalar_lea.vmem [#allocation0], 80
    %745 = vst.msk [vmem:[%s744] sm:$0x4] %vm739, %v738
    %s746 = scalar_lea.vmem [#allocation0], 111
    %747 = vst.msk [vmem:[%s746] sm:$0x8] %vm739, %v738
    %s748 = scalar_lea.vmem [#allocation0], 142
    %749 = vst.msk [vmem:[%s748] sm:$0x10] %vm739, %v738
    %s750 = scalar_lea.vmem [#allocation0], 173
    %751 = vst.msk [vmem:[%s750] sm:$0x20] %vm739, %v738
    %s752 = scalar_lea.vmem [#allocation0], 204
    %753 = vst.msk [vmem:[%s752] sm:$0x40] %vm739, %v738
    %s754 = scalar_lea.vmem [#allocation0], 235
    %755 = vst.msk [vmem:[%s754] sm:$0x80] %vm739, %v738
    %s756 = scalar_lea.vmem %s0, 8
    %v757 = vld [vmem:[%s756] sm:$0xff]
    %758 = vrot.lane.b32.xlu0 %v757, 110
    %v759 = vpop.permute.xlu0 %758
    %vm760 = vcmask 7168
    %s761 = scalar_lea.vmem [#allocation0], 274
    %762 = vst.msk [vmem:[%s761] sm:$0x1] %vm760, %v759
    %s763 = scalar_lea.vmem [#allocation0], 305
    %764 = vst.msk [vmem:[%s763] sm:$0x2] %vm760, %v759
    %s765 = scalar_lea.vmem [#allocation0], 336
    %766 = vst.msk [vmem:[%s765] sm:$0x4] %vm760, %v759
    %s767 = scalar_lea.vmem [#allocation0], 367
    %768 = vst.msk [vmem:[%s767] sm:$0x8] %vm760, %v759
    %s769 = scalar_lea.vmem [#allocation0], 398
    %770 = vst.msk [vmem:[%s769] sm:$0x10] %vm760, %v759
    %s771 = scalar_lea.vmem [#allocation0], 429
    %772 = vst.msk [vmem:[%s771] sm:$0x20] %vm760, %v759
    %s773 = scalar_lea.vmem [#allocation0], 460
    %774 = vst.msk [vmem:[%s773] sm:$0x40] %vm760, %v759
    %s775 = scalar_lea.vmem [#allocation0], 491
    %776 = vst.msk [vmem:[%s775] sm:$0x80] %vm760, %v759
    %v777 = vld [vmem:[%s0] sm:$0xff]
    %778 = vrot.lane.b32.xlu0 %v777, 109
    %v779 = vpop.permute.xlu0 %778
    %vm780 = vcmask 7168
    %s781 = scalar_lea.vmem [#allocation0], 19
    %782 = vst.msk [vmem:[%s781] sm:$0x1] %vm780, %v779
    %s783 = scalar_lea.vmem [#allocation0], 50
    %784 = vst.msk [vmem:[%s783] sm:$0x2] %vm780, %v779
    %s785 = scalar_lea.vmem [#allocation0], 81
    %786 = vst.msk [vmem:[%s785] sm:$0x4] %vm780, %v779
    %s787 = scalar_lea.vmem [#allocation0], 112
    %788 = vst.msk [vmem:[%s787] sm:$0x8] %vm780, %v779
    %s789 = scalar_lea.vmem [#allocation0], 143
    %790 = vst.msk [vmem:[%s789] sm:$0x10] %vm780, %v779
    %s791 = scalar_lea.vmem [#allocation0], 174
    %792 = vst.msk [vmem:[%s791] sm:$0x20] %vm780, %v779
    %s793 = scalar_lea.vmem [#allocation0], 205
    %794 = vst.msk [vmem:[%s793] sm:$0x40] %vm780, %v779
    %s795 = scalar_lea.vmem [#allocation0], 236
    %796 = vst.msk [vmem:[%s795] sm:$0x80] %vm780, %v779
    %s797 = scalar_lea.vmem %s0, 8
    %v798 = vld [vmem:[%s797] sm:$0xff]
    %799 = vrot.lane.b32.xlu0 %v798, 109
    %v800 = vpop.permute.xlu0 %799
    %vm801 = vcmask 7168
    %s802 = scalar_lea.vmem [#allocation0], 275
    %803 = vst.msk [vmem:[%s802] sm:$0x1] %vm801, %v800
    %s804 = scalar_lea.vmem [#allocation0], 306
    %805 = vst.msk [vmem:[%s804] sm:$0x2] %vm801, %v800
    %s806 = scalar_lea.vmem [#allocation0], 337
    %807 = vst.msk [vmem:[%s806] sm:$0x4] %vm801, %v800
    %s808 = scalar_lea.vmem [#allocation0], 368
    %809 = vst.msk [vmem:[%s808] sm:$0x8] %vm801, %v800
    %s810 = scalar_lea.vmem [#allocation0], 399
    %811 = vst.msk [vmem:[%s810] sm:$0x10] %vm801, %v800
    %s812 = scalar_lea.vmem [#allocation0], 430
    %813 = vst.msk [vmem:[%s812] sm:$0x20] %vm801, %v800
    %s814 = scalar_lea.vmem [#allocation0], 461
    %815 = vst.msk [vmem:[%s814] sm:$0x40] %vm801, %v800
    %s816 = scalar_lea.vmem [#allocation0], 492
    %817 = vst.msk [vmem:[%s816] sm:$0x80] %vm801, %v800
    %v818 = vld [vmem:[%s0] sm:$0xff]
    %819 = vrot.lane.b32.xlu0 %v818, 108
    %v820 = vpop.permute.xlu0 %819
    %vm821 = vcmask 7168
    %s822 = scalar_lea.vmem [#allocation0], 20
    %823 = vst.msk [vmem:[%s822] sm:$0x1] %vm821, %v820
    %s824 = scalar_lea.vmem [#allocation0], 51
    %825 = vst.msk [vmem:[%s824] sm:$0x2] %vm821, %v820
    %s826 = scalar_lea.vmem [#allocation0], 82
    %827 = vst.msk [vmem:[%s826] sm:$0x4] %vm821, %v820
    %s828 = scalar_lea.vmem [#allocation0], 113
    %829 = vst.msk [vmem:[%s828] sm:$0x8] %vm821, %v820
    %s830 = scalar_lea.vmem [#allocation0], 144
    %831 = vst.msk [vmem:[%s830] sm:$0x10] %vm821, %v820
    %s832 = scalar_lea.vmem [#allocation0], 175
    %833 = vst.msk [vmem:[%s832] sm:$0x20] %vm821, %v820
    %s834 = scalar_lea.vmem [#allocation0], 206
    %835 = vst.msk [vmem:[%s834] sm:$0x40] %vm821, %v820
    %s836 = scalar_lea.vmem [#allocation0], 237
    %837 = vst.msk [vmem:[%s836] sm:$0x80] %vm821, %v820
    %s838 = scalar_lea.vmem %s0, 8
    %v839 = vld [vmem:[%s838] sm:$0xff]
    %840 = vrot.lane.b32.xlu0 %v839, 108
    %v841 = vpop.permute.xlu0 %840
    %vm842 = vcmask 7168
    %s843 = scalar_lea.vmem [#allocation0], 276
    %844 = vst.msk [vmem:[%s843] sm:$0x1] %vm842, %v841
    %s845 = scalar_lea.vmem [#allocation0], 307
    %846 = vst.msk [vmem:[%s845] sm:$0x2] %vm842, %v841
    %s847 = scalar_lea.vmem [#allocation0], 338
    %848 = vst.msk [vmem:[%s847] sm:$0x4] %vm842, %v841
    %s849 = scalar_lea.vmem [#allocation0], 369
    %850 = vst.msk [vmem:[%s849] sm:$0x8] %vm842, %v841
    %s851 = scalar_lea.vmem [#allocation0], 400
    %852 = vst.msk [vmem:[%s851] sm:$0x10] %vm842, %v841
    %s853 = scalar_lea.vmem [#allocation0], 431
    %854 = vst.msk [vmem:[%s853] sm:$0x20] %vm842, %v841
    %s855 = scalar_lea.vmem [#allocation0], 462
    %856 = vst.msk [vmem:[%s855] sm:$0x40] %vm842, %v841
    %s857 = scalar_lea.vmem [#allocation0], 493
    %858 = vst.msk [vmem:[%s857] sm:$0x80] %vm842, %v841
    %v859 = vld [vmem:[%s0] sm:$0xff]
    %860 = vrot.lane.b32.xlu0 %v859, 107
    %v861 = vpop.permute.xlu0 %860
    %vm862 = vcmask 7168
    %s863 = scalar_lea.vmem [#allocation0], 21
    %864 = vst.msk [vmem:[%s863] sm:$0x1] %vm862, %v861
    %s865 = scalar_lea.vmem [#allocation0], 52
    %866 = vst.msk [vmem:[%s865] sm:$0x2] %vm862, %v861
    %s867 = scalar_lea.vmem [#allocation0], 83
    %868 = vst.msk [vmem:[%s867] sm:$0x4] %vm862, %v861
    %s869 = scalar_lea.vmem [#allocation0], 114
    %870 = vst.msk [vmem:[%s869] sm:$0x8] %vm862, %v861
    %s871 = scalar_lea.vmem [#allocation0], 145
    %872 = vst.msk [vmem:[%s871] sm:$0x10] %vm862, %v861
    %s873 = scalar_lea.vmem [#allocation0], 176
    %874 = vst.msk [vmem:[%s873] sm:$0x20] %vm862, %v861
    %s875 = scalar_lea.vmem [#allocation0], 207
    %876 = vst.msk [vmem:[%s875] sm:$0x40] %vm862, %v861
    %s877 = scalar_lea.vmem [#allocation0], 238
    %878 = vst.msk [vmem:[%s877] sm:$0x80] %vm862, %v861
    %s879 = scalar_lea.vmem %s0, 8
    %v880 = vld [vmem:[%s879] sm:$0xff]
    %881 = vrot.lane.b32.xlu0 %v880, 107
    %v882 = vpop.permute.xlu0 %881
    %vm883 = vcmask 7168
    %s884 = scalar_lea.vmem [#allocation0], 277
    %885 = vst.msk [vmem:[%s884] sm:$0x1] %vm883, %v882
    %s886 = scalar_lea.vmem [#allocation0], 308
    %887 = vst.msk [vmem:[%s886] sm:$0x2] %vm883, %v882
    %s888 = scalar_lea.vmem [#allocation0], 339
    %889 = vst.msk [vmem:[%s888] sm:$0x4] %vm883, %v882
    %s890 = scalar_lea.vmem [#allocation0], 370
    %891 = vst.msk [vmem:[%s890] sm:$0x8] %vm883, %v882
    %s892 = scalar_lea.vmem [#allocation0], 401
    %893 = vst.msk [vmem:[%s892] sm:$0x10] %vm883, %v882
    %s894 = scalar_lea.vmem [#allocation0], 432
    %895 = vst.msk [vmem:[%s894] sm:$0x20] %vm883, %v882
    %s896 = scalar_lea.vmem [#allocation0], 463
    %897 = vst.msk [vmem:[%s896] sm:$0x40] %vm883, %v882
    %s898 = scalar_lea.vmem [#allocation0], 494
    %899 = vst.msk [vmem:[%s898] sm:$0x80] %vm883, %v882
    %v900 = vld [vmem:[%s0] sm:$0xff]
    %901 = vrot.lane.b32.xlu0 %v900, 106
    %v902 = vpop.permute.xlu0 %901
    %vm903 = vcmask 7168
    %s904 = scalar_lea.vmem [#allocation0], 22
    %905 = vst.msk [vmem:[%s904] sm:$0x1] %vm903, %v902
    %s906 = scalar_lea.vmem [#allocation0], 53
    %907 = vst.msk [vmem:[%s906] sm:$0x2] %vm903, %v902
    %s908 = scalar_lea.vmem [#allocation0], 84
    %909 = vst.msk [vmem:[%s908] sm:$0x4] %vm903, %v902
    %s910 = scalar_lea.vmem [#allocation0], 115
    %911 = vst.msk [vmem:[%s910] sm:$0x8] %vm903, %v902
    %s912 = scalar_lea.vmem [#allocation0], 146
    %913 = vst.msk [vmem:[%s912] sm:$0x10] %vm903, %v902
    %s914 = scalar_lea.vmem [#allocation0], 177
    %915 = vst.msk [vmem:[%s914] sm:$0x20] %vm903, %v902
    %s916 = scalar_lea.vmem [#allocation0], 208
    %917 = vst.msk [vmem:[%s916] sm:$0x40] %vm903, %v902
    %s918 = scalar_lea.vmem [#allocation0], 239
    %919 = vst.msk [vmem:[%s918] sm:$0x80] %vm903, %v902
    %s920 = scalar_lea.vmem %s0, 8
    %v921 = vld [vmem:[%s920] sm:$0xff]
    %922 = vrot.lane.b32.xlu0 %v921, 106
    %v923 = vpop.permute.xlu0 %922
    %vm924 = vcmask 7168
    %s925 = scalar_lea.vmem [#allocation0], 278
    %926 = vst.msk [vmem:[%s925] sm:$0x1] %vm924, %v923
    %s927 = scalar_lea.vmem [#allocation0], 309
    %928 = vst.msk [vmem:[%s927] sm:$0x2] %vm924, %v923
    %s929 = scalar_lea.vmem [#allocation0], 340
    %930 = vst.msk [vmem:[%s929] sm:$0x4] %vm924, %v923
    %s931 = scalar_lea.vmem [#allocation0], 371
    %932 = vst.msk [vmem:[%s931] sm:$0x8] %vm924, %v923
    %s933 = scalar_lea.vmem [#allocation0], 402
    %934 = vst.msk [vmem:[%s933] sm:$0x10] %vm924, %v923
    %s935 = scalar_lea.vmem [#allocation0], 433
    %936 = vst.msk [vmem:[%s935] sm:$0x20] %vm924, %v923
    %s937 = scalar_lea.vmem [#allocation0], 464
    %938 = vst.msk [vmem:[%s937] sm:$0x40] %vm924, %v923
    %s939 = scalar_lea.vmem [#allocation0], 495
    %940 = vst.msk [vmem:[%s939] sm:$0x80] %vm924, %v923
    %v941 = vld [vmem:[%s0] sm:$0xff]
    %942 = vrot.lane.b32.xlu0 %v941, 105
    %v943 = vpop.permute.xlu0 %942
    %vm944 = vcmask 7168
    %s945 = scalar_lea.vmem [#allocation0], 23
    %946 = vst.msk [vmem:[%s945] sm:$0x1] %vm944, %v943
    %s947 = scalar_lea.vmem [#allocation0], 54
    %948 = vst.msk [vmem:[%s947] sm:$0x2] %vm944, %v943
    %s949 = scalar_lea.vmem [#allocation0], 85
    %950 = vst.msk [vmem:[%s949] sm:$0x4] %vm944, %v943
    %s951 = scalar_lea.vmem [#allocation0], 116
    %952 = vst.msk [vmem:[%s951] sm:$0x8] %vm944, %v943
    %s953 = scalar_lea.vmem [#allocation0], 147
    %954 = vst.msk [vmem:[%s953] sm:$0x10] %vm944, %v943
    %s955 = scalar_lea.vmem [#allocation0], 178
    %956 = vst.msk [vmem:[%s955] sm:$0x20] %vm944, %v943
    %s957 = scalar_lea.vmem [#allocation0], 209
    %958 = vst.msk [vmem:[%s957] sm:$0x40] %vm944, %v943
    %s959 = scalar_lea.vmem [#allocation0], 240
    %960 = vst.msk [vmem:[%s959] sm:$0x80] %vm944, %v943
    %s961 = scalar_lea.vmem %s0, 8
    %v962 = vld [vmem:[%s961] sm:$0xff]
    %963 = vrot.lane.b32.xlu0 %v962, 105
    %v964 = vpop.permute.xlu0 %963
    %vm965 = vcmask 7168
    %s966 = scalar_lea.vmem [#allocation0], 279
    %967 = vst.msk [vmem:[%s966] sm:$0x1] %vm965, %v964
    %s968 = scalar_lea.vmem [#allocation0], 310
    %969 = vst.msk [vmem:[%s968] sm:$0x2] %vm965, %v964
    %s970 = scalar_lea.vmem [#allocation0], 341
    %971 = vst.msk [vmem:[%s970] sm:$0x4] %vm965, %v964
    %s972 = scalar_lea.vmem [#allocation0], 372
    %973 = vst.msk [vmem:[%s972] sm:$0x8] %vm965, %v964
    %s974 = scalar_lea.vmem [#allocation0], 403
    %975 = vst.msk [vmem:[%s974] sm:$0x10] %vm965, %v964
    %s976 = scalar_lea.vmem [#allocation0], 434
    %977 = vst.msk [vmem:[%s976] sm:$0x20] %vm965, %v964
    %s978 = scalar_lea.vmem [#allocation0], 465
    %979 = vst.msk [vmem:[%s978] sm:$0x40] %vm965, %v964
    %s980 = scalar_lea.vmem [#allocation0], 496
    %981 = vst.msk [vmem:[%s980] sm:$0x80] %vm965, %v964
    %v982 = vld [vmem:[%s0] sm:$0xff]
    %983 = vrot.lane.b32.xlu0 %v982, 104
    %v984 = vpop.permute.xlu0 %983
    %vm985 = vcmask 7168
    %s986 = scalar_lea.vmem [#allocation0], 24
    %987 = vst.msk [vmem:[%s986] sm:$0x1] %vm985, %v984
    %s988 = scalar_lea.vmem [#allocation0], 55
    %989 = vst.msk [vmem:[%s988] sm:$0x2] %vm985, %v984
    %s990 = scalar_lea.vmem [#allocation0], 86
    %991 = vst.msk [vmem:[%s990] sm:$0x4] %vm985, %v984
    %s992 = scalar_lea.vmem [#allocation0], 117
    %993 = vst.msk [vmem:[%s992] sm:$0x8] %vm985, %v984
    %s994 = scalar_lea.vmem [#allocation0], 148
    %995 = vst.msk [vmem:[%s994] sm:$0x10] %vm985, %v984
    %s996 = scalar_lea.vmem [#allocation0], 179
    %997 = vst.msk [vmem:[%s996] sm:$0x20] %vm985, %v984
    %s998 = scalar_lea.vmem [#allocation0], 210
    %999 = vst.msk [vmem:[%s998] sm:$0x40] %vm985, %v984
    %s1000 = scalar_lea.vmem [#allocation0], 241
    %1001 = vst.msk [vmem:[%s1000] sm:$0x80] %vm985, %v984
    %s1002 = scalar_lea.vmem %s0, 8
    %v1003 = vld [vmem:[%s1002] sm:$0xff]
    %1004 = vrot.lane.b32.xlu0 %v1003, 104
    %v1005 = vpop.permute.xlu0 %1004
    %vm1006 = vcmask 7168
    %s1007 = scalar_lea.vmem [#allocation0], 280
    %1008 = vst.msk [vmem:[%s1007] sm:$0x1] %vm1006, %v1005
    %s1009 = scalar_lea.vmem [#allocation0], 311
    %1010 = vst.msk [vmem:[%s1009] sm:$0x2] %vm1006, %v1005
    %s1011 = scalar_lea.vmem [#allocation0], 342
    %1012 = vst.msk [vmem:[%s1011] sm:$0x4] %vm1006, %v1005
    %s1013 = scalar_lea.vmem [#allocation0], 373
    %1014 = vst.msk [vmem:[%s1013] sm:$0x8] %vm1006, %v1005
    %s1015 = scalar_lea.vmem [#allocation0], 404
    %1016 = vst.msk [vmem:[%s1015] sm:$0x10] %vm1006, %v1005
    %s1017 = scalar_lea.vmem [#allocation0], 435
    %1018 = vst.msk [vmem:[%s1017] sm:$0x20] %vm1006, %v1005
    %s1019 = scalar_lea.vmem [#allocation0], 466
    %1020 = vst.msk [vmem:[%s1019] sm:$0x40] %vm1006, %v1005
    %s1021 = scalar_lea.vmem [#allocation0], 497
    %1022 = vst.msk [vmem:[%s1021] sm:$0x80] %vm1006, %v1005
    %v1023 = vld [vmem:[%s0] sm:$0xff]
    %1024 = vrot.lane.b32.xlu0 %v1023, 103
    %v1025 = vpop.permute.xlu0 %1024
    %vm1026 = vcmask 7168
    %s1027 = scalar_lea.vmem [#allocation0], 25
    %1028 = vst.msk [vmem:[%s1027] sm:$0x1] %vm1026, %v1025
    %s1029 = scalar_lea.vmem [#allocation0], 56
    %1030 = vst.msk [vmem:[%s1029] sm:$0x2] %vm1026, %v1025
    %s1031 = scalar_lea.vmem [#allocation0], 87
    %1032 = vst.msk [vmem:[%s1031] sm:$0x4] %vm1026, %v1025
    %s1033 = scalar_lea.vmem [#allocation0], 118
    %1034 = vst.msk [vmem:[%s1033] sm:$0x8] %vm1026, %v1025
    %s1035 = scalar_lea.vmem [#allocation0], 149
    %1036 = vst.msk [vmem:[%s1035] sm:$0x10] %vm1026, %v1025
    %s1037 = scalar_lea.vmem [#allocation0], 180
    %1038 = vst.msk [vmem:[%s1037] sm:$0x20] %vm1026, %v1025
    %s1039 = scalar_lea.vmem [#allocation0], 211
    %1040 = vst.msk [vmem:[%s1039] sm:$0x40] %vm1026, %v1025
    %s1041 = scalar_lea.vmem [#allocation0], 242
    %1042 = vst.msk [vmem:[%s1041] sm:$0x80] %vm1026, %v1025
    %s1043 = scalar_lea.vmem %s0, 8
    %v1044 = vld [vmem:[%s1043] sm:$0xff]
    %1045 = vrot.lane.b32.xlu0 %v1044, 103
    %v1046 = vpop.permute.xlu0 %1045
    %vm1047 = vcmask 7168
    %s1048 = scalar_lea.vmem [#allocation0], 281
    %1049 = vst.msk [vmem:[%s1048] sm:$0x1] %vm1047, %v1046
    %s1050 = scalar_lea.vmem [#allocation0], 312
    %1051 = vst.msk [vmem:[%s1050] sm:$0x2] %vm1047, %v1046
    %s1052 = scalar_lea.vmem [#allocation0], 343
    %1053 = vst.msk [vmem:[%s1052] sm:$0x4] %vm1047, %v1046
    %s1054 = scalar_lea.vmem [#allocation0], 374
    %1055 = vst.msk [vmem:[%s1054] sm:$0x8] %vm1047, %v1046
    %s1056 = scalar_lea.vmem [#allocation0], 405
    %1057 = vst.msk [vmem:[%s1056] sm:$0x10] %vm1047, %v1046
    %s1058 = scalar_lea.vmem [#allocation0], 436
    %1059 = vst.msk [vmem:[%s1058] sm:$0x20] %vm1047, %v1046
    %s1060 = scalar_lea.vmem [#allocation0], 467
    %1061 = vst.msk [vmem:[%s1060] sm:$0x40] %vm1047, %v1046
    %s1062 = scalar_lea.vmem [#allocation0], 498
    %1063 = vst.msk [vmem:[%s1062] sm:$0x80] %vm1047, %v1046
    %v1064 = vld [vmem:[%s0] sm:$0xff]
    %1065 = vrot.lane.b32.xlu0 %v1064, 102
    %v1066 = vpop.permute.xlu0 %1065
    %vm1067 = vcmask 7168
    %s1068 = scalar_lea.vmem [#allocation0], 26
    %1069 = vst.msk [vmem:[%s1068] sm:$0x1] %vm1067, %v1066
    %s1070 = scalar_lea.vmem [#allocation0], 57
    %1071 = vst.msk [vmem:[%s1070] sm:$0x2] %vm1067, %v1066
    %s1072 = scalar_lea.vmem [#allocation0], 88
    %1073 = vst.msk [vmem:[%s1072] sm:$0x4] %vm1067, %v1066
    %s1074 = scalar_lea.vmem [#allocation0], 119
    %1075 = vst.msk [vmem:[%s1074] sm:$0x8] %vm1067, %v1066
    %s1076 = scalar_lea.vmem [#allocation0], 150
    %1077 = vst.msk [vmem:[%s1076] sm:$0x10] %vm1067, %v1066
    %s1078 = scalar_lea.vmem [#allocation0], 181
    %1079 = vst.msk [vmem:[%s1078] sm:$0x20] %vm1067, %v1066
    %s1080 = scalar_lea.vmem [#allocation0], 212
    %1081 = vst.msk [vmem:[%s1080] sm:$0x40] %vm1067, %v1066
    %s1082 = scalar_lea.vmem [#allocation0], 243
    %1083 = vst.msk [vmem:[%s1082] sm:$0x80] %vm1067, %v1066
    %s1084 = scalar_lea.vmem %s0, 8
    %v1085 = vld [vmem:[%s1084] sm:$0xff]
    %1086 = vrot.lane.b32.xlu0 %v1085, 102
    %v1087 = vpop.permute.xlu0 %1086
    %vm1088 = vcmask 7168
    %s1089 = scalar_lea.vmem [#allocation0], 282
    %1090 = vst.msk [vmem:[%s1089] sm:$0x1] %vm1088, %v1087
    %s1091 = scalar_lea.vmem [#allocation0], 313
    %1092 = vst.msk [vmem:[%s1091] sm:$0x2] %vm1088, %v1087
    %s1093 = scalar_lea.vmem [#allocation0], 344
    %1094 = vst.msk [vmem:[%s1093] sm:$0x4] %vm1088, %v1087
    %s1095 = scalar_lea.vmem [#allocation0], 375
    %1096 = vst.msk [vmem:[%s1095] sm:$0x8] %vm1088, %v1087
    %s1097 = scalar_lea.vmem [#allocation0], 406
    %1098 = vst.msk [vmem:[%s1097] sm:$0x10] %vm1088, %v1087
    %s1099 = scalar_lea.vmem [#allocation0], 437
    %1100 = vst.msk [vmem:[%s1099] sm:$0x20] %vm1088, %v1087
    %s1101 = scalar_lea.vmem [#allocation0], 468
    %1102 = vst.msk [vmem:[%s1101] sm:$0x40] %vm1088, %v1087
    %s1103 = scalar_lea.vmem [#allocation0], 499
    %1104 = vst.msk [vmem:[%s1103] sm:$0x80] %vm1088, %v1087
    %v1105 = vld [vmem:[%s0] sm:$0xff]
    %1106 = vrot.lane.b32.xlu0 %v1105, 101
    %v1107 = vpop.permute.xlu0 %1106
    %vm1108 = vcmask 7168
    %s1109 = scalar_lea.vmem [#allocation0], 27
    %1110 = vst.msk [vmem:[%s1109] sm:$0x1] %vm1108, %v1107
    %s1111 = scalar_lea.vmem [#allocation0], 58
    %1112 = vst.msk [vmem:[%s1111] sm:$0x2] %vm1108, %v1107
    %s1113 = scalar_lea.vmem [#allocation0], 89
    %1114 = vst.msk [vmem:[%s1113] sm:$0x4] %vm1108, %v1107
    %s1115 = scalar_lea.vmem [#allocation0], 120
    %1116 = vst.msk [vmem:[%s1115] sm:$0x8] %vm1108, %v1107
    %s1117 = scalar_lea.vmem [#allocation0], 151
    %1118 = vst.msk [vmem:[%s1117] sm:$0x10] %vm1108, %v1107
    %s1119 = scalar_lea.vmem [#allocation0], 182
    %1120 = vst.msk [vmem:[%s1119] sm:$0x20] %vm1108, %v1107
    %s1121 = scalar_lea.vmem [#allocation0], 213
    %1122 = vst.msk [vmem:[%s1121] sm:$0x40] %vm1108, %v1107
    %s1123 = scalar_lea.vmem [#allocation0], 244
    %1124 = vst.msk [vmem:[%s1123] sm:$0x80] %vm1108, %v1107
    %s1125 = scalar_lea.vmem %s0, 8
    %v1126 = vld [vmem:[%s1125] sm:$0xff]
    %1127 = vrot.lane.b32.xlu0 %v1126, 101
    %v1128 = vpop.permute.xlu0 %1127
    %vm1129 = vcmask 7168
    %s1130 = scalar_lea.vmem [#allocation0], 283
    %1131 = vst.msk [vmem:[%s1130] sm:$0x1] %vm1129, %v1128
    %s1132 = scalar_lea.vmem [#allocation0], 314
    %1133 = vst.msk [vmem:[%s1132] sm:$0x2] %vm1129, %v1128
    %s1134 = scalar_lea.vmem [#allocation0], 345
    %1135 = vst.msk [vmem:[%s1134] sm:$0x4] %vm1129, %v1128
    %s1136 = scalar_lea.vmem [#allocation0], 376
    %1137 = vst.msk [vmem:[%s1136] sm:$0x8] %vm1129, %v1128
    %s1138 = scalar_lea.vmem [#allocation0], 407
    %1139 = vst.msk [vmem:[%s1138] sm:$0x10] %vm1129, %v1128
    %s1140 = scalar_lea.vmem [#allocation0], 438
    %1141 = vst.msk [vmem:[%s1140] sm:$0x20] %vm1129, %v1128
    %s1142 = scalar_lea.vmem [#allocation0], 469
    %1143 = vst.msk [vmem:[%s1142] sm:$0x40] %vm1129, %v1128
    %s1144 = scalar_lea.vmem [#allocation0], 500
    %1145 = vst.msk [vmem:[%s1144] sm:$0x80] %vm1129, %v1128
    %v1146 = vld [vmem:[%s0] sm:$0xff]
    %1147 = vrot.lane.b32.xlu0 %v1146, 100
    %v1148 = vpop.permute.xlu0 %1147
    %vm1149 = vcmask 7168
    %s1150 = scalar_lea.vmem [#allocation0], 28
    %1151 = vst.msk [vmem:[%s1150] sm:$0x1] %vm1149, %v1148
    %s1152 = scalar_lea.vmem [#allocation0], 59
    %1153 = vst.msk [vmem:[%s1152] sm:$0x2] %vm1149, %v1148
    %s1154 = scalar_lea.vmem [#allocation0], 90
    %1155 = vst.msk [vmem:[%s1154] sm:$0x4] %vm1149, %v1148
    %s1156 = scalar_lea.vmem [#allocation0], 121
    %1157 = vst.msk [vmem:[%s1156] sm:$0x8] %vm1149, %v1148
    %s1158 = scalar_lea.vmem [#allocation0], 152
    %1159 = vst.msk [vmem:[%s1158] sm:$0x10] %vm1149, %v1148
    %s1160 = scalar_lea.vmem [#allocation0], 183
    %1161 = vst.msk [vmem:[%s1160] sm:$0x20] %vm1149, %v1148
    %s1162 = scalar_lea.vmem [#allocation0], 214
    %1163 = vst.msk [vmem:[%s1162] sm:$0x40] %vm1149, %v1148
    %s1164 = scalar_lea.vmem [#allocation0], 245
    %1165 = vst.msk [vmem:[%s1164] sm:$0x80] %vm1149, %v1148
    %s1166 = scalar_lea.vmem %s0, 8
    %v1167 = vld [vmem:[%s1166] sm:$0xff]
    %1168 = vrot.lane.b32.xlu0 %v1167, 100
    %v1169 = vpop.permute.xlu0 %1168
    %vm1170 = vcmask 7168
    %s1171 = scalar_lea.vmem [#allocation0], 284
    %1172 = vst.msk [vmem:[%s1171] sm:$0x1] %vm1170, %v1169
    %s1173 = scalar_lea.vmem [#allocation0], 315
    %1174 = vst.msk [vmem:[%s1173] sm:$0x2] %vm1170, %v1169
    %s1175 = scalar_lea.vmem [#allocation0], 346
    %1176 = vst.msk [vmem:[%s1175] sm:$0x4] %vm1170, %v1169
    %s1177 = scalar_lea.vmem [#allocation0], 377
    %1178 = vst.msk [vmem:[%s1177] sm:$0x8] %vm1170, %v1169
    %s1179 = scalar_lea.vmem [#allocation0], 408
    %1180 = vst.msk [vmem:[%s1179] sm:$0x10] %vm1170, %v1169
    %s1181 = scalar_lea.vmem [#allocation0], 439
    %1182 = vst.msk [vmem:[%s1181] sm:$0x20] %vm1170, %v1169
    %s1183 = scalar_lea.vmem [#allocation0], 470
    %1184 = vst.msk [vmem:[%s1183] sm:$0x40] %vm1170, %v1169
    %s1185 = scalar_lea.vmem [#allocation0], 501
    %1186 = vst.msk [vmem:[%s1185] sm:$0x80] %vm1170, %v1169
    %v1187 = vld [vmem:[%s0] sm:$0xff]
    %1188 = vrot.lane.b32.xlu0 %v1187, 99
    %v1189 = vpop.permute.xlu0 %1188
    %vm1190 = vcmask 7168
    %s1191 = scalar_lea.vmem [#allocation0], 29
    %1192 = vst.msk [vmem:[%s1191] sm:$0x1] %vm1190, %v1189
    %s1193 = scalar_lea.vmem [#allocation0], 60
    %1194 = vst.msk [vmem:[%s1193] sm:$0x2] %vm1190, %v1189
    %s1195 = scalar_lea.vmem [#allocation0], 91
    %1196 = vst.msk [vmem:[%s1195] sm:$0x4] %vm1190, %v1189
    %s1197 = scalar_lea.vmem [#allocation0], 122
    %1198 = vst.msk [vmem:[%s1197] sm:$0x8] %vm1190, %v1189
    %s1199 = scalar_lea.vmem [#allocation0], 153
    %1200 = vst.msk [vmem:[%s1199] sm:$0x10] %vm1190, %v1189
    %s1201 = scalar_lea.vmem [#allocation0], 184
    %1202 = vst.msk [vmem:[%s1201] sm:$0x20] %vm1190, %v1189
    %s1203 = scalar_lea.vmem [#allocation0], 215
    %1204 = vst.msk [vmem:[%s1203] sm:$0x40] %vm1190, %v1189
    %s1205 = scalar_lea.vmem [#allocation0], 246
    %1206 = vst.msk [vmem:[%s1205] sm:$0x80] %vm1190, %v1189
    %s1207 = scalar_lea.vmem %s0, 8
    %v1208 = vld [vmem:[%s1207] sm:$0xff]
    %1209 = vrot.lane.b32.xlu0 %v1208, 99
    %v1210 = vpop.permute.xlu0 %1209
    %vm1211 = vcmask 7168
    %s1212 = scalar_lea.vmem [#allocation0], 285
    %1213 = vst.msk [vmem:[%s1212] sm:$0x1] %vm1211, %v1210
    %s1214 = scalar_lea.vmem [#allocation0], 316
    %1215 = vst.msk [vmem:[%s1214] sm:$0x2] %vm1211, %v1210
    %s1216 = scalar_lea.vmem [#allocation0], 347
    %1217 = vst.msk [vmem:[%s1216] sm:$0x4] %vm1211, %v1210
    %s1218 = scalar_lea.vmem [#allocation0], 378
    %1219 = vst.msk [vmem:[%s1218] sm:$0x8] %vm1211, %v1210
    %s1220 = scalar_lea.vmem [#allocation0], 409
    %1221 = vst.msk [vmem:[%s1220] sm:$0x10] %vm1211, %v1210
    %s1222 = scalar_lea.vmem [#allocation0], 440
    %1223 = vst.msk [vmem:[%s1222] sm:$0x20] %vm1211, %v1210
    %s1224 = scalar_lea.vmem [#allocation0], 471
    %1225 = vst.msk [vmem:[%s1224] sm:$0x40] %vm1211, %v1210
    %s1226 = scalar_lea.vmem [#allocation0], 502
    %1227 = vst.msk [vmem:[%s1226] sm:$0x80] %vm1211, %v1210
    %v1228 = vld [vmem:[%s0] sm:$0xff]
    %1229 = vrot.lane.b32.xlu0 %v1228, 98
    %v1230 = vpop.permute.xlu0 %1229
    %vm1231 = vcmask 7168
    %s1232 = scalar_lea.vmem [#allocation0], 30
    %1233 = vst.msk [vmem:[%s1232] sm:$0x1] %vm1231, %v1230
    %s1234 = scalar_lea.vmem [#allocation0], 61
    %1235 = vst.msk [vmem:[%s1234] sm:$0x2] %vm1231, %v1230
    %s1236 = scalar_lea.vmem [#allocation0], 92
    %1237 = vst.msk [vmem:[%s1236] sm:$0x4] %vm1231, %v1230
    %s1238 = scalar_lea.vmem [#allocation0], 123
    %1239 = vst.msk [vmem:[%s1238] sm:$0x8] %vm1231, %v1230
    %s1240 = scalar_lea.vmem [#allocation0], 154
    %1241 = vst.msk [vmem:[%s1240] sm:$0x10] %vm1231, %v1230
    %s1242 = scalar_lea.vmem [#allocation0], 185
    %1243 = vst.msk [vmem:[%s1242] sm:$0x20] %vm1231, %v1230
    %s1244 = scalar_lea.vmem [#allocation0], 216
    %1245 = vst.msk [vmem:[%s1244] sm:$0x40] %vm1231, %v1230
    %s1246 = scalar_lea.vmem [#allocation0], 247
    %1247 = vst.msk [vmem:[%s1246] sm:$0x80] %vm1231, %v1230
    %s1248 = scalar_lea.vmem %s0, 8
    %v1249 = vld [vmem:[%s1248] sm:$0xff]
    %1250 = vrot.lane.b32.xlu0 %v1249, 98
    %v1251 = vpop.permute.xlu0 %1250
    %vm1252 = vcmask 7168
    %s1253 = scalar_lea.vmem [#allocation0], 286
    %1254 = vst.msk [vmem:[%s1253] sm:$0x1] %vm1252, %v1251
    %s1255 = scalar_lea.vmem [#allocation0], 317
    %1256 = vst.msk [vmem:[%s1255] sm:$0x2] %vm1252, %v1251
    %s1257 = scalar_lea.vmem [#allocation0], 348
    %1258 = vst.msk [vmem:[%s1257] sm:$0x4] %vm1252, %v1251
    %s1259 = scalar_lea.vmem [#allocation0], 379
    %1260 = vst.msk [vmem:[%s1259] sm:$0x8] %vm1252, %v1251
    %s1261 = scalar_lea.vmem [#allocation0], 410
    %1262 = vst.msk [vmem:[%s1261] sm:$0x10] %vm1252, %v1251
    %s1263 = scalar_lea.vmem [#allocation0], 441
    %1264 = vst.msk [vmem:[%s1263] sm:$0x20] %vm1252, %v1251
    %s1265 = scalar_lea.vmem [#allocation0], 472
    %1266 = vst.msk [vmem:[%s1265] sm:$0x40] %vm1252, %v1251
    %s1267 = scalar_lea.vmem [#allocation0], 503
    %1268 = vst.msk [vmem:[%s1267] sm:$0x80] %vm1252, %v1251
    %v1269 = vld [vmem:[%s0] sm:$0xff]
    %1270 = vrot.lane.b32.xlu0 %v1269, 97
    %v1271 = vpop.permute.xlu0 %1270
    %vm1272 = vcmask 7168
    %s1273 = scalar_lea.vmem [#allocation0], 31
    %1274 = vst.msk [vmem:[%s1273] sm:$0x1] %vm1272, %v1271
    %s1275 = scalar_lea.vmem [#allocation0], 62
    %1276 = vst.msk [vmem:[%s1275] sm:$0x2] %vm1272, %v1271
    %s1277 = scalar_lea.vmem [#allocation0], 93
    %1278 = vst.msk [vmem:[%s1277] sm:$0x4] %vm1272, %v1271
    %s1279 = scalar_lea.vmem [#allocation0], 124
    %1280 = vst.msk [vmem:[%s1279] sm:$0x8] %vm1272, %v1271
    %s1281 = scalar_lea.vmem [#allocation0], 155
    %1282 = vst.msk [vmem:[%s1281] sm:$0x10] %vm1272, %v1271
    %s1283 = scalar_lea.vmem [#allocation0], 186
    %1284 = vst.msk [vmem:[%s1283] sm:$0x20] %vm1272, %v1271
    %s1285 = scalar_lea.vmem [#allocation0], 217
    %1286 = vst.msk [vmem:[%s1285] sm:$0x40] %vm1272, %v1271
    %s1287 = scalar_lea.vmem [#allocation0], 248
    %1288 = vst.msk [vmem:[%s1287] sm:$0x80] %vm1272, %v1271
    %s1289 = scalar_lea.vmem %s0, 8
    %v1290 = vld [vmem:[%s1289] sm:$0xff]
    %1291 = vrot.lane.b32.xlu0 %v1290, 97
    %v1292 = vpop.permute.xlu0 %1291
    %vm1293 = vcmask 7168
    %s1294 = scalar_lea.vmem [#allocation0], 287
    %1295 = vst.msk [vmem:[%s1294] sm:$0x1] %vm1293, %v1292
    %s1296 = scalar_lea.vmem [#allocation0], 318
    %1297 = vst.msk [vmem:[%s1296] sm:$0x2] %vm1293, %v1292
    %s1298 = scalar_lea.vmem [#allocation0], 349
    %1299 = vst.msk [vmem:[%s1298] sm:$0x4] %vm1293, %v1292
    %s1300 = scalar_lea.vmem [#allocation0], 380
    %1301 = vst.msk [vmem:[%s1300] sm:$0x8] %vm1293, %v1292
    %s1302 = scalar_lea.vmem [#allocation0], 411
    %1303 = vst.msk [vmem:[%s1302] sm:$0x10] %vm1293, %v1292
    %s1304 = scalar_lea.vmem [#allocation0], 442
    %1305 = vst.msk [vmem:[%s1304] sm:$0x20] %vm1293, %v1292
    %s1306 = scalar_lea.vmem [#allocation0], 473
    %1307 = vst.msk [vmem:[%s1306] sm:$0x40] %vm1293, %v1292
    %s1308 = scalar_lea.vmem [#allocation0], 504
    %1309 = vst.msk [vmem:[%s1308] sm:$0x80] %vm1293, %v1292
    %s1311 = ssub.s32 8192, 8192
    %1312 = vsyncadd [#allocation1], %s1311
    %s1314 = sshll.u32 [#allocation0], 4
    %s1315 = int_to_ptr.vmem [resolvable:$true] %s1314
    %1317 = dma.vmem_to_hbm [thread:$0]  %s1315, 8192, %s1, [#allocation1]
    %1318 = dma.done [#allocation1], 8192
    %1319 = vsyncpa [#allocation1], 1

// kernel: base_faster_rcnn_forward.3
$region0: #{base_faster_rcnn_forward.3}
  #allocation0 [shape = 'u32[]', space=smem, size = 0x4, offset = 0x4, fixed_abs, tag = 'smem constant byte address 0x4 - core index']
  #allocation1 [shape = 'u32[144,128]{1,0:T(1,128)}', space=vmem, size = 0x12000, scoped, tag = 'internal scratch']
  %s0 = inlined_call_operand.hbm [shape: f32[512,32], index: 0, kind: input, shape index: {}]
  %s1 = inlined_call_operand.hbm [shape: f32[32,128], index: 1, kind: input, shape index: {}]
  %s2 = inlined_call_operand.hbm [shape: f32[1,128], index: 2, kind: input, shape index: {}]
  %s3 = inlined_call_operand.hbm [shape: f32[512,1], index: 3, kind: input, shape index: {}]
  %s4 = inlined_call_operand.hbm [shape: f32[512,128], index: 4, kind: output, shape index: {}]
  %s5 = sld [smem:[#allocation0]]
  $region65: #{base_faster_rcnn_forward.3} parent=0
    _
  %s7 = ssub.s32 1, %s5
  %s8 = scalar_select 0, %s7, %s5
  $region1: #{base_faster_rcnn_forward.3} parent=0
    #allocation2 [shape = 'u8[65536]{0}', space=vmem, size = 0x10000, scoped, tag = 'input window, operand 0']
    #allocation3 [shape = 's32[2]{0}', space=sflag, size = 0x8, scoped, tag = 'scoped memory for base_faster_rcnn_forward.3']
    #allocation4 [shape = 's32[2]{0}', space=sflag, size = 0x8, scoped, tag = 'scoped memory for base_faster_rcnn_forward.3']
    #allocation5 [shape = 'u8[16384]{0}', space=vmem, size = 0x4000, scoped, tag = 'input window, operand 1, single buffered']
    #allocation6 [shape = 's32[1]{0}', space=sflag, size = 0x4, scoped, tag = 'scoped memory for base_faster_rcnn_forward.3']
    #allocation7 [shape = 'u8[512]{0}', space=vmem, size = 0x400, scoped, tag = 'input window, operand 2, single buffered']
    #allocation8 [shape = 'u8[65536]{0}', space=vmem, size = 0x10000, scoped, tag = 'input window, operand 3']
    #allocation9 [shape = 's32[2]{0}', space=sflag, size = 0x8, scoped, tag = 'scoped memory for base_faster_rcnn_forward.3']
    #allocation10 [shape = 'u8[65536]{0}', space=vmem, size = 0x10000, scoped, tag = 'output window, operand 0']
    %9 = vsyncpa [#allocation3], 0
    %s10 = scalar_lea.sflag [#allocation3], 1
    %11 = vsyncpa %s10, 0
    %12 = vsyncpa [#allocation6], 0
    %13 = vsyncpa [#allocation9], 0
    %s14 = scalar_lea.sflag [#allocation9], 1
    %15 = vsyncpa %s14, 0
    %16 = vsyncpa [#allocation4], 0
    %s17 = scalar_lea.sflag [#allocation4], 1
    %18 = vsyncpa %s17, 0
    loop: start=0, step=1, limit=10
    $region2: #{base_faster_rcnn_forward.3} parent=1 // loop_pre_header
      _
    $region3: #{base_faster_rcnn_forward.3} parent=1 // loop_header
      %s20 = sphi 0, %s24
      %p21 = scmp.ge.s32.totalorder %s20, 10
      %s30 = sphi 0, %s32
      %s33 = sphi 0, %s30
      %s34 = sphi 0, %s33
      %s50 = sphi 0, %s34
      %s54 = sphi 0, %s54
      %s56 = sphi 0, %s54
      %s57 = sphi 0, %s56
      %s71 = sphi 0, %s57
      %s75 = sphi 0, %s75
      %s77 = sphi 0, %s75
      %s78 = sphi 0, %s77
      %s92 = sphi 0, %s78
      %s98 = sphi 0, %s100
      %s101 = sphi 0, %s98
      %s102 = sphi 0, %s101
      %s118 = sphi 0, %s102
      %s124 = sphi 0, %s126
      %s127 = sphi 0, %s124
      %s128 = sphi 0, %s127
      %s144 = sphi 0, %s128
    $region4: #{base_faster_rcnn_forward.3} parent=1 // loop_header_branch
      %23 = sbr.rel (%p21) target = $region8
    $region5: #{base_faster_rcnn_forward.3} parent=1 // loop_body
      %s25 = ssub.s32 %s20, 1
      %s26 = ssub.s32 %s20, 2
      %s27 = sadd.s32 %s20, 1
      %s28 = ssub.s32 %s20, %s27
      %p29 = scmp.eq.s32.totalorder %s28, 0
      %s31 = sadd.s32 %s30, 1
      %s32 = scalar_select %p29, %s30, %s31
      %p35 = pneg %p29
      %p36 = scmp.eq.s32.totalorder %s20, 7
      %p37 = por %p35, %p36
      %p38 = scmp.ne.s32.totalorder %s30, %s33
      %p39 = scmp.eq.s32.totalorder %s20, 0
      %p40 = por %p38, %p39
      %p41 = scmp.ne.s32.totalorder %s30, %s33
      %p42 = scmp.eq.s32.totalorder %s25, 7
      %p43 = por %p41, %p42
      %p44 = scmp.ne.s32.totalorder %s33, %s34
      %p45 = scmp.eq.s32.totalorder %s25, 0
      %p46 = por %p44, %p45
      %p47 = scmp.ne.s32.totalorder %s33, %s34
      %p48 = scmp.eq.s32.totalorder %s26, 7
      %p49 = por %p47, %p48
      %p51 = scmp.ne.s32.totalorder %s34, %s50
      %p52 = scmp.eq.s32.totalorder %s26, 0
      %p53 = por %p51, %p52
      %s55 = sadd.s32 %s54, 1
      %p58 = scmp.eq.s32.totalorder %s20, 7
      %p59 = scmp.ne.s32.totalorder %s54, %s56
      %p60 = scmp.eq.s32.totalorder %s20, 0
      %p61 = por %p59, %p60
      %p62 = scmp.ne.s32.totalorder %s54, %s56
      %p63 = scmp.eq.s32.totalorder %s25, 7
      %p64 = por %p62, %p63
      %p65 = scmp.ne.s32.totalorder %s56, %s57
      %p66 = scmp.eq.s32.totalorder %s25, 0
      %p67 = por %p65, %p66
      %p68 = scmp.ne.s32.totalorder %s56, %s57
      %p69 = scmp.eq.s32.totalorder %s26, 7
      %p70 = por %p68, %p69
      %p72 = scmp.ne.s32.totalorder %s57, %s71
      %p73 = scmp.eq.s32.totalorder %s26, 0
      %p74 = por %p72, %p73
      %s76 = sadd.s32 %s75, 1
      %p79 = scmp.eq.s32.totalorder %s20, 7
      %p80 = scmp.ne.s32.totalorder %s75, %s77
      %p81 = scmp.eq.s32.totalorder %s20, 0
      %p82 = por %p80, %p81
      %p83 = scmp.ne.s32.totalorder %s75, %s77
      %p84 = scmp.eq.s32.totalorder %s25, 7
      %p85 = por %p83, %p84
      %p86 = scmp.ne.s32.totalorder %s77, %s78
      %p87 = scmp.eq.s32.totalorder %s25, 0
      %p88 = por %p86, %p87
      %p89 = scmp.ne.s32.totalorder %s77, %s78
      %p90 = scmp.eq.s32.totalorder %s26, 7
      %p91 = por %p89, %p90
      %p93 = scmp.ne.s32.totalorder %s78, %s92
      %p94 = scmp.eq.s32.totalorder %s26, 0
      %p95 = por %p93, %p94
      %s96 = ssub.s32 %s20, %s27
      %p97 = scmp.eq.s32.totalorder %s96, 0
      %s99 = sadd.s32 %s98, 1
      %s100 = scalar_select %p97, %s98, %s99
      %p103 = pneg %p97
      %p104 = scmp.eq.s32.totalorder %s20, 7
      %p105 = por %p103, %p104
      %p106 = scmp.ne.s32.totalorder %s98, %s101
      %p107 = scmp.eq.s32.totalorder %s20, 0
      %p108 = por %p106, %p107
      %p109 = scmp.ne.s32.totalorder %s98, %s101
      %p110 = scmp.eq.s32.totalorder %s25, 7
      %p111 = por %p109, %p110
      %p112 = scmp.ne.s32.totalorder %s101, %s102
      %p113 = scmp.eq.s32.totalorder %s25, 0
      %p114 = por %p112, %p113
      %p115 = scmp.ne.s32.totalorder %s101, %s102
      %p116 = scmp.eq.s32.totalorder %s26, 7
      %p117 = por %p115, %p116
      %p119 = scmp.ne.s32.totalorder %s102, %s118
      %p120 = scmp.eq.s32.totalorder %s26, 0
      %p121 = por %p119, %p120
      %s122 = ssub.s32 %s20, %s27
      %p123 = scmp.eq.s32.totalorder %s122, 0
      %s125 = sadd.s32 %s124, 1
      %s126 = scalar_select %p123, %s124, %s125
      %p129 = pneg %p123
      %p130 = scmp.eq.s32.totalorder %s20, 7
      %p131 = por %p129, %p130
      %p132 = scmp.ne.s32.totalorder %s124, %s127
      %p133 = scmp.eq.s32.totalorder %s20, 0
      %p134 = por %p132, %p133
      %p135 = scmp.ne.s32.totalorder %s124, %s127
      %p136 = scmp.eq.s32.totalorder %s25, 7
      %p137 = por %p135, %p136
      %p138 = scmp.ne.s32.totalorder %s127, %s128
      %p139 = scmp.eq.s32.totalorder %s25, 0
      %p140 = por %p138, %p139
      %p141 = scmp.ne.s32.totalorder %s127, %s128
      %p142 = scmp.eq.s32.totalorder %s26, 7
      %p143 = por %p141, %p142
      %p145 = scmp.ne.s32.totalorder %s128, %s144
      %p146 = scmp.eq.s32.totalorder %s26, 0
      %p147 = por %p145, %p146
      %p148 = scmp.le.s32.totalorder 1, %s20
      %p149 = scmp.lt.s32.totalorder %s20, 9
      %p150 = pnand %p148, %p149
      %p151 = pneg %p150
      // Predicated region
      $region9: #{base_faster_rcnn_forward.3} parent=5 // pred_check
        _
      $region10: #{base_faster_rcnn_forward.3} parent=5 // pred_check_branch
        %153 = sbr.rel (%p150) target = $region12
      $region11: #{base_faster_rcnn_forward.3} parent=5 // pred_region
        %s154 = ssub.s32 %s20, 1
        // Predicated region
        $region13: #{base_faster_rcnn_forward.3} parent=11 // pred_check
          %p155 = pneg %p67
        $region14: #{base_faster_rcnn_forward.3} parent=11 // pred_check_branch
          %157 = sbr.rel (%p155) target = $region16
        $region15: #{base_faster_rcnn_forward.3} parent=11 // pred_region
          %s159 = ssub.s32 512, 512
          %160 = vsyncadd [#allocation6], %s159
          %s161 = sshll.u32 [#allocation5], 4
          %s162 = int_to_ptr.vmem [resolvable:$true] %s161
          %167 = dma.hbm_to_vmem [thread:$0]  %s1, 512, %s162, [#allocation6], 128, 128, 8
        $region16: #{base_faster_rcnn_forward.3} parent=11 // pred_fallthru
          _
        // Predicated region
        $region17: #{base_faster_rcnn_forward.3} parent=11 // pred_check
          %p168 = pneg %p88
        $region18: #{base_faster_rcnn_forward.3} parent=11 // pred_check_branch
          %170 = sbr.rel (%p168) target = $region20
        $region19: #{base_faster_rcnn_forward.3} parent=11 // pred_region
          %s172 = ssub.s32 16, 16
          %173 = vsyncadd [#allocation6], %s172
          %s175 = sshll.u32 [#allocation7], 4
          %s176 = int_to_ptr.vmem [resolvable:$true] %s175
          %178 = dma.hbm_to_vmem [thread:$0]  %s2, 16, %s176, [#allocation6]
        $region20: #{base_faster_rcnn_forward.3} parent=11 // pred_fallthru
          _
      $region12: #{base_faster_rcnn_forward.3} parent=5 // pred_fallthru
        _
      %p179 = scmp.lt.s32.totalorder %s20, 8
      // Predicated region
      $region21: #{base_faster_rcnn_forward.3} parent=5 // pred_check
        %p180 = pneg %p179
      $region22: #{base_faster_rcnn_forward.3} parent=5 // pred_check_branch
        %182 = sbr.rel (%p180) target = $region24
      $region23: #{base_faster_rcnn_forward.3} parent=5 // pred_region
        // Predicated region
        $region25: #{base_faster_rcnn_forward.3} parent=23 // pred_check
          %p183 = pneg %p40
        $region26: #{base_faster_rcnn_forward.3} parent=23 // pred_check_branch
          %185 = sbr.rel (%p183) target = $region28
        $region27: #{base_faster_rcnn_forward.3} parent=23 // pred_region
          %s186 = sand.u32 %s30, 1
          %s187 = scalar_lea.sflag [#allocation3], %s186
          %s188 = sand.u32 %s30, 1
          %s189 = smul.addr %s188, 64
          %s190 = scalar_lea.vmem [#allocation2], %s189
          %s191 = smul.u32 8, %s20
          %s193 = ssub.s32 1024, 1024
          %194 = vsyncadd %s187, %s193
          %s195 = smul.addr %s191, 128
          %s196 = scalar_lea.hbm %s0, %s195
          %s197 = sshll.u32 %s190, 4
          %s198 = int_to_ptr.vmem [resolvable:$true] %s197
          %203 = dma.hbm_to_vmem [thread:$0]  %s196, 1024, %s198, %s187, 128, 128, 8
        $region28: #{base_faster_rcnn_forward.3} parent=23 // pred_fallthru
          _
        // Predicated region
        $region29: #{base_faster_rcnn_forward.3} parent=23 // pred_check
          %p204 = pneg %p108
        $region30: #{base_faster_rcnn_forward.3} parent=23 // pred_check_branch
          %206 = sbr.rel (%p204) target = $region32
        $region31: #{base_faster_rcnn_forward.3} parent=23 // pred_region
          %s207 = sand.u32 %s98, 1
          %s208 = scalar_lea.sflag [#allocation9], %s207
          %s209 = sand.u32 %s98, 1
          %s210 = smul.addr %s209, 64
          %s211 = scalar_lea.vmem [#allocation8], %s210
          %s212 = smul.u32 8, %s20
          %s214 = ssub.s32 1024, 1024
          %215 = vsyncadd %s208, %s214
          %s216 = smul.addr %s212, 128
          %s217 = scalar_lea.hbm %s3, %s216
          %s218 = sshll.u32 %s211, 4
          %s219 = int_to_ptr.vmem [resolvable:$true] %s218
          %224 = dma.hbm_to_vmem [thread:$0]  %s217, 1024, %s219, %s208, 128, 128, 8
        $region32: #{base_faster_rcnn_forward.3} parent=23 // pred_fallthru
          _
      $region24: #{base_faster_rcnn_forward.3} parent=5 // pred_fallthru
        _
      %p225 = scmp.le.s32.totalorder 1, %s20
      %p226 = scmp.lt.s32.totalorder %s20, 9
      %p227 = pnand %p225, %p226
      %p228 = pneg %p227
      // Predicated region
      $region33: #{base_faster_rcnn_forward.3} parent=5 // pred_check
        _
      $region34: #{base_faster_rcnn_forward.3} parent=5 // pred_check_branch
        %230 = sbr.rel (%p227) target = $region36
      $region35: #{base_faster_rcnn_forward.3} parent=5 // pred_region
        %s231 = ssub.s32 %s20, 1
        %s232 = sand.u32 %s33, 1
        %s233 = scalar_lea.sflag [#allocation3], %s232
        %s234 = sand.u32 %s33, 1
        %s235 = smul.addr %s234, 64
        %s236 = scalar_lea.vmem [#allocation2], %s235
        // Predicated region
        $region37: #{base_faster_rcnn_forward.3} parent=35 // pred_check
          %p237 = pneg %p46
        $region38: #{base_faster_rcnn_forward.3} parent=35 // pred_check_branch
          %239 = sbr.rel (%p237) target = $region40
        $region39: #{base_faster_rcnn_forward.3} parent=35 // pred_region
          %240 = dma.done %s233, 1024
        $region40: #{base_faster_rcnn_forward.3} parent=35 // pred_fallthru
          _
        // Predicated region
        $region41: #{base_faster_rcnn_forward.3} parent=35 // pred_check
          %p241 = pneg %p67
        $region42: #{base_faster_rcnn_forward.3} parent=35 // pred_check_branch
          %243 = sbr.rel (%p241) target = $region44
        $region43: #{base_faster_rcnn_forward.3} parent=35 // pred_region
          %244 = dma.done [#allocation6], 512
        $region44: #{base_faster_rcnn_forward.3} parent=35 // pred_fallthru
          _
        // Predicated region
        $region45: #{base_faster_rcnn_forward.3} parent=35 // pred_check
          %p245 = pneg %p88
        $region46: #{base_faster_rcnn_forward.3} parent=35 // pred_check_branch
          %247 = sbr.rel (%p245) target = $region48
        $region47: #{base_faster_rcnn_forward.3} parent=35 // pred_region
          %248 = dma.done [#allocation6], 16
        $region48: #{base_faster_rcnn_forward.3} parent=35 // pred_fallthru
          _
        %s249 = sand.u32 %s101, 1
        %s250 = scalar_lea.sflag [#allocation9], %s249
        %s251 = sand.u32 %s101, 1
        %s252 = smul.addr %s251, 64
        %s253 = scalar_lea.vmem [#allocation8], %s252
        // Predicated region
        $region49: #{base_faster_rcnn_forward.3} parent=35 // pred_check
          %p254 = pneg %p114
        $region50: #{base_faster_rcnn_forward.3} parent=35 // pred_check_branch
          %256 = sbr.rel (%p254) target = $region52
        $region51: #{base_faster_rcnn_forward.3} parent=35 // pred_region
          %257 = dma.done %s250, 1024
        $region52: #{base_faster_rcnn_forward.3} parent=35 // pred_fallthru
          _
        %s258 = sand.u32 %s33, 1
        %s259 = scalar_lea.sflag [#allocation3], %s258
        %s260 = sand.u32 %s33, 1
        %s261 = smul.addr %s260, 64
        %s262 = scalar_lea.vmem [#allocation2], %s261
        %p263 = pneg %p46
        %p264 = pneg %p43
        %p265 = pneg %p67
        %p266 = pneg %p64
        %p267 = pneg %p88
        %p268 = pneg %p85
        %s269 = sand.u32 %s101, 1
        %s270 = scalar_lea.sflag [#allocation9], %s269
        %s271 = sand.u32 %s101, 1
        %s272 = smul.addr %s271, 64
        %s273 = scalar_lea.vmem [#allocation8], %s272
        %p274 = pneg %p114
        %p275 = pneg %p111
        %p276 = pneg %p140
        %p277 = pneg %p137
        %s278 = sand.u32 %s127, 1
        %s279 = scalar_lea.sflag [#allocation4], %s278
        %s280 = sand.u32 %s127, 1
        %s281 = smul.addr %s280, 64
        %s282 = scalar_lea.vmem [#allocation10], %s281
        %s283 = smul.u32 8, %s25
        %s284 = smul.u32 8, %s25
        %s285 = smul.u32 8, %s25
        %v286 = vld [vmem:[%s236] sm:$0xff]
        %v287 = vld [vmem:[%s236 + $0x8] sm:$0xff]
        %v288 = vld [vmem:[%s236 + $0x10] sm:$0xff]
        %v289 = vld [vmem:[%s236 + $0x18] sm:$0xff]
        %v290 = vld [vmem:[%s236 + $0x20] sm:$0xff]
        %v291 = vld [vmem:[%s236 + $0x28] sm:$0xff]
        %v292 = vld [vmem:[%s236 + $0x30] sm:$0xff]
        %v293 = vld [vmem:[%s236 + $0x38] sm:$0xff]
        %v294 = vld [vmem:[#allocation5] sm:$0xff]
        %v295 = vld [vmem:[#allocation5 + $0x8] sm:$0xff]
        %v296 = vld [vmem:[#allocation5 + $0x10] sm:$0xff]
        %v297 = vld [vmem:[#allocation5 + $0x18] sm:$0xff]
        %v298 = vld [vmem:[#allocation7] sm:$0x1]
        %v300 = vlaneseq
        %v301 = vshrl.u32 %v300, 7
        %v302 = vsub.s32 0, %v301
        %v303 = vrot.slane %v298, %v302
        %vm305 = vcmask 261120
        %v307 = vsel %vm305, %v286, 0
        %v310 = vsel %vm305, %v287, 0
        %v313 = vsel %vm305, %v288, 0
        %v316 = vsel %vm305, %v289, 0
        %v319 = vsel %vm305, %v290, 0
        %v322 = vsel %vm305, %v291, 0
        %v325 = vsel %vm305, %v292, 0
        %v328 = vsel %vm305, %v293, 0
        %330 = vmatprep.subr.mxu0 0.0
        %331 = vmatpush1.msra.mxu0 %v294
        %332 = vmatprep.subr.mxu0 0.0
        %333 = vmatpush1.msra.mxu0 %v295
        %334 = vmatprep.subr.mxu0 0.0
        %335 = vmatpush1.msra.mxu0 %v296
        %336 = vmatprep.subr.mxu0 0.0
        %337 = vmatpush1.msra.mxu0 %v297
        %338 = vmatprep.subr.mxu0 0.0
        %339 = vmatpush1.msra.mxu0 0.0
        %340 = vmatprep.subr.mxu0 0.0
        %341 = vmatpush1.msra.mxu0 0.0
        %342 = vmatprep.subr.mxu0 0.0
        %343 = vmatpush1.msra.mxu0 0.0
        %344 = vmatprep.subr.mxu0 0.0
        %345 = vmatpush1.msra.mxu0 0.0
        %346 = vmatprep.subr.mxu0 0.0
        %347 = vmatpush1.msra.mxu0 0.0
        %348 = vmatprep.subr.mxu0 0.0
        %349 = vmatpush1.msra.mxu0 0.0
        %350 = vmatprep.subr.mxu0 0.0
        %351 = vmatpush1.msra.mxu0 0.0
        %352 = vmatprep.subr.mxu0 0.0
        %353 = vmatpush1.msra.mxu0 0.0
        %354 = vmatprep.subr.mxu0 0.0
        %355 = vmatpush1.msra.mxu0 0.0
        %356 = vmatprep.subr.mxu0 0.0
        %357 = vmatpush1.msra.mxu0 0.0
        %358 = vmatprep.subr.mxu0 0.0
        %359 = vmatpush1.msra.mxu0 0.0
        %360 = vmatprep.subr.mxu0 0.0
        %361 = vmatpush1.msra.mxu0 0.0
        %362 = vmatprep.subr.mxu0 0.0
        %363 = vmatpush1.msra.mxu0 0.0
        %364 = vmatprep.subr.mxu0 0.0
        %365 = vmatpush1.msra.mxu0 0.0
        %366 = vmatprep.subr.mxu0 0.0
        %367 = vmatpush1.msra.mxu0 0.0
        %368 = vmatprep.subr.mxu0 0.0
        %369 = vmatpush1.msra.mxu0 0.0
        %370 = vmatprep.subr.mxu0 0.0
        %371 = vmatpush1.msra.mxu0 0.0
        %372 = vmatprep.subr.mxu0 0.0
        %373 = vmatpush1.msra.mxu0 0.0
        %374 = vmatprep.subr.mxu0 0.0
        %375 = vmatpush1.msra.mxu0 0.0
        %376 = vmatprep.subr.mxu0 0.0
        %377 = vmatpush1.msra.mxu0 0.0
        %378 = vmatprep.subr.mxu0 0.0
        %379 = vmatpush1.msra.mxu0 0.0
        %380 = vmatprep.subr.mxu0 0.0
        %381 = vmatpush1.msra.mxu0 0.0
        %382 = vmatprep.subr.mxu0 0.0
        %383 = vmatpush1.msra.mxu0 0.0
        %384 = vmatprep.subr.mxu0 0.0
        %385 = vmatpush1.msra.mxu0 0.0
        %386 = vmatprep.subr.mxu0 0.0
        %387 = vmatpush1.msra.mxu0 0.0
        %388 = vmatprep.subr.mxu0 0.0
        %389 = vmatpush1.msra.mxu0 0.0
        %390 = vmatprep.subr.mxu0 0.0
        %391 = vmatpush1.msra.mxu0 0.0
        %392 = vmatprep.subr.mxu0 0.0
        %393 = vmatpush1.msra.mxu0 0.0
        %394 = vmatprep.mubr.f32.mxu0 0.0
        %395 = vmatmul.mubr.f32.gmra.mrb[0].mxu0 %v307
        %v396 = vpop.f32.mrb[0].mxu0
        %v397 = vadd.f32 %v303, %v396
        %v398 = vpop.f32.mrb[0].mxu0
        %399 = vmatprep.mubr.f32.mxu0 0.0
        %400 = vmatmul.mubr.f32.gmra.mrb[0].mxu0 %v310
        %v401 = vpop.f32.mrb[0].mxu0
        %v402 = vadd.f32 %v303, %v401
        %v403 = vpop.f32.mrb[0].mxu0
        %404 = vmatprep.mubr.f32.mxu0 0.0
        %405 = vmatmul.mubr.f32.gmra.mrb[0].mxu0 %v313
        %v406 = vpop.f32.mrb[0].mxu0
        %v407 = vadd.f32 %v303, %v406
        %v408 = vpop.f32.mrb[0].mxu0
        %409 = vmatprep.mubr.f32.mxu0 0.0
        %410 = vmatmul.mubr.f32.gmra.mrb[0].mxu0 %v316
        %v411 = vpop.f32.mrb[0].mxu0
        %v412 = vadd.f32 %v303, %v411
        %v413 = vpop.f32.mrb[0].mxu0
        %414 = vmatprep.mubr.f32.mxu0 0.0
        %415 = vmatmul.mubr.f32.gmra.mrb[0].mxu0 %v319
        %v416 = vpop.f32.mrb[0].mxu0
        %v417 = vadd.f32 %v303, %v416
        %v418 = vpop.f32.mrb[0].mxu0
        %419 = vmatprep.mubr.f32.mxu0 0.0
        %420 = vmatmul.mubr.f32.gmra.mrb[0].mxu0 %v322
        %v421 = vpop.f32.mrb[0].mxu0
        %v422 = vadd.f32 %v303, %v421
        %v423 = vpop.f32.mrb[0].mxu0
        %424 = vmatprep.mubr.f32.mxu0 0.0
        %425 = vmatmul.mubr.f32.gmra.mrb[0].mxu0 %v325
        %v426 = vpop.f32.mrb[0].mxu0
        %v427 = vadd.f32 %v303, %v426
        %v428 = vpop.f32.mrb[0].mxu0
        %429 = vmatprep.mubr.f32.mxu0 0.0
        %430 = vmatmul.mubr.f32.gmra.mrb[0].mxu0 %v328
        %v431 = vpop.f32.mrb[0].mxu0
        %v432 = vadd.f32 %v303, %v431
        %v433 = vpop.f32.mrb[0].mxu0
        %434 = vdwg.mxu0
        %v435 = vmax.f32 %v397, 0.0
        %v436 = vmax.f32 %v402, 0.0
        %v437 = vmax.f32 %v407, 0.0
        %v438 = vmax.f32 %v412, 0.0
        %v439 = vmax.f32 %v417, 0.0
        %v440 = vmax.f32 %v422, 0.0
        %v441 = vmax.f32 %v427, 0.0
        %v442 = vmax.f32 %v432, 0.0
        %v443 = vld [vmem:[%s253] sm:$0xff]
        %v444 = vld [vmem:[%s253 + $0x8] sm:$0xff]
        %v445 = vld [vmem:[%s253 + $0x10] sm:$0xff]
        %v446 = vld [vmem:[%s253 + $0x18] sm:$0xff]
        %v447 = vld [vmem:[%s253 + $0x20] sm:$0xff]
        %v448 = vld [vmem:[%s253 + $0x28] sm:$0xff]
        %v449 = vld [vmem:[%s253 + $0x30] sm:$0xff]
        %v450 = vld [vmem:[%s253 + $0x38] sm:$0xff]
        %452 = vset.pattern.permute.xlu0 0
        %453 = vperm.xlu0 %452, %v443
        %v454 = vpop.permute.xlu0 %453
        %457 = vset.pattern.permute.xlu0 0
        %458 = vperm.xlu0 %457, %v444
        %v459 = vpop.permute.xlu0 %458
        %462 = vset.pattern.permute.xlu0 0
        %463 = vperm.xlu0 %462, %v445
        %v464 = vpop.permute.xlu0 %463
        %467 = vset.pattern.permute.xlu0 0
        %468 = vperm.xlu0 %467, %v446
        %v469 = vpop.permute.xlu0 %468
        %472 = vset.pattern.permute.xlu0 0
        %473 = vperm.xlu0 %472, %v447
        %v474 = vpop.permute.xlu0 %473
        %477 = vset.pattern.permute.xlu0 0
        %478 = vperm.xlu0 %477, %v448
        %v479 = vpop.permute.xlu0 %478
        %482 = vset.pattern.permute.xlu0 0
        %483 = vperm.xlu0 %482, %v449
        %v484 = vpop.permute.xlu0 %483
        %487 = vset.pattern.permute.xlu0 0
        %488 = vperm.xlu0 %487, %v450
        %v489 = vpop.permute.xlu0 %488
        %v491 = vmul.f32 %v435, %v454
        %v492 = vmul.f32 %v436, %v459
        %v493 = vmul.f32 %v437, %v464
        %v494 = vmul.f32 %v438, %v469
        %v495 = vmul.f32 %v439, %v474
        %v496 = vmul.f32 %v440, %v479
        %v497 = vmul.f32 %v441, %v484
        %v498 = vmul.f32 %v442, %v489
        %499 = vst [vmem:[%s282] sm:$0xff] %v491
        %500 = vst [vmem:[%s282 + $0x8] sm:$0xff] %v492
        %501 = vst [vmem:[%s282 + $0x10] sm:$0xff] %v493
        %502 = vst [vmem:[%s282 + $0x18] sm:$0xff] %v494
        %503 = vst [vmem:[%s282 + $0x20] sm:$0xff] %v495
        %504 = vst [vmem:[%s282 + $0x28] sm:$0xff] %v496
        %505 = vst [vmem:[%s282 + $0x30] sm:$0xff] %v497
        %506 = vst [vmem:[%s282 + $0x38] sm:$0xff] %v498
        %s507 = sand.u32 %s127, 1
        %s508 = scalar_lea.sflag [#allocation4], %s507
        %s509 = sand.u32 %s127, 1
        %s510 = smul.addr %s509, 64
        %s511 = scalar_lea.vmem [#allocation10], %s510
        // Predicated region
        $region53: #{base_faster_rcnn_forward.3} parent=35 // pred_check
          %p512 = pneg %p137
        $region54: #{base_faster_rcnn_forward.3} parent=35 // pred_check_branch
          %514 = sbr.rel (%p512) target = $region56
        $region55: #{base_faster_rcnn_forward.3} parent=35 // pred_region
          %s515 = smul.u32 8, %s25
          %s517 = ssub.s32 1024, 1024
          %518 = vsyncadd %s508, %s517
          %s519 = smul.addr %s515, 128
          %s520 = scalar_lea.hbm %s4, %s519
          %s521 = sshll.u32 %s511, 4
          %s522 = int_to_ptr.vmem [resolvable:$true] %s521
          %527 = dma.vmem_to_hbm [thread:$0]  %s522, 1024, %s520, %s508, 128, 128, 8
        $region56: #{base_faster_rcnn_forward.3} parent=35 // pred_fallthru
          _
      $region36: #{base_faster_rcnn_forward.3} parent=5 // pred_fallthru
        _
      %p528 = scmp.le.s32.totalorder 2, %s20
      // Predicated region
      $region57: #{base_faster_rcnn_forward.3} parent=5 // pred_check
        %p529 = pneg %p528
      $region58: #{base_faster_rcnn_forward.3} parent=5 // pred_check_branch
        %531 = sbr.rel (%p529) target = $region60
      $region59: #{base_faster_rcnn_forward.3} parent=5 // pred_region
        %s532 = ssub.s32 %s20, 2
        // Predicated region
        $region61: #{base_faster_rcnn_forward.3} parent=59 // pred_check
          %p533 = pneg %p143
        $region62: #{base_faster_rcnn_forward.3} parent=59 // pred_check_branch
          %535 = sbr.rel (%p533) target = $region64
        $region63: #{base_faster_rcnn_forward.3} parent=59 // pred_region
          %s536 = sand.u32 %s128, 1
          %s537 = scalar_lea.sflag [#allocation4], %s536
          %s538 = sand.u32 %s128, 1
          %s539 = smul.addr %s538, 64
          %s540 = scalar_lea.vmem [#allocation10], %s539
          %541 = dma.done %s537, 1024
        $region64: #{base_faster_rcnn_forward.3} parent=59 // pred_fallthru
          _
      $region60: #{base_faster_rcnn_forward.3} parent=5 // pred_fallthru
        _
    $region6: #{base_faster_rcnn_forward.3} parent=1 // loop_footer
      %s24 = sadd.s32 1, %s20
    $region7: #{base_faster_rcnn_forward.3} parent=1 // loop_footer_branch
      %19 = sbr.rel target = $region3
    $region8: #{base_faster_rcnn_forward.3} parent=1 // loop_exit
      _
    %542 = vsyncpa [#allocation3], 1
    %s543 = scalar_lea.sflag [#allocation3], 1
    %544 = vsyncpa %s543, 1
    %545 = vsyncpa [#allocation6], 1
    %546 = vsyncpa [#allocation9], 1
    %s547 = scalar_lea.sflag [#allocation9], 1
    %548 = vsyncpa %s547, 1
    %549 = vsyncpa [#allocation4], 1
    %s550 = scalar_lea.sflag [#allocation4], 1
    %551 = vsyncpa %s550, 1

// kernel: base_faster_rcnn_forward.4
$region0: #{base_faster_rcnn_forward.4}
  #allocation0 [shape = 'u32[]', space=smem, size = 0x4, offset = 0x4, fixed_abs, tag = 'smem constant byte address 0x4 - core index']
  #allocation1 [shape = 'u32[144,128]{1,0:T(1,128)}', space=vmem, size = 0x12000, scoped, tag = 'internal scratch']
  %s0 = inlined_call_operand.hbm [shape: f32[512,128], index: 0, kind: input, shape index: {}]
  %s1 = inlined_call_operand.hbm [shape: f32[8,64,128], index: 1, kind: input, shape index: {}]
  %s2 = inlined_call_operand.hbm [shape: f32[9,128,128], index: 2, kind: input, shape index: {}]
  %s3 = inlined_call_operand.hbm [shape: f32[1,128], index: 3, kind: input, shape index: {}]
  %s4 = inlined_call_operand.hbm [shape: f32[128,128], index: 4, kind: input, shape index: {}]
  %s5 = inlined_call_operand.hbm [shape: f32[1,128], index: 5, kind: input, shape index: {}]
  %s6 = inlined_call_operand.hbm [shape: f32[512,1], index: 6, kind: input, shape index: {}]
  %s7 = inlined_call_operand.hbm [shape: f32[512,128], index: 7, kind: output, shape index: {}]
  %s8 = sld [smem:[#allocation0]]
  $region89: #{base_faster_rcnn_forward.4} parent=0
    _
  %s10 = ssub.s32 1, %s8
  %s11 = scalar_select 0, %s10, %s8
  $region1: #{base_faster_rcnn_forward.4} parent=0
    #allocation2 [shape = 'u8[65536]{0}', space=vmem, size = 0x10000, scoped, tag = 'input window, operand 0']
    #allocation3 [shape = 's32[2]{0}', space=sflag, size = 0x8, scoped, tag = 'scoped memory for base_faster_rcnn_forward.4']
    #allocation4 [shape = 's32[2]{0}', space=sflag, size = 0x8, scoped, tag = 'scoped memory for base_faster_rcnn_forward.4']
    #allocation5 [shape = 'u8[65536]{0}', space=vmem, size = 0x10000, scoped, tag = 'input window, operand 1']
    #allocation6 [shape = 's32[2]{0}', space=sflag, size = 0x8, scoped, tag = 'scoped memory for base_faster_rcnn_forward.4']
    #allocation7 [shape = 'u8[589824]{0}', space=vmem, size = 0x90000, scoped, tag = 'input window, operand 2, single buffered']
    #allocation8 [shape = 'u8[512]{0}', space=vmem, size = 0x400, scoped, tag = 'input window, operand 3, single buffered']
    #allocation9 [shape = 's32[1]{0}', space=sflag, size = 0x4, scoped, tag = 'scoped memory for base_faster_rcnn_forward.4']
    #allocation10 [shape = 'u8[65536]{0}', space=vmem, size = 0x10000, scoped, tag = 'input window, operand 4, single buffered']
    #allocation11 [shape = 'u8[512]{0}', space=vmem, size = 0x400, scoped, tag = 'input window, operand 5, single buffered']
    #allocation12 [shape = 's32[1]{0}', space=sflag, size = 0x4, scoped, tag = 'scoped memory for base_faster_rcnn_forward.4']
    #allocation13 [shape = 'u8[65536]{0}', space=vmem, size = 0x10000, scoped, tag = 'input window, operand 6']
    #allocation14 [shape = 'u8[65536]{0}', space=vmem, size = 0x10000, scoped, tag = 'output window, operand 0']
    %12 = vsyncpa [#allocation3], 0
    %s13 = scalar_lea.sflag [#allocation3], 1
    %14 = vsyncpa %s13, 0
    %15 = vsyncpa [#allocation6], 0
    %s16 = scalar_lea.sflag [#allocation6], 1
    %17 = vsyncpa %s16, 0
    %18 = vsyncpa [#allocation9], 0
    %19 = vsyncpa [#allocation12], 0
    %20 = vsyncpa [#allocation4], 0
    %s21 = scalar_lea.sflag [#allocation4], 1
    %22 = vsyncpa %s21, 0
    loop: start=0, step=1, limit=10
    $region2: #{base_faster_rcnn_forward.4} parent=1 // loop_pre_header
      _
    $region3: #{base_faster_rcnn_forward.4} parent=1 // loop_header
      %s24 = sphi 0, %s28
      %p25 = scmp.ge.s32.totalorder %s24, 10
      %s34 = sphi 0, %s36
      %s37 = sphi 0, %s34
      %s38 = sphi 0, %s37
      %s54 = sphi 0, %s38
      %s60 = sphi 0, %s62
      %s63 = sphi 0, %s60
      %s64 = sphi 0, %s63
      %s80 = sphi 0, %s64
      %s84 = sphi 0, %s84
      %s86 = sphi 0, %s84
      %s87 = sphi 0, %s86
      %s101 = sphi 0, %s87
      %s105 = sphi 0, %s105
      %s107 = sphi 0, %s105
      %s108 = sphi 0, %s107
      %s122 = sphi 0, %s108
      %s126 = sphi 0, %s126
      %s128 = sphi 0, %s126
      %s129 = sphi 0, %s128
      %s143 = sphi 0, %s129
      %s147 = sphi 0, %s147
      %s149 = sphi 0, %s147
      %s150 = sphi 0, %s149
      %s164 = sphi 0, %s150
      %s170 = sphi 0, %s172
      %s173 = sphi 0, %s170
      %s174 = sphi 0, %s173
      %s190 = sphi 0, %s174
      %s196 = sphi 0, %s198
      %s199 = sphi 0, %s196
      %s200 = sphi 0, %s199
      %s216 = sphi 0, %s200
    $region4: #{base_faster_rcnn_forward.4} parent=1 // loop_header_branch
      %27 = sbr.rel (%p25) target = $region8
    $region5: #{base_faster_rcnn_forward.4} parent=1 // loop_body
      %s29 = ssub.s32 %s24, 1
      %s30 = ssub.s32 %s24, 2
      %s31 = sadd.s32 %s24, 1
      %s32 = ssub.s32 %s24, %s31
      %p33 = scmp.eq.s32.totalorder %s32, 0
      %s35 = sadd.s32 %s34, 1
      %s36 = scalar_select %p33, %s34, %s35
      %p39 = pneg %p33
      %p40 = scmp.eq.s32.totalorder %s24, 7
      %p41 = por %p39, %p40
      %p42 = scmp.ne.s32.totalorder %s34, %s37
      %p43 = scmp.eq.s32.totalorder %s24, 0
      %p44 = por %p42, %p43
      %p45 = scmp.ne.s32.totalorder %s34, %s37
      %p46 = scmp.eq.s32.totalorder %s29, 7
      %p47 = por %p45, %p46
      %p48 = scmp.ne.s32.totalorder %s37, %s38
      %p49 = scmp.eq.s32.totalorder %s29, 0
      %p50 = por %p48, %p49
      %p51 = scmp.ne.s32.totalorder %s37, %s38
      %p52 = scmp.eq.s32.totalorder %s30, 7
      %p53 = por %p51, %p52
      %p55 = scmp.ne.s32.totalorder %s38, %s54
      %p56 = scmp.eq.s32.totalorder %s30, 0
      %p57 = por %p55, %p56
      %s58 = ssub.s32 %s24, %s31
      %p59 = scmp.eq.s32.totalorder %s58, 0
      %s61 = sadd.s32 %s60, 1
      %s62 = scalar_select %p59, %s60, %s61
      %p65 = pneg %p59
      %p66 = scmp.eq.s32.totalorder %s24, 7
      %p67 = por %p65, %p66
      %p68 = scmp.ne.s32.totalorder %s60, %s63
      %p69 = scmp.eq.s32.totalorder %s24, 0
      %p70 = por %p68, %p69
      %p71 = scmp.ne.s32.totalorder %s60, %s63
      %p72 = scmp.eq.s32.totalorder %s29, 7
      %p73 = por %p71, %p72
      %p74 = scmp.ne.s32.totalorder %s63, %s64
      %p75 = scmp.eq.s32.totalorder %s29, 0
      %p76 = por %p74, %p75
      %p77 = scmp.ne.s32.totalorder %s63, %s64
      %p78 = scmp.eq.s32.totalorder %s30, 7
      %p79 = por %p77, %p78
      %p81 = scmp.ne.s32.totalorder %s64, %s80
      %p82 = scmp.eq.s32.totalorder %s30, 0
      %p83 = por %p81, %p82
      %s85 = sadd.s32 %s84, 1
      %p88 = scmp.eq.s32.totalorder %s24, 7
      %p89 = scmp.ne.s32.totalorder %s84, %s86
      %p90 = scmp.eq.s32.totalorder %s24, 0
      %p91 = por %p89, %p90
      %p92 = scmp.ne.s32.totalorder %s84, %s86
      %p93 = scmp.eq.s32.totalorder %s29, 7
      %p94 = por %p92, %p93
      %p95 = scmp.ne.s32.totalorder %s86, %s87
      %p96 = scmp.eq.s32.totalorder %s29, 0
      %p97 = por %p95, %p96
      %p98 = scmp.ne.s32.totalorder %s86, %s87
      %p99 = scmp.eq.s32.totalorder %s30, 7
      %p100 = por %p98, %p99
      %p102 = scmp.ne.s32.totalorder %s87, %s101
      %p103 = scmp.eq.s32.totalorder %s30, 0
      %p104 = por %p102, %p103
      %s106 = sadd.s32 %s105, 1
      %p109 = scmp.eq.s32.totalorder %s24, 7
      %p110 = scmp.ne.s32.totalorder %s105, %s107
      %p111 = scmp.eq.s32.totalorder %s24, 0
      %p112 = por %p110, %p111
      %p113 = scmp.ne.s32.totalorder %s105, %s107
      %p114 = scmp.eq.s32.totalorder %s29, 7
      %p115 = por %p113, %p114
      %p116 = scmp.ne.s32.totalorder %s107, %s108
      %p117 = scmp.eq.s32.totalorder %s29, 0
      %p118 = por %p116, %p117
      %p119 = scmp.ne.s32.totalorder %s107, %s108
      %p120 = scmp.eq.s32.totalorder %s30, 7
      %p121 = por %p119, %p120
      %p123 = scmp.ne.s32.totalorder %s108, %s122
      %p124 = scmp.eq.s32.totalorder %s30, 0
      %p125 = por %p123, %p124
      %s127 = sadd.s32 %s126, 1
      %p130 = scmp.eq.s32.totalorder %s24, 7
      %p131 = scmp.ne.s32.totalorder %s126, %s128
      %p132 = scmp.eq.s32.totalorder %s24, 0
      %p133 = por %p131, %p132
      %p134 = scmp.ne.s32.totalorder %s126, %s128
      %p135 = scmp.eq.s32.totalorder %s29, 7
      %p136 = por %p134, %p135
      %p137 = scmp.ne.s32.totalorder %s128, %s129
      %p138 = scmp.eq.s32.totalorder %s29, 0
      %p139 = por %p137, %p138
      %p140 = scmp.ne.s32.totalorder %s128, %s129
      %p141 = scmp.eq.s32.totalorder %s30, 7
      %p142 = por %p140, %p141
      %p144 = scmp.ne.s32.totalorder %s129, %s143
      %p145 = scmp.eq.s32.totalorder %s30, 0
      %p146 = por %p144, %p145
      %s148 = sadd.s32 %s147, 1
      %p151 = scmp.eq.s32.totalorder %s24, 7
      %p152 = scmp.ne.s32.totalorder %s147, %s149
      %p153 = scmp.eq.s32.totalorder %s24, 0
      %p154 = por %p152, %p153
      %p155 = scmp.ne.s32.totalorder %s147, %s149
      %p156 = scmp.eq.s32.totalorder %s29, 7
      %p157 = por %p155, %p156
      %p158 = scmp.ne.s32.totalorder %s149, %s150
      %p159 = scmp.eq.s32.totalorder %s29, 0
      %p160 = por %p158, %p159
      %p161 = scmp.ne.s32.totalorder %s149, %s150
      %p162 = scmp.eq.s32.totalorder %s30, 7
      %p163 = por %p161, %p162
      %p165 = scmp.ne.s32.totalorder %s150, %s164
      %p166 = scmp.eq.s32.totalorder %s30, 0
      %p167 = por %p165, %p166
      %s168 = ssub.s32 %s24, %s31
      %p169 = scmp.eq.s32.totalorder %s168, 0
      %s171 = sadd.s32 %s170, 1
      %s172 = scalar_select %p169, %s170, %s171
      %p175 = pneg %p169
      %p176 = scmp.eq.s32.totalorder %s24, 7
      %p177 = por %p175, %p176
      %p178 = scmp.ne.s32.totalorder %s170, %s173
      %p179 = scmp.eq.s32.totalorder %s24, 0
      %p180 = por %p178, %p179
      %p181 = scmp.ne.s32.totalorder %s170, %s173
      %p182 = scmp.eq.s32.totalorder %s29, 7
      %p183 = por %p181, %p182
      %p184 = scmp.ne.s32.totalorder %s173, %s174
      %p185 = scmp.eq.s32.totalorder %s29, 0
      %p186 = por %p184, %p185
      %p187 = scmp.ne.s32.totalorder %s173, %s174
      %p188 = scmp.eq.s32.totalorder %s30, 7
      %p189 = por %p187, %p188
      %p191 = scmp.ne.s32.totalorder %s174, %s190
      %p192 = scmp.eq.s32.totalorder %s30, 0
      %p193 = por %p191, %p192
      %s194 = ssub.s32 %s24, %s31
      %p195 = scmp.eq.s32.totalorder %s194, 0
      %s197 = sadd.s32 %s196, 1
      %s198 = scalar_select %p195, %s196, %s197
      %p201 = pneg %p195
      %p202 = scmp.eq.s32.totalorder %s24, 7
      %p203 = por %p201, %p202
      %p204 = scmp.ne.s32.totalorder %s196, %s199
      %p205 = scmp.eq.s32.totalorder %s24, 0
      %p206 = por %p204, %p205
      %p207 = scmp.ne.s32.totalorder %s196, %s199
      %p208 = scmp.eq.s32.totalorder %s29, 7
      %p209 = por %p207, %p208
      %p210 = scmp.ne.s32.totalorder %s199, %s200
      %p211 = scmp.eq.s32.totalorder %s29, 0
      %p212 = por %p210, %p211
      %p213 = scmp.ne.s32.totalorder %s199, %s200
      %p214 = scmp.eq.s32.totalorder %s30, 7
      %p215 = por %p213, %p214
      %p217 = scmp.ne.s32.totalorder %s200, %s216
      %p218 = scmp.eq.s32.totalorder %s30, 0
      %p219 = por %p217, %p218
      %p220 = scmp.le.s32.totalorder 1, %s24
      %p221 = scmp.lt.s32.totalorder %s24, 9
      %p222 = pnand %p220, %p221
      %p223 = pneg %p222
      // Predicated region
      $region9: #{base_faster_rcnn_forward.4} parent=5 // pred_check
        _
      $region10: #{base_faster_rcnn_forward.4} parent=5 // pred_check_branch
        %225 = sbr.rel (%p222) target = $region12
      $region11: #{base_faster_rcnn_forward.4} parent=5 // pred_region
        %s226 = ssub.s32 %s24, 1
        // Predicated region
        $region13: #{base_faster_rcnn_forward.4} parent=11 // pred_check
          %p227 = pneg %p97
        $region14: #{base_faster_rcnn_forward.4} parent=11 // pred_check_branch
          %229 = sbr.rel (%p227) target = $region16
        $region15: #{base_faster_rcnn_forward.4} parent=11 // pred_region
          %s231 = ssub.s32 18432, 18432
          %232 = vsyncadd [#allocation6], %s231
          %s233 = sshll.u32 [#allocation7], 4
          %s234 = int_to_ptr.vmem [resolvable:$true] %s233
          %239 = dma.hbm_to_vmem [thread:$0]  %s2, 18432, %s234, [#allocation6], 128, 128, 8
        $region16: #{base_faster_rcnn_forward.4} parent=11 // pred_fallthru
          _
        // Predicated region
        $region17: #{base_faster_rcnn_forward.4} parent=11 // pred_check
          %p240 = pneg %p118
        $region18: #{base_faster_rcnn_forward.4} parent=11 // pred_check_branch
          %242 = sbr.rel (%p240) target = $region20
        $region19: #{base_faster_rcnn_forward.4} parent=11 // pred_region
          %s244 = ssub.s32 16, 16
          %245 = vsyncadd [#allocation9], %s244
          %s247 = sshll.u32 [#allocation8], 4
          %s248 = int_to_ptr.vmem [resolvable:$true] %s247
          %250 = dma.hbm_to_vmem [thread:$0]  %s3, 16, %s248, [#allocation9]
        $region20: #{base_faster_rcnn_forward.4} parent=11 // pred_fallthru
          _
        // Predicated region
        $region21: #{base_faster_rcnn_forward.4} parent=11 // pred_check
          %p251 = pneg %p139
        $region22: #{base_faster_rcnn_forward.4} parent=11 // pred_check_branch
          %253 = sbr.rel (%p251) target = $region24
        $region23: #{base_faster_rcnn_forward.4} parent=11 // pred_region
          %s255 = ssub.s32 2048, 2048
          %256 = vsyncadd [#allocation9], %s255
          %s257 = sshll.u32 [#allocation10], 4
          %s258 = int_to_ptr.vmem [resolvable:$true] %s257
          %263 = dma.hbm_to_vmem [thread:$0]  %s4, 2048, %s258, [#allocation9], 128, 128, 8
        $region24: #{base_faster_rcnn_forward.4} parent=11 // pred_fallthru
          _
        // Predicated region
        $region25: #{base_faster_rcnn_forward.4} parent=11 // pred_check
          %p264 = pneg %p160
        $region26: #{base_faster_rcnn_forward.4} parent=11 // pred_check_branch
          %266 = sbr.rel (%p264) target = $region28
        $region27: #{base_faster_rcnn_forward.4} parent=11 // pred_region
          %s268 = ssub.s32 16, 16
          %269 = vsyncadd [#allocation12], %s268
          %s271 = sshll.u32 [#allocation11], 4
          %s272 = int_to_ptr.vmem [resolvable:$true] %s271
          %274 = dma.hbm_to_vmem [thread:$0]  %s5, 16, %s272, [#allocation12]
        $region28: #{base_faster_rcnn_forward.4} parent=11 // pred_fallthru
          _
      $region12: #{base_faster_rcnn_forward.4} parent=5 // pred_fallthru
        _
      %p275 = scmp.lt.s32.totalorder %s24, 8
      // Predicated region
      $region29: #{base_faster_rcnn_forward.4} parent=5 // pred_check
        %p276 = pneg %p275
      $region30: #{base_faster_rcnn_forward.4} parent=5 // pred_check_branch
        %278 = sbr.rel (%p276) target = $region32
      $region31: #{base_faster_rcnn_forward.4} parent=5 // pred_region
        // Predicated region
        $region33: #{base_faster_rcnn_forward.4} parent=31 // pred_check
          %p279 = pneg %p44
        $region34: #{base_faster_rcnn_forward.4} parent=31 // pred_check_branch
          %281 = sbr.rel (%p279) target = $region36
        $region35: #{base_faster_rcnn_forward.4} parent=31 // pred_region
          %s282 = sand.u32 %s24, 1
          %s283 = scalar_lea.sflag [#allocation3], %s282
          %s284 = sand.u32 %s34, 1
          %s285 = smul.addr %s284, 64
          %s286 = scalar_lea.vmem [#allocation2], %s285
          %s287 = smul.u32 8, %s24
          %s289 = ssub.s32 1024, 1024
          %290 = vsyncadd %s283, %s289
          %s291 = smul.addr %s287, 128
          %s292 = scalar_lea.hbm %s0, %s291
          %s293 = sshll.u32 %s286, 4
          %s294 = int_to_ptr.vmem [resolvable:$true] %s293
          %299 = dma.hbm_to_vmem [thread:$0]  %s292, 1024, %s294, %s283, 128, 128, 8
        $region36: #{base_faster_rcnn_forward.4} parent=31 // pred_fallthru
          _
        // Predicated region
        $region37: #{base_faster_rcnn_forward.4} parent=31 // pred_check
          %p300 = pneg %p70
        $region38: #{base_faster_rcnn_forward.4} parent=31 // pred_check_branch
          %302 = sbr.rel (%p300) target = $region40
        $region39: #{base_faster_rcnn_forward.4} parent=31 // pred_region
          %s303 = sand.u32 %s24, 1
          %s304 = scalar_lea.sflag [#allocation6], %s303
          %s305 = sand.u32 %s60, 1
          %s306 = smul.addr %s305, 64
          %s307 = scalar_lea.vmem [#allocation5], %s306
          %s309 = ssub.s32 1024, 1024
          %310 = vsyncadd %s304, %s309
          %s311 = smul.addr %s24, 8
          %s312 = smul.addr %s311, 128
          %s313 = scalar_lea.hbm %s1, %s312
          %s314 = sshll.u32 %s307, 4
          %s315 = int_to_ptr.vmem [resolvable:$true] %s314
          %320 = dma.hbm_to_vmem [thread:$0]  %s313, 1024, %s315, %s304, 128, 128, 8
        $region40: #{base_faster_rcnn_forward.4} parent=31 // pred_fallthru
          _
        // Predicated region
        $region41: #{base_faster_rcnn_forward.4} parent=31 // pred_check
          %p321 = pneg %p180
        $region42: #{base_faster_rcnn_forward.4} parent=31 // pred_check_branch
          %323 = sbr.rel (%p321) target = $region44
        $region43: #{base_faster_rcnn_forward.4} parent=31 // pred_region
          %s324 = sand.u32 %s24, 1
          %s325 = scalar_lea.sflag [#allocation3], %s324
          %s326 = sand.u32 %s170, 1
          %s327 = smul.addr %s326, 64
          %s328 = scalar_lea.vmem [#allocation13], %s327
          %s329 = smul.u32 8, %s24
          %s331 = ssub.s32 1024, 1024
          %332 = vsyncadd %s325, %s331
          %s333 = smul.addr %s329, 128
          %s334 = scalar_lea.hbm %s6, %s333
          %s335 = sshll.u32 %s328, 4
          %s336 = int_to_ptr.vmem [resolvable:$true] %s335
          %341 = dma.hbm_to_vmem [thread:$0]  %s334, 1024, %s336, %s325, 128, 128, 8
        $region44: #{base_faster_rcnn_forward.4} parent=31 // pred_fallthru
          _
      $region32: #{base_faster_rcnn_forward.4} parent=5 // pred_fallthru
        _
      %p342 = scmp.le.s32.totalorder 1, %s24
      %p343 = scmp.lt.s32.totalorder %s24, 9
      %p344 = pnand %p342, %p343
      %p345 = pneg %p344
      // Predicated region
      $region45: #{base_faster_rcnn_forward.4} parent=5 // pred_check
        _
      $region46: #{base_faster_rcnn_forward.4} parent=5 // pred_check_branch
        %347 = sbr.rel (%p344) target = $region48
      $region47: #{base_faster_rcnn_forward.4} parent=5 // pred_region
        %s348 = ssub.s32 %s24, 1
        %s349 = sand.u32 %s29, 1
        %s350 = scalar_lea.sflag [#allocation3], %s349
        %s351 = sand.u32 %s37, 1
        %s352 = smul.addr %s351, 64
        %s353 = scalar_lea.vmem [#allocation2], %s352
        // Predicated region
        $region49: #{base_faster_rcnn_forward.4} parent=47 // pred_check
          %p354 = pneg %p50
        $region50: #{base_faster_rcnn_forward.4} parent=47 // pred_check_branch
          %356 = sbr.rel (%p354) target = $region52
        $region51: #{base_faster_rcnn_forward.4} parent=47 // pred_region
          %357 = dma.done %s350, 1024
        $region52: #{base_faster_rcnn_forward.4} parent=47 // pred_fallthru
          _
        %s358 = sand.u32 %s29, 1
        %s359 = scalar_lea.sflag [#allocation6], %s358
        %s360 = sand.u32 %s63, 1
        %s361 = smul.addr %s360, 64
        %s362 = scalar_lea.vmem [#allocation5], %s361
        // Predicated region
        $region53: #{base_faster_rcnn_forward.4} parent=47 // pred_check
          %p363 = pneg %p76
        $region54: #{base_faster_rcnn_forward.4} parent=47 // pred_check_branch
          %365 = sbr.rel (%p363) target = $region56
        $region55: #{base_faster_rcnn_forward.4} parent=47 // pred_region
          %366 = dma.done %s359, 1024
        $region56: #{base_faster_rcnn_forward.4} parent=47 // pred_fallthru
          _
        // Predicated region
        $region57: #{base_faster_rcnn_forward.4} parent=47 // pred_check
          %p367 = pneg %p97
        $region58: #{base_faster_rcnn_forward.4} parent=47 // pred_check_branch
          %369 = sbr.rel (%p367) target = $region60
        $region59: #{base_faster_rcnn_forward.4} parent=47 // pred_region
          %370 = dma.done [#allocation6], 18432
        $region60: #{base_faster_rcnn_forward.4} parent=47 // pred_fallthru
          _
        // Predicated region
        $region61: #{base_faster_rcnn_forward.4} parent=47 // pred_check
          %p371 = pneg %p118
        $region62: #{base_faster_rcnn_forward.4} parent=47 // pred_check_branch
          %373 = sbr.rel (%p371) target = $region64
        $region63: #{base_faster_rcnn_forward.4} parent=47 // pred_region
          %374 = dma.done [#allocation9], 16
        $region64: #{base_faster_rcnn_forward.4} parent=47 // pred_fallthru
          _
        // Predicated region
        $region65: #{base_faster_rcnn_forward.4} parent=47 // pred_check
          %p375 = pneg %p139
        $region66: #{base_faster_rcnn_forward.4} parent=47 // pred_check_branch
          %377 = sbr.rel (%p375) target = $region68
        $region67: #{base_faster_rcnn_forward.4} parent=47 // pred_region
          %378 = dma.done [#allocation9], 2048
        $region68: #{base_faster_rcnn_forward.4} parent=47 // pred_fallthru
          _
        // Predicated region
        $region69: #{base_faster_rcnn_forward.4} parent=47 // pred_check
          %p379 = pneg %p160
        $region70: #{base_faster_rcnn_forward.4} parent=47 // pred_check_branch
          %381 = sbr.rel (%p379) target = $region72
        $region71: #{base_faster_rcnn_forward.4} parent=47 // pred_region
          %382 = dma.done [#allocation12], 16
        $region72: #{base_faster_rcnn_forward.4} parent=47 // pred_fallthru
          _
        %s383 = sand.u32 %s29, 1
        %s384 = scalar_lea.sflag [#allocation3], %s383
        %s385 = sand.u32 %s173, 1
        %s386 = smul.addr %s385, 64
        %s387 = scalar_lea.vmem [#allocation13], %s386
        // Predicated region
        $region73: #{base_faster_rcnn_forward.4} parent=47 // pred_check
          %p388 = pneg %p186
        $region74: #{base_faster_rcnn_forward.4} parent=47 // pred_check_branch
          %390 = sbr.rel (%p388) target = $region76
        $region75: #{base_faster_rcnn_forward.4} parent=47 // pred_region
          %391 = dma.done %s384, 1024
        $region76: #{base_faster_rcnn_forward.4} parent=47 // pred_fallthru
          _
        %s392 = sand.u32 %s29, 1
        %s393 = scalar_lea.sflag [#allocation3], %s392
        %s394 = sand.u32 %s37, 1
        %s395 = smul.addr %s394, 64
        %s396 = scalar_lea.vmem [#allocation2], %s395
        %p397 = pneg %p50
        %p398 = pneg %p47
        %s399 = sand.u32 %s29, 1
        %s400 = scalar_lea.sflag [#allocation6], %s399
        %s401 = sand.u32 %s63, 1
        %s402 = smul.addr %s401, 64
        %s403 = scalar_lea.vmem [#allocation5], %s402
        %p404 = pneg %p76
        %p405 = pneg %p73
        %p406 = pneg %p97
        %p407 = pneg %p94
        %p408 = pneg %p118
        %p409 = pneg %p115
        %p410 = pneg %p139
        %p411 = pneg %p136
        %p412 = pneg %p160
        %p413 = pneg %p157
        %s414 = sand.u32 %s29, 1
        %s415 = scalar_lea.sflag [#allocation3], %s414
        %s416 = sand.u32 %s173, 1
        %s417 = smul.addr %s416, 64
        %s418 = scalar_lea.vmem [#allocation13], %s417
        %p419 = pneg %p186
        %p420 = pneg %p183
        %p421 = pneg %p212
        %p422 = pneg %p209
        %s423 = sand.u32 %s199, 1
        %s424 = scalar_lea.sflag [#allocation4], %s423
        %s425 = sand.u32 %s199, 1
        %s426 = smul.addr %s425, 64
        %s427 = scalar_lea.vmem [#allocation14], %s426
        %s428 = smul.u32 8, %s29
        %s429 = smul.u32 8, %s29
        %s430 = smul.u32 8, %s29
        %v431 = vld [vmem:[%s362] sm:$0xff]
        %v432 = vld [vmem:[%s362 + $0x8] sm:$0xff]
        %v433 = vld [vmem:[%s362 + $0x10] sm:$0xff]
        %v434 = vld [vmem:[%s362 + $0x18] sm:$0xff]
        %v435 = vld [vmem:[%s362 + $0x20] sm:$0xff]
        %v436 = vld [vmem:[%s362 + $0x28] sm:$0xff]
        %v437 = vld [vmem:[%s362 + $0x30] sm:$0xff]
        %v438 = vld [vmem:[%s362 + $0x38] sm:$0xff]
        %v439 = vld [vmem:[%s353] sm:$0xff]
        %v440 = vld [vmem:[%s353 + $0x8] sm:$0xff]
        %v441 = vld [vmem:[%s353 + $0x10] sm:$0xff]
        %v442 = vld [vmem:[%s353 + $0x18] sm:$0xff]
        %v443 = vld [vmem:[%s353 + $0x20] sm:$0xff]
        %v444 = vld [vmem:[%s353 + $0x28] sm:$0xff]
        %v445 = vld [vmem:[%s353 + $0x30] sm:$0xff]
        %v446 = vld [vmem:[%s353 + $0x38] sm:$0xff]
        %v447 = vld [vmem:[#allocation7] sm:$0xff]
        %v448 = vld [vmem:[#allocation7 + $0x8] sm:$0xff]
        %v449 = vld [vmem:[#allocation7 + $0x10] sm:$0xff]
        %v450 = vld [vmem:[#allocation7 + $0x18] sm:$0xff]
        %v451 = vld [vmem:[#allocation7 + $0x20] sm:$0xff]
        %v452 = vld [vmem:[#allocation7 + $0x28] sm:$0xff]
        %v453 = vld [vmem:[#allocation7 + $0x30] sm:$0xff]
        %v454 = vld [vmem:[#allocation7 + $0x38] sm:$0xff]
        %v455 = vld [vmem:[#allocation7 + $0x40] sm:$0xff]
        %v456 = vld [vmem:[#allocation7 + $0x48] sm:$0xff]
        %v457 = vld [vmem:[#allocation7 + $0x50] sm:$0xff]
        %v458 = vld [vmem:[#allocation7 + $0x58] sm:$0xff]
        %v459 = vld [vmem:[#allocation7 + $0x60] sm:$0xff]
        %v460 = vld [vmem:[#allocation7 + $0x68] sm:$0xff]
        %v461 = vld [vmem:[#allocation7 + $0x70] sm:$0xff]
        %v462 = vld [vmem:[#allocation7 + $0x78] sm:$0xff]
        %s463 = scalar_lea.vmem [#allocation7], 128
        %v464 = vld [vmem:[%s463] sm:$0xff]
        %v465 = vld [vmem:[%s463 + $0x8] sm:$0xff]
        %v466 = vld [vmem:[%s463 + $0x10] sm:$0xff]
        %v467 = vld [vmem:[%s463 + $0x18] sm:$0xff]
        %v468 = vld [vmem:[%s463 + $0x20] sm:$0xff]
        %v469 = vld [vmem:[%s463 + $0x28] sm:$0xff]
        %v470 = vld [vmem:[%s463 + $0x30] sm:$0xff]
        %v471 = vld [vmem:[%s463 + $0x38] sm:$0xff]
        %v472 = vld [vmem:[%s463 + $0x40] sm:$0xff]
        %v473 = vld [vmem:[%s463 + $0x48] sm:$0xff]
        %v474 = vld [vmem:[%s463 + $0x50] sm:$0xff]
        %v475 = vld [vmem:[%s463 + $0x58] sm:$0xff]
        %v476 = vld [vmem:[%s463 + $0x60] sm:$0xff]
        %v477 = vld [vmem:[%s463 + $0x68] sm:$0xff]
        %v478 = vld [vmem:[%s463 + $0x70] sm:$0xff]
        %v479 = vld [vmem:[%s463 + $0x78] sm:$0xff]
        %vm489 = vcmask 1046528
        %v490 = vrot.slane %v431, 1
        %v491 = vrot.slane %v432, 1
        %v492 = vsel %vm489, %v490, %v491
        %v493 = vrot.slane %v433, 1
        %v494 = vsel %vm489, %v491, %v493
        %v495 = vrot.slane %v434, 1
        %v496 = vsel %vm489, %v493, %v495
        %v497 = vrot.slane %v439, 1
        %v498 = vsel %vm489, %v495, %v497
        %v499 = vrot.slane %v440, 1
        %v500 = vsel %vm489, %v497, %v499
        %v501 = vrot.slane %v441, 1
        %v502 = vsel %vm489, %v499, %v501
        %v503 = vrot.slane %v442, 1
        %v504 = vsel %vm489, %v501, %v503
        %v505 = vrot.slane %v443, 1
        %v506 = vsel %vm489, %v503, %v505
        %515 = vmatprep.subr.mxu0 0.0
        %516 = vmatpush1.msra.mxu0 %v464
        %517 = vmatprep.subr.mxu0 0.0
        %518 = vmatpush1.msra.mxu0 %v465
        %519 = vmatprep.subr.mxu0 0.0
        %520 = vmatpush1.msra.mxu0 %v466
        %521 = vmatprep.subr.mxu0 0.0
        %522 = vmatpush1.msra.mxu0 %v467
        %523 = vmatprep.subr.mxu0 0.0
        %524 = vmatpush1.msra.mxu0 %v468
        %525 = vmatprep.subr.mxu0 0.0
        %526 = vmatpush1.msra.mxu0 %v469
        %527 = vmatprep.subr.mxu0 0.0
        %528 = vmatpush1.msra.mxu0 %v470
        %529 = vmatprep.subr.mxu0 0.0
        %530 = vmatpush1.msra.mxu0 %v471
        %531 = vmatprep.subr.mxu0 0.0
        %532 = vmatpush1.msra.mxu0 %v472
        %533 = vmatprep.subr.mxu0 0.0
        %534 = vmatpush1.msra.mxu0 %v473
        %535 = vmatprep.subr.mxu0 0.0
        %536 = vmatpush1.msra.mxu0 %v474
        %537 = vmatprep.subr.mxu0 0.0
        %538 = vmatpush1.msra.mxu0 %v475
        %539 = vmatprep.subr.mxu0 0.0
        %540 = vmatpush1.msra.mxu0 %v476
        %541 = vmatprep.subr.mxu0 0.0
        %542 = vmatpush1.msra.mxu0 %v477
        %543 = vmatprep.subr.mxu0 0.0
        %544 = vmatpush1.msra.mxu0 %v478
        %545 = vmatprep.subr.mxu0 0.0
        %546 = vmatpush1.msra.mxu0 %v479
        %547 = vmatprep.subr.mxu0 0.0
        %548 = vmatpush1.msra.mxu0 0.0
        %549 = vmatprep.subr.mxu0 0.0
        %550 = vmatpush1.msra.mxu0 0.0
        %551 = vmatprep.subr.mxu0 0.0
        %552 = vmatpush1.msra.mxu0 0.0
        %553 = vmatprep.subr.mxu0 0.0
        %554 = vmatpush1.msra.mxu0 0.0
        %555 = vmatprep.subr.mxu0 0.0
        %556 = vmatpush1.msra.mxu0 0.0
        %557 = vmatprep.subr.mxu0 0.0
        %558 = vmatpush1.msra.mxu0 0.0
        %559 = vmatprep.subr.mxu0 0.0
        %560 = vmatpush1.msra.mxu0 0.0
        %561 = vmatprep.subr.mxu0 0.0
        %562 = vmatpush1.msra.mxu0 0.0
        %563 = vmatprep.subr.mxu0 0.0
        %564 = vmatpush1.msra.mxu0 0.0
        %565 = vmatprep.subr.mxu0 0.0
        %566 = vmatpush1.msra.mxu0 0.0
        %567 = vmatprep.subr.mxu0 0.0
        %568 = vmatpush1.msra.mxu0 0.0
        %569 = vmatprep.subr.mxu0 0.0
        %570 = vmatpush1.msra.mxu0 0.0
        %571 = vmatprep.subr.mxu0 0.0
        %572 = vmatpush1.msra.mxu0 0.0
        %573 = vmatprep.subr.mxu0 0.0
        %574 = vmatpush1.msra.mxu0 0.0
        %575 = vmatprep.subr.mxu0 0.0
        %576 = vmatpush1.msra.mxu0 0.0
        %577 = vmatprep.subr.mxu0 0.0
        %578 = vmatpush1.msra.mxu0 0.0
        %579 = vmatprep.mubr.f32.mxu0 0.0
        %580 = vmatmul.mubr.f32.gmra.mrb[0].mxu0 %v492
        %v581 = vpop.f32.mrb[0].mxu0
        %v582 = vadd.f32 0.0, %v581
        %v583 = vpop.f32.mrb[0].mxu0
        %584 = vmatprep.mubr.f32.mxu0 0.0
        %585 = vmatmul.mubr.f32.gmra.mrb[0].mxu0 %v494
        %v586 = vpop.f32.mrb[0].mxu0
        %v587 = vadd.f32 0.0, %v586
        %v588 = vpop.f32.mrb[0].mxu0
        %589 = vmatprep.mubr.f32.mxu0 0.0
        %590 = vmatmul.mubr.f32.gmra.mrb[0].mxu0 %v496
        %v591 = vpop.f32.mrb[0].mxu0
        %v592 = vadd.f32 0.0, %v591
        %v593 = vpop.f32.mrb[0].mxu0
        %594 = vmatprep.mubr.f32.mxu0 0.0
        %595 = vmatmul.mubr.f32.gmra.mrb[0].mxu0 %v498
        %v596 = vpop.f32.mrb[0].mxu0
        %v597 = vadd.f32 0.0, %v596
        %v598 = vpop.f32.mrb[0].mxu0
        %599 = vmatprep.mubr.f32.mxu0 0.0
        %600 = vmatmul.mubr.f32.gmra.mrb[0].mxu0 %v500
        %v601 = vpop.f32.mrb[0].mxu0
        %v602 = vadd.f32 0.0, %v601
        %v603 = vpop.f32.mrb[0].mxu0
        %604 = vmatprep.mubr.f32.mxu0 0.0
        %605 = vmatmul.mubr.f32.gmra.mrb[0].mxu0 %v502
        %v606 = vpop.f32.mrb[0].mxu0
        %v607 = vadd.f32 0.0, %v606
        %v608 = vpop.f32.mrb[0].mxu0
        %609 = vmatprep.mubr.f32.mxu0 0.0
        %610 = vmatmul.mubr.f32.gmra.mrb[0].mxu0 %v504
        %v611 = vpop.f32.mrb[0].mxu0
        %v612 = vadd.f32 0.0, %v611
        %v613 = vpop.f32.mrb[0].mxu0
        %614 = vmatprep.mubr.f32.mxu0 0.0
        %615 = vmatmul.mubr.f32.gmra.mrb[0].mxu0 %v506
        %v616 = vpop.f32.mrb[0].mxu0
        %v617 = vadd.f32 0.0, %v616
        %v618 = vpop.f32.mrb[0].mxu0
        %619 = vdwg.mxu0
        %620 = vmatprep.subr.mxu0 0.0
        %621 = vmatpush1.msra.mxu0 %v447
        %622 = vmatprep.subr.mxu0 0.0
        %623 = vmatpush1.msra.mxu0 %v448
        %624 = vmatprep.subr.mxu0 0.0
        %625 = vmatpush1.msra.mxu0 %v449
        %626 = vmatprep.subr.mxu0 0.0
        %627 = vmatpush1.msra.mxu0 %v450
        %628 = vmatprep.subr.mxu0 0.0
        %629 = vmatpush1.msra.mxu0 %v451
        %630 = vmatprep.subr.mxu0 0.0
        %631 = vmatpush1.msra.mxu0 %v452
        %632 = vmatprep.subr.mxu0 0.0
        %633 = vmatpush1.msra.mxu0 %v453
        %634 = vmatprep.subr.mxu0 0.0
        %635 = vmatpush1.msra.mxu0 %v454
        %636 = vmatprep.subr.mxu0 0.0
        %637 = vmatpush1.msra.mxu0 %v455
        %638 = vmatprep.subr.mxu0 0.0
        %639 = vmatpush1.msra.mxu0 %v456
        %640 = vmatprep.subr.mxu0 0.0
        %641 = vmatpush1.msra.mxu0 %v457
        %642 = vmatprep.subr.mxu0 0.0
        %643 = vmatpush1.msra.mxu0 %v458
        %644 = vmatprep.subr.mxu0 0.0
        %645 = vmatpush1.msra.mxu0 %v459
        %646 = vmatprep.subr.mxu0 0.0
        %647 = vmatpush1.msra.mxu0 %v460
        %648 = vmatprep.subr.mxu0 0.0
        %649 = vmatpush1.msra.mxu0 %v461
        %650 = vmatprep.subr.mxu0 0.0
        %651 = vmatpush1.msra.mxu0 %v462
        %652 = vmatprep.subr.mxu0 0.0
        %653 = vmatpush1.msra.mxu0 0.0
        %654 = vmatprep.subr.mxu0 0.0
        %655 = vmatpush1.msra.mxu0 0.0
        %656 = vmatprep.subr.mxu0 0.0
        %657 = vmatpush1.msra.mxu0 0.0
        %658 = vmatprep.subr.mxu0 0.0
        %659 = vmatpush1.msra.mxu0 0.0
        %660 = vmatprep.subr.mxu0 0.0
        %661 = vmatpush1.msra.mxu0 0.0
        %662 = vmatprep.subr.mxu0 0.0
        %663 = vmatpush1.msra.mxu0 0.0
        %664 = vmatprep.subr.mxu0 0.0
        %665 = vmatpush1.msra.mxu0 0.0
        %666 = vmatprep.subr.mxu0 0.0
        %667 = vmatpush1.msra.mxu0 0.0
        %668 = vmatprep.subr.mxu0 0.0
        %669 = vmatpush1.msra.mxu0 0.0
        %670 = vmatprep.subr.mxu0 0.0
        %671 = vmatpush1.msra.mxu0 0.0
        %672 = vmatprep.subr.mxu0 0.0
        %673 = vmatpush1.msra.mxu0 0.0
        %674 = vmatprep.subr.mxu0 0.0
        %675 = vmatpush1.msra.mxu0 0.0
        %676 = vmatprep.subr.mxu0 0.0
        %677 = vmatpush1.msra.mxu0 0.0
        %678 = vmatprep.subr.mxu0 0.0
        %679 = vmatpush1.msra.mxu0 0.0
        %680 = vmatprep.subr.mxu0 0.0
        %681 = vmatpush1.msra.mxu0 0.0
        %682 = vmatprep.subr.mxu0 0.0
        %683 = vmatpush1.msra.mxu0 0.0
        %684 = vmatprep.mubr.f32.mxu0 0.0
        %685 = vmatmul.mubr.f32.gmra.mrb[0].mxu0 %v431
        %v686 = vpop.f32.mrb[0].mxu0
        %v687 = vadd.f32 %v582, %v686
        %v688 = vpop.f32.mrb[0].mxu0
        %689 = vmatprep.mubr.f32.mxu0 0.0
        %690 = vmatmul.mubr.f32.gmra.mrb[0].mxu0 %v432
        %v691 = vpop.f32.mrb[0].mxu0
        %v692 = vadd.f32 %v587, %v691
        %v693 = vpop.f32.mrb[0].mxu0
        %694 = vmatprep.mubr.f32.mxu0 0.0
        %695 = vmatmul.mubr.f32.gmra.mrb[0].mxu0 %v433
        %v696 = vpop.f32.mrb[0].mxu0
        %v697 = vadd.f32 %v592, %v696
        %v698 = vpop.f32.mrb[0].mxu0
        %699 = vmatprep.mubr.f32.mxu0 0.0
        %700 = vmatmul.mubr.f32.gmra.mrb[0].mxu0 %v434
        %v701 = vpop.f32.mrb[0].mxu0
        %v702 = vadd.f32 %v597, %v701
        %v703 = vpop.f32.mrb[0].mxu0
        %704 = vmatprep.mubr.f32.mxu0 0.0
        %705 = vmatmul.mubr.f32.gmra.mrb[0].mxu0 %v439
        %v706 = vpop.f32.mrb[0].mxu0
        %v707 = vadd.f32 %v602, %v706
        %v708 = vpop.f32.mrb[0].mxu0
        %709 = vmatprep.mubr.f32.mxu0 0.0
        %710 = vmatmul.mubr.f32.gmra.mrb[0].mxu0 %v440
        %v711 = vpop.f32.mrb[0].mxu0
        %v712 = vadd.f32 %v607, %v711
        %v713 = vpop.f32.mrb[0].mxu0
        %714 = vmatprep.mubr.f32.mxu0 0.0
        %715 = vmatmul.mubr.f32.gmra.mrb[0].mxu0 %v441
        %v716 = vpop.f32.mrb[0].mxu0
        %v717 = vadd.f32 %v612, %v716
        %v718 = vpop.f32.mrb[0].mxu0
        %719 = vmatprep.mubr.f32.mxu0 0.0
        %720 = vmatmul.mubr.f32.gmra.mrb[0].mxu0 %v442
        %v721 = vpop.f32.mrb[0].mxu0
        %v722 = vadd.f32 %v617, %v721
        %v723 = vpop.f32.mrb[0].mxu0
        %724 = vdwg.mxu0
        %s725 = scalar_lea.vmem [#allocation7], 256
        %v726 = vld [vmem:[%s725] sm:$0xff]
        %v727 = vld [vmem:[%s725 + $0x8] sm:$0xff]
        %v728 = vld [vmem:[%s725 + $0x10] sm:$0xff]
        %v729 = vld [vmem:[%s725 + $0x18] sm:$0xff]
        %v730 = vld [vmem:[%s725 + $0x20] sm:$0xff]
        %v731 = vld [vmem:[%s725 + $0x28] sm:$0xff]
        %v732 = vld [vmem:[%s725 + $0x30] sm:$0xff]
        %v733 = vld [vmem:[%s725 + $0x38] sm:$0xff]
        %v734 = vld [vmem:[%s725 + $0x40] sm:$0xff]
        %v735 = vld [vmem:[%s725 + $0x48] sm:$0xff]
        %v736 = vld [vmem:[%s725 + $0x50] sm:$0xff]
        %v737 = vld [vmem:[%s725 + $0x58] sm:$0xff]
        %v738 = vld [vmem:[%s725 + $0x60] sm:$0xff]
        %v739 = vld [vmem:[%s725 + $0x68] sm:$0xff]
        %v740 = vld [vmem:[%s725 + $0x70] sm:$0xff]
        %v741 = vld [vmem:[%s725 + $0x78] sm:$0xff]
        %vm742 = vcmask 1045504
        %v743 = vrot.slane %v431, 2
        %v744 = vrot.slane %v432, 2
        %v745 = vsel %vm742, %v743, %v744
        %v746 = vrot.slane %v433, 2
        %v747 = vsel %vm742, %v744, %v746
        %v748 = vrot.slane %v434, 2
        %v749 = vsel %vm742, %v746, %v748
        %v750 = vrot.slane %v439, 2
        %v751 = vsel %vm742, %v748, %v750
        %v752 = vrot.slane %v440, 2
        %v753 = vsel %vm742, %v750, %v752
        %v754 = vrot.slane %v441, 2
        %v755 = vsel %vm742, %v752, %v754
        %v756 = vrot.slane %v442, 2
        %v757 = vsel %vm742, %v754, %v756
        %v758 = vrot.slane %v443, 2
        %v759 = vsel %vm742, %v756, %v758
        %768 = vmatprep.subr.mxu0 0.0
        %769 = vmatpush1.msra.mxu0 %v726
        %770 = vmatprep.subr.mxu0 0.0
        %771 = vmatpush1.msra.mxu0 %v727
        %772 = vmatprep.subr.mxu0 0.0
        %773 = vmatpush1.msra.mxu0 %v728
        %774 = vmatprep.subr.mxu0 0.0
        %775 = vmatpush1.msra.mxu0 %v729
        %776 = vmatprep.subr.mxu0 0.0
        %777 = vmatpush1.msra.mxu0 %v730
        %778 = vmatprep.subr.mxu0 0.0
        %779 = vmatpush1.msra.mxu0 %v731
        %780 = vmatprep.subr.mxu0 0.0
        %781 = vmatpush1.msra.mxu0 %v732
        %782 = vmatprep.subr.mxu0 0.0
        %783 = vmatpush1.msra.mxu0 %v733
        %784 = vmatprep.subr.mxu0 0.0
        %785 = vmatpush1.msra.mxu0 %v734
        %786 = vmatprep.subr.mxu0 0.0
        %787 = vmatpush1.msra.mxu0 %v735
        %788 = vmatprep.subr.mxu0 0.0
        %789 = vmatpush1.msra.mxu0 %v736
        %790 = vmatprep.subr.mxu0 0.0
        %791 = vmatpush1.msra.mxu0 %v737
        %792 = vmatprep.subr.mxu0 0.0
        %793 = vmatpush1.msra.mxu0 %v738
        %794 = vmatprep.subr.mxu0 0.0
        %795 = vmatpush1.msra.mxu0 %v739
        %796 = vmatprep.subr.mxu0 0.0
        %797 = vmatpush1.msra.mxu0 %v740
        %798 = vmatprep.subr.mxu0 0.0
        %799 = vmatpush1.msra.mxu0 %v741
        %800 = vmatprep.subr.mxu0 0.0
        %801 = vmatpush1.msra.mxu0 0.0
        %802 = vmatprep.subr.mxu0 0.0
        %803 = vmatpush1.msra.mxu0 0.0
        %804 = vmatprep.subr.mxu0 0.0
        %805 = vmatpush1.msra.mxu0 0.0
        %806 = vmatprep.subr.mxu0 0.0
        %807 = vmatpush1.msra.mxu0 0.0
        %808 = vmatprep.subr.mxu0 0.0
        %809 = vmatpush1.msra.mxu0 0.0
        %810 = vmatprep.subr.mxu0 0.0
        %811 = vmatpush1.msra.mxu0 0.0
        %812 = vmatprep.subr.mxu0 0.0
        %813 = vmatpush1.msra.mxu0 0.0
        %814 = vmatprep.subr.mxu0 0.0
        %815 = vmatpush1.msra.mxu0 0.0
        %816 = vmatprep.subr.mxu0 0.0
        %817 = vmatpush1.msra.mxu0 0.0
        %818 = vmatprep.subr.mxu0 0.0
        %819 = vmatpush1.msra.mxu0 0.0
        %820 = vmatprep.subr.mxu0 0.0
        %821 = vmatpush1.msra.mxu0 0.0
        %822 = vmatprep.subr.mxu0 0.0
        %823 = vmatpush1.msra.mxu0 0.0
        %824 = vmatprep.subr.mxu0 0.0
        %825 = vmatpush1.msra.mxu0 0.0
        %826 = vmatprep.subr.mxu0 0.0
        %827 = vmatpush1.msra.mxu0 0.0
        %828 = vmatprep.subr.mxu0 0.0
        %829 = vmatpush1.msra.mxu0 0.0
        %830 = vmatprep.subr.mxu0 0.0
        %831 = vmatpush1.msra.mxu0 0.0
        %832 = vmatprep.mubr.f32.mxu0 0.0
        %833 = vmatmul.mubr.f32.gmra.mrb[0].mxu0 %v745
        %v834 = vpop.f32.mrb[0].mxu0
        %v835 = vadd.f32 0.0, %v834
        %v836 = vpop.f32.mrb[0].mxu0
        %837 = vmatprep.mubr.f32.mxu0 0.0
        %838 = vmatmul.mubr.f32.gmra.mrb[0].mxu0 %v747
        %v839 = vpop.f32.mrb[0].mxu0
        %v840 = vadd.f32 0.0, %v839
        %v841 = vpop.f32.mrb[0].mxu0
        %842 = vmatprep.mubr.f32.mxu0 0.0
        %843 = vmatmul.mubr.f32.gmra.mrb[0].mxu0 %v749
        %v844 = vpop.f32.mrb[0].mxu0
        %v845 = vadd.f32 0.0, %v844
        %v846 = vpop.f32.mrb[0].mxu0
        %847 = vmatprep.mubr.f32.mxu0 0.0
        %848 = vmatmul.mubr.f32.gmra.mrb[0].mxu0 %v751
        %v849 = vpop.f32.mrb[0].mxu0
        %v850 = vadd.f32 0.0, %v849
        %v851 = vpop.f32.mrb[0].mxu0
        %852 = vmatprep.mubr.f32.mxu0 0.0
        %853 = vmatmul.mubr.f32.gmra.mrb[0].mxu0 %v753
        %v854 = vpop.f32.mrb[0].mxu0
        %v855 = vadd.f32 0.0, %v854
        %v856 = vpop.f32.mrb[0].mxu0
        %857 = vmatprep.mubr.f32.mxu0 0.0
        %858 = vmatmul.mubr.f32.gmra.mrb[0].mxu0 %v755
        %v859 = vpop.f32.mrb[0].mxu0
        %v860 = vadd.f32 0.0, %v859
        %v861 = vpop.f32.mrb[0].mxu0
        %862 = vmatprep.mubr.f32.mxu0 0.0
        %863 = vmatmul.mubr.f32.gmra.mrb[0].mxu0 %v757
        %v864 = vpop.f32.mrb[0].mxu0
        %v865 = vadd.f32 0.0, %v864
        %v866 = vpop.f32.mrb[0].mxu0
        %867 = vmatprep.mubr.f32.mxu0 0.0
        %868 = vmatmul.mubr.f32.gmra.mrb[0].mxu0 %v759
        %v869 = vpop.f32.mrb[0].mxu0
        %v870 = vadd.f32 0.0, %v869
        %v871 = vpop.f32.mrb[0].mxu0
        %872 = vdwg.mxu0
        %v873 = vadd.f32 %v687, %v835
        %v874 = vadd.f32 %v692, %v840
        %v875 = vadd.f32 %v697, %v845
        %v876 = vadd.f32 %v702, %v850
        %v877 = vadd.f32 %v707, %v855
        %v878 = vadd.f32 %v712, %v860
        %v879 = vadd.f32 %v717, %v865
        %v880 = vadd.f32 %v722, %v870
        %s881 = scalar_lea.vmem [#allocation7], 384
        %v882 = vld [vmem:[%s881] sm:$0xff]
        %v883 = vld [vmem:[%s881 + $0x8] sm:$0xff]
        %v884 = vld [vmem:[%s881 + $0x10] sm:$0xff]
        %v885 = vld [vmem:[%s881 + $0x18] sm:$0xff]
        %v886 = vld [vmem:[%s881 + $0x20] sm:$0xff]
        %v887 = vld [vmem:[%s881 + $0x28] sm:$0xff]
        %v888 = vld [vmem:[%s881 + $0x30] sm:$0xff]
        %v889 = vld [vmem:[%s881 + $0x38] sm:$0xff]
        %v890 = vld [vmem:[%s881 + $0x40] sm:$0xff]
        %v891 = vld [vmem:[%s881 + $0x48] sm:$0xff]
        %v892 = vld [vmem:[%s881 + $0x50] sm:$0xff]
        %v893 = vld [vmem:[%s881 + $0x58] sm:$0xff]
        %v894 = vld [vmem:[%s881 + $0x60] sm:$0xff]
        %v895 = vld [vmem:[%s881 + $0x68] sm:$0xff]
        %v896 = vld [vmem:[%s881 + $0x70] sm:$0xff]
        %v897 = vld [vmem:[%s881 + $0x78] sm:$0xff]
        %898 = vmatprep.subr.mxu0 0.0
        %899 = vmatpush1.msra.mxu0 %v882
        %900 = vmatprep.subr.mxu0 0.0
        %901 = vmatpush1.msra.mxu0 %v883
        %902 = vmatprep.subr.mxu0 0.0
        %903 = vmatpush1.msra.mxu0 %v884
        %904 = vmatprep.subr.mxu0 0.0
        %905 = vmatpush1.msra.mxu0 %v885
        %906 = vmatprep.subr.mxu0 0.0
        %907 = vmatpush1.msra.mxu0 %v886
        %908 = vmatprep.subr.mxu0 0.0
        %909 = vmatpush1.msra.mxu0 %v887
        %910 = vmatprep.subr.mxu0 0.0
        %911 = vmatpush1.msra.mxu0 %v888
        %912 = vmatprep.subr.mxu0 0.0
        %913 = vmatpush1.msra.mxu0 %v889
        %914 = vmatprep.subr.mxu0 0.0
        %915 = vmatpush1.msra.mxu0 %v890
        %916 = vmatprep.subr.mxu0 0.0
        %917 = vmatpush1.msra.mxu0 %v891
        %918 = vmatprep.subr.mxu0 0.0
        %919 = vmatpush1.msra.mxu0 %v892
        %920 = vmatprep.subr.mxu0 0.0
        %921 = vmatpush1.msra.mxu0 %v893
        %922 = vmatprep.subr.mxu0 0.0
        %923 = vmatpush1.msra.mxu0 %v894
        %924 = vmatprep.subr.mxu0 0.0
        %925 = vmatpush1.msra.mxu0 %v895
        %926 = vmatprep.subr.mxu0 0.0
        %927 = vmatpush1.msra.mxu0 %v896
        %928 = vmatprep.subr.mxu0 0.0
        %929 = vmatpush1.msra.mxu0 %v897
        %930 = vmatprep.subr.mxu0 0.0
        %931 = vmatpush1.msra.mxu0 0.0
        %932 = vmatprep.subr.mxu0 0.0
        %933 = vmatpush1.msra.mxu0 0.0
        %934 = vmatprep.subr.mxu0 0.0
        %935 = vmatpush1.msra.mxu0 0.0
        %936 = vmatprep.subr.mxu0 0.0
        %937 = vmatpush1.msra.mxu0 0.0
        %938 = vmatprep.subr.mxu0 0.0
        %939 = vmatpush1.msra.mxu0 0.0
        %940 = vmatprep.subr.mxu0 0.0
        %941 = vmatpush1.msra.mxu0 0.0
        %942 = vmatprep.subr.mxu0 0.0
        %943 = vmatpush1.msra.mxu0 0.0
        %944 = vmatprep.subr.mxu0 0.0
        %945 = vmatpush1.msra.mxu0 0.0
        %946 = vmatprep.subr.mxu0 0.0
        %947 = vmatpush1.msra.mxu0 0.0
        %948 = vmatprep.subr.mxu0 0.0
        %949 = vmatpush1.msra.mxu0 0.0
        %950 = vmatprep.subr.mxu0 0.0
        %951 = vmatpush1.msra.mxu0 0.0
        %952 = vmatprep.subr.mxu0 0.0
        %953 = vmatpush1.msra.mxu0 0.0
        %954 = vmatprep.subr.mxu0 0.0
        %955 = vmatpush1.msra.mxu0 0.0
        %956 = vmatprep.subr.mxu0 0.0
        %957 = vmatpush1.msra.mxu0 0.0
        %958 = vmatprep.subr.mxu0 0.0
        %959 = vmatpush1.msra.mxu0 0.0
        %960 = vmatprep.subr.mxu0 0.0
        %961 = vmatpush1.msra.mxu0 0.0
        %962 = vmatprep.mubr.f32.mxu0 0.0
        %963 = vmatmul.mubr.f32.gmra.mrb[0].mxu0 %v439
        %v964 = vpop.f32.mrb[0].mxu0
        %v965 = vadd.f32 0.0, %v964
        %v966 = vpop.f32.mrb[0].mxu0
        %967 = vmatprep.mubr.f32.mxu0 0.0
        %968 = vmatmul.mubr.f32.gmra.mrb[0].mxu0 %v440
        %v969 = vpop.f32.mrb[0].mxu0
        %v970 = vadd.f32 0.0, %v969
        %v971 = vpop.f32.mrb[0].mxu0
        %972 = vmatprep.mubr.f32.mxu0 0.0
        %973 = vmatmul.mubr.f32.gmra.mrb[0].mxu0 %v441
        %v974 = vpop.f32.mrb[0].mxu0
        %v975 = vadd.f32 0.0, %v974
        %v976 = vpop.f32.mrb[0].mxu0
        %977 = vmatprep.mubr.f32.mxu0 0.0
        %978 = vmatmul.mubr.f32.gmra.mrb[0].mxu0 %v442
        %v979 = vpop.f32.mrb[0].mxu0
        %v980 = vadd.f32 0.0, %v979
        %v981 = vpop.f32.mrb[0].mxu0
        %982 = vmatprep.mubr.f32.mxu0 0.0
        %983 = vmatmul.mubr.f32.gmra.mrb[0].mxu0 %v443
        %v984 = vpop.f32.mrb[0].mxu0
        %v985 = vadd.f32 0.0, %v984
        %v986 = vpop.f32.mrb[0].mxu0
        %987 = vmatprep.mubr.f32.mxu0 0.0
        %988 = vmatmul.mubr.f32.gmra.mrb[0].mxu0 %v444
        %v989 = vpop.f32.mrb[0].mxu0
        %v990 = vadd.f32 0.0, %v989
        %v991 = vpop.f32.mrb[0].mxu0
        %992 = vmatprep.mubr.f32.mxu0 0.0
        %993 = vmatmul.mubr.f32.gmra.mrb[0].mxu0 %v445
        %v994 = vpop.f32.mrb[0].mxu0
        %v995 = vadd.f32 0.0, %v994
        %v996 = vpop.f32.mrb[0].mxu0
        %997 = vmatprep.mubr.f32.mxu0 0.0
        %998 = vmatmul.mubr.f32.gmra.mrb[0].mxu0 %v446
        %v999 = vpop.f32.mrb[0].mxu0
        %v1000 = vadd.f32 0.0, %v999
        %v1001 = vpop.f32.mrb[0].mxu0
        %1002 = vdwg.mxu0
        %v1003 = vadd.f32 %v873, %v965
        %v1004 = vadd.f32 %v874, %v970
        %v1005 = vadd.f32 %v875, %v975
        %v1006 = vadd.f32 %v876, %v980
        %v1007 = vadd.f32 %v877, %v985
        %v1008 = vadd.f32 %v878, %v990
        %v1009 = vadd.f32 %v879, %v995
        %v1010 = vadd.f32 %v880, %v1000
        %s1011 = scalar_lea.vmem [#allocation7], 512
        %v1012 = vld [vmem:[%s1011] sm:$0xff]
        %v1013 = vld [vmem:[%s1011 + $0x8] sm:$0xff]
        %v1014 = vld [vmem:[%s1011 + $0x10] sm:$0xff]
        %v1015 = vld [vmem:[%s1011 + $0x18] sm:$0xff]
        %v1016 = vld [vmem:[%s1011 + $0x20] sm:$0xff]
        %v1017 = vld [vmem:[%s1011 + $0x28] sm:$0xff]
        %v1018 = vld [vmem:[%s1011 + $0x30] sm:$0xff]
        %v1019 = vld [vmem:[%s1011 + $0x38] sm:$0xff]
        %v1020 = vld [vmem:[%s1011 + $0x40] sm:$0xff]
        %v1021 = vld [vmem:[%s1011 + $0x48] sm:$0xff]
        %v1022 = vld [vmem:[%s1011 + $0x50] sm:$0xff]
        %v1023 = vld [vmem:[%s1011 + $0x58] sm:$0xff]
        %v1024 = vld [vmem:[%s1011 + $0x60] sm:$0xff]
        %v1025 = vld [vmem:[%s1011 + $0x68] sm:$0xff]
        %v1026 = vld [vmem:[%s1011 + $0x70] sm:$0xff]
        %v1027 = vld [vmem:[%s1011 + $0x78] sm:$0xff]
        %v1032 = vrot.slane %v444, 1
        %v1033 = vsel %vm489, %v505, %v1032
        %v1034 = vrot.slane %v445, 1
        %v1035 = vsel %vm489, %v1032, %v1034
        %v1036 = vrot.slane %v446, 1
        %v1037 = vsel %vm489, %v1034, %v1036
        %v1038 = vrot.slane %v435, 1
        %v1039 = vsel %vm489, %v1036, %v1038
        %1044 = vmatprep.subr.mxu0 0.0
        %1045 = vmatpush1.msra.mxu0 %v1012
        %1046 = vmatprep.subr.mxu0 0.0
        %1047 = vmatpush1.msra.mxu0 %v1013
        %1048 = vmatprep.subr.mxu0 0.0
        %1049 = vmatpush1.msra.mxu0 %v1014
        %1050 = vmatprep.subr.mxu0 0.0
        %1051 = vmatpush1.msra.mxu0 %v1015
        %1052 = vmatprep.subr.mxu0 0.0
        %1053 = vmatpush1.msra.mxu0 %v1016
        %1054 = vmatprep.subr.mxu0 0.0
        %1055 = vmatpush1.msra.mxu0 %v1017
        %1056 = vmatprep.subr.mxu0 0.0
        %1057 = vmatpush1.msra.mxu0 %v1018
        %1058 = vmatprep.subr.mxu0 0.0
        %1059 = vmatpush1.msra.mxu0 %v1019
        %1060 = vmatprep.subr.mxu0 0.0
        %1061 = vmatpush1.msra.mxu0 %v1020
        %1062 = vmatprep.subr.mxu0 0.0
        %1063 = vmatpush1.msra.mxu0 %v1021
        %1064 = vmatprep.subr.mxu0 0.0
        %1065 = vmatpush1.msra.mxu0 %v1022
        %1066 = vmatprep.subr.mxu0 0.0
        %1067 = vmatpush1.msra.mxu0 %v1023
        %1068 = vmatprep.subr.mxu0 0.0
        %1069 = vmatpush1.msra.mxu0 %v1024
        %1070 = vmatprep.subr.mxu0 0.0
        %1071 = vmatpush1.msra.mxu0 %v1025
        %1072 = vmatprep.subr.mxu0 0.0
        %1073 = vmatpush1.msra.mxu0 %v1026
        %1074 = vmatprep.subr.mxu0 0.0
        %1075 = vmatpush1.msra.mxu0 %v1027
        %1076 = vmatprep.subr.mxu0 0.0
        %1077 = vmatpush1.msra.mxu0 0.0
        %1078 = vmatprep.subr.mxu0 0.0
        %1079 = vmatpush1.msra.mxu0 0.0
        %1080 = vmatprep.subr.mxu0 0.0
        %1081 = vmatpush1.msra.mxu0 0.0
        %1082 = vmatprep.subr.mxu0 0.0
        %1083 = vmatpush1.msra.mxu0 0.0
        %1084 = vmatprep.subr.mxu0 0.0
        %1085 = vmatpush1.msra.mxu0 0.0
        %1086 = vmatprep.subr.mxu0 0.0
        %1087 = vmatpush1.msra.mxu0 0.0
        %1088 = vmatprep.subr.mxu0 0.0
        %1089 = vmatpush1.msra.mxu0 0.0
        %1090 = vmatprep.subr.mxu0 0.0
        %1091 = vmatpush1.msra.mxu0 0.0
        %1092 = vmatprep.subr.mxu0 0.0
        %1093 = vmatpush1.msra.mxu0 0.0
        %1094 = vmatprep.subr.mxu0 0.0
        %1095 = vmatpush1.msra.mxu0 0.0
        %1096 = vmatprep.subr.mxu0 0.0
        %1097 = vmatpush1.msra.mxu0 0.0
        %1098 = vmatprep.subr.mxu0 0.0
        %1099 = vmatpush1.msra.mxu0 0.0
        %1100 = vmatprep.subr.mxu0 0.0
        %1101 = vmatpush1.msra.mxu0 0.0
        %1102 = vmatprep.subr.mxu0 0.0
        %1103 = vmatpush1.msra.mxu0 0.0
        %1104 = vmatprep.subr.mxu0 0.0
        %1105 = vmatpush1.msra.mxu0 0.0
        %1106 = vmatprep.subr.mxu0 0.0
        %1107 = vmatpush1.msra.mxu0 0.0
        %1108 = vmatprep.mubr.f32.mxu0 0.0
        %1109 = vmatmul.mubr.f32.gmra.mrb[0].mxu0 %v500
        %v1110 = vpop.f32.mrb[0].mxu0
        %v1111 = vadd.f32 0.0, %v1110
        %v1112 = vpop.f32.mrb[0].mxu0
        %1113 = vmatprep.mubr.f32.mxu0 0.0
        %1114 = vmatmul.mubr.f32.gmra.mrb[0].mxu0 %v502
        %v1115 = vpop.f32.mrb[0].mxu0
        %v1116 = vadd.f32 0.0, %v1115
        %v1117 = vpop.f32.mrb[0].mxu0
        %1118 = vmatprep.mubr.f32.mxu0 0.0
        %1119 = vmatmul.mubr.f32.gmra.mrb[0].mxu0 %v504
        %v1120 = vpop.f32.mrb[0].mxu0
        %v1121 = vadd.f32 0.0, %v1120
        %v1122 = vpop.f32.mrb[0].mxu0
        %1123 = vmatprep.mubr.f32.mxu0 0.0
        %1124 = vmatmul.mubr.f32.gmra.mrb[0].mxu0 %v506
        %v1125 = vpop.f32.mrb[0].mxu0
        %v1126 = vadd.f32 0.0, %v1125
        %v1127 = vpop.f32.mrb[0].mxu0
        %1128 = vmatprep.mubr.f32.mxu0 0.0
        %1129 = vmatmul.mubr.f32.gmra.mrb[0].mxu0 %v1033
        %v1130 = vpop.f32.mrb[0].mxu0
        %v1131 = vadd.f32 0.0, %v1130
        %v1132 = vpop.f32.mrb[0].mxu0
        %1133 = vmatprep.mubr.f32.mxu0 0.0
        %1134 = vmatmul.mubr.f32.gmra.mrb[0].mxu0 %v1035
        %v1135 = vpop.f32.mrb[0].mxu0
        %v1136 = vadd.f32 0.0, %v1135
        %v1137 = vpop.f32.mrb[0].mxu0
        %1138 = vmatprep.mubr.f32.mxu0 0.0
        %1139 = vmatmul.mubr.f32.gmra.mrb[0].mxu0 %v1037
        %v1140 = vpop.f32.mrb[0].mxu0
        %v1141 = vadd.f32 0.0, %v1140
        %v1142 = vpop.f32.mrb[0].mxu0
        %1143 = vmatprep.mubr.f32.mxu0 0.0
        %1144 = vmatmul.mubr.f32.gmra.mrb[0].mxu0 %v1039
        %v1145 = vpop.f32.mrb[0].mxu0
        %v1146 = vadd.f32 0.0, %v1145
        %v1147 = vpop.f32.mrb[0].mxu0
        %1148 = vdwg.mxu0
        %v1149 = vadd.f32 %v1003, %v1111
        %v1150 = vadd.f32 %v1004, %v1116
        %v1151 = vadd.f32 %v1005, %v1121
        %v1152 = vadd.f32 %v1006, %v1126
        %v1153 = vadd.f32 %v1007, %v1131
        %v1154 = vadd.f32 %v1008, %v1136
        %v1155 = vadd.f32 %v1009, %v1141
        %v1156 = vadd.f32 %v1010, %v1146
        %s1157 = scalar_lea.vmem [#allocation7], 640
        %v1158 = vld [vmem:[%s1157] sm:$0xff]
        %v1159 = vld [vmem:[%s1157 + $0x8] sm:$0xff]
        %v1160 = vld [vmem:[%s1157 + $0x10] sm:$0xff]
        %v1161 = vld [vmem:[%s1157 + $0x18] sm:$0xff]
        %v1162 = vld [vmem:[%s1157 + $0x20] sm:$0xff]
        %v1163 = vld [vmem:[%s1157 + $0x28] sm:$0xff]
        %v1164 = vld [vmem:[%s1157 + $0x30] sm:$0xff]
        %v1165 = vld [vmem:[%s1157 + $0x38] sm:$0xff]
        %v1166 = vld [vmem:[%s1157 + $0x40] sm:$0xff]
        %v1167 = vld [vmem:[%s1157 + $0x48] sm:$0xff]
        %v1168 = vld [vmem:[%s1157 + $0x50] sm:$0xff]
        %v1169 = vld [vmem:[%s1157 + $0x58] sm:$0xff]
        %v1170 = vld [vmem:[%s1157 + $0x60] sm:$0xff]
        %v1171 = vld [vmem:[%s1157 + $0x68] sm:$0xff]
        %v1172 = vld [vmem:[%s1157 + $0x70] sm:$0xff]
        %v1173 = vld [vmem:[%s1157 + $0x78] sm:$0xff]
        %v1174 = vrot.slane %v444, 2
        %v1175 = vsel %vm742, %v758, %v1174
        %v1176 = vrot.slane %v445, 2
        %v1177 = vsel %vm742, %v1174, %v1176
        %v1178 = vrot.slane %v446, 2
        %v1179 = vsel %vm742, %v1176, %v1178
        %v1180 = vrot.slane %v435, 2
        %v1181 = vsel %vm742, %v1178, %v1180
        %1186 = vmatprep.subr.mxu0 0.0
        %1187 = vmatpush1.msra.mxu0 %v1158
        %1188 = vmatprep.subr.mxu0 0.0
        %1189 = vmatpush1.msra.mxu0 %v1159
        %1190 = vmatprep.subr.mxu0 0.0
        %1191 = vmatpush1.msra.mxu0 %v1160
        %1192 = vmatprep.subr.mxu0 0.0
        %1193 = vmatpush1.msra.mxu0 %v1161
        %1194 = vmatprep.subr.mxu0 0.0
        %1195 = vmatpush1.msra.mxu0 %v1162
        %1196 = vmatprep.subr.mxu0 0.0
        %1197 = vmatpush1.msra.mxu0 %v1163
        %1198 = vmatprep.subr.mxu0 0.0
        %1199 = vmatpush1.msra.mxu0 %v1164
        %1200 = vmatprep.subr.mxu0 0.0
        %1201 = vmatpush1.msra.mxu0 %v1165
        %1202 = vmatprep.subr.mxu0 0.0
        %1203 = vmatpush1.msra.mxu0 %v1166
        %1204 = vmatprep.subr.mxu0 0.0
        %1205 = vmatpush1.msra.mxu0 %v1167
        %1206 = vmatprep.subr.mxu0 0.0
        %1207 = vmatpush1.msra.mxu0 %v1168
        %1208 = vmatprep.subr.mxu0 0.0
        %1209 = vmatpush1.msra.mxu0 %v1169
        %1210 = vmatprep.subr.mxu0 0.0
        %1211 = vmatpush1.msra.mxu0 %v1170
        %1212 = vmatprep.subr.mxu0 0.0
        %1213 = vmatpush1.msra.mxu0 %v1171
        %1214 = vmatprep.subr.mxu0 0.0
        %1215 = vmatpush1.msra.mxu0 %v1172
        %1216 = vmatprep.subr.mxu0 0.0
        %1217 = vmatpush1.msra.mxu0 %v1173
        %1218 = vmatprep.subr.mxu0 0.0
        %1219 = vmatpush1.msra.mxu0 0.0
        %1220 = vmatprep.subr.mxu0 0.0
        %1221 = vmatpush1.msra.mxu0 0.0
        %1222 = vmatprep.subr.mxu0 0.0
        %1223 = vmatpush1.msra.mxu0 0.0
        %1224 = vmatprep.subr.mxu0 0.0
        %1225 = vmatpush1.msra.mxu0 0.0
        %1226 = vmatprep.subr.mxu0 0.0
        %1227 = vmatpush1.msra.mxu0 0.0
        %1228 = vmatprep.subr.mxu0 0.0
        %1229 = vmatpush1.msra.mxu0 0.0
        %1230 = vmatprep.subr.mxu0 0.0
        %1231 = vmatpush1.msra.mxu0 0.0
        %1232 = vmatprep.subr.mxu0 0.0
        %1233 = vmatpush1.msra.mxu0 0.0
        %1234 = vmatprep.subr.mxu0 0.0
        %1235 = vmatpush1.msra.mxu0 0.0
        %1236 = vmatprep.subr.mxu0 0.0
        %1237 = vmatpush1.msra.mxu0 0.0
        %1238 = vmatprep.subr.mxu0 0.0
        %1239 = vmatpush1.msra.mxu0 0.0
        %1240 = vmatprep.subr.mxu0 0.0
        %1241 = vmatpush1.msra.mxu0 0.0
        %1242 = vmatprep.subr.mxu0 0.0
        %1243 = vmatpush1.msra.mxu0 0.0
        %1244 = vmatprep.subr.mxu0 0.0
        %1245 = vmatpush1.msra.mxu0 0.0
        %1246 = vmatprep.subr.mxu0 0.0
        %1247 = vmatpush1.msra.mxu0 0.0
        %1248 = vmatprep.subr.mxu0 0.0
        %1249 = vmatpush1.msra.mxu0 0.0
        %1250 = vmatprep.mubr.f32.mxu0 0.0
        %1251 = vmatmul.mubr.f32.gmra.mrb[0].mxu0 %v753
        %v1252 = vpop.f32.mrb[0].mxu0
        %v1253 = vadd.f32 0.0, %v1252
        %v1254 = vpop.f32.mrb[0].mxu0
        %1255 = vmatprep.mubr.f32.mxu0 0.0
        %1256 = vmatmul.mubr.f32.gmra.mrb[0].mxu0 %v755
        %v1257 = vpop.f32.mrb[0].mxu0
        %v1258 = vadd.f32 0.0, %v1257
        %v1259 = vpop.f32.mrb[0].mxu0
        %1260 = vmatprep.mubr.f32.mxu0 0.0
        %1261 = vmatmul.mubr.f32.gmra.mrb[0].mxu0 %v757
        %v1262 = vpop.f32.mrb[0].mxu0
        %v1263 = vadd.f32 0.0, %v1262
        %v1264 = vpop.f32.mrb[0].mxu0
        %1265 = vmatprep.mubr.f32.mxu0 0.0
        %1266 = vmatmul.mubr.f32.gmra.mrb[0].mxu0 %v759
        %v1267 = vpop.f32.mrb[0].mxu0
        %v1268 = vadd.f32 0.0, %v1267
        %v1269 = vpop.f32.mrb[0].mxu0
        %1270 = vmatprep.mubr.f32.mxu0 0.0
        %1271 = vmatmul.mubr.f32.gmra.mrb[0].mxu0 %v1175
        %v1272 = vpop.f32.mrb[0].mxu0
        %v1273 = vadd.f32 0.0, %v1272
        %v1274 = vpop.f32.mrb[0].mxu0
        %1275 = vmatprep.mubr.f32.mxu0 0.0
        %1276 = vmatmul.mubr.f32.gmra.mrb[0].mxu0 %v1177
        %v1277 = vpop.f32.mrb[0].mxu0
        %v1278 = vadd.f32 0.0, %v1277
        %v1279 = vpop.f32.mrb[0].mxu0
        %1280 = vmatprep.mubr.f32.mxu0 0.0
        %1281 = vmatmul.mubr.f32.gmra.mrb[0].mxu0 %v1179
        %v1282 = vpop.f32.mrb[0].mxu0
        %v1283 = vadd.f32 0.0, %v1282
        %v1284 = vpop.f32.mrb[0].mxu0
        %1285 = vmatprep.mubr.f32.mxu0 0.0
        %1286 = vmatmul.mubr.f32.gmra.mrb[0].mxu0 %v1181
        %v1287 = vpop.f32.mrb[0].mxu0
        %v1288 = vadd.f32 0.0, %v1287
        %v1289 = vpop.f32.mrb[0].mxu0
        %1290 = vdwg.mxu0
        %v1291 = vadd.f32 %v1149, %v1253
        %v1292 = vadd.f32 %v1150, %v1258
        %v1293 = vadd.f32 %v1151, %v1263
        %v1294 = vadd.f32 %v1152, %v1268
        %v1295 = vadd.f32 %v1153, %v1273
        %v1296 = vadd.f32 %v1154, %v1278
        %v1297 = vadd.f32 %v1155, %v1283
        %v1298 = vadd.f32 %v1156, %v1288
        %s1299 = scalar_lea.vmem [#allocation7], 768
        %v1300 = vld [vmem:[%s1299] sm:$0xff]
        %v1301 = vld [vmem:[%s1299 + $0x8] sm:$0xff]
        %v1302 = vld [vmem:[%s1299 + $0x10] sm:$0xff]
        %v1303 = vld [vmem:[%s1299 + $0x18] sm:$0xff]
        %v1304 = vld [vmem:[%s1299 + $0x20] sm:$0xff]
        %v1305 = vld [vmem:[%s1299 + $0x28] sm:$0xff]
        %v1306 = vld [vmem:[%s1299 + $0x30] sm:$0xff]
        %v1307 = vld [vmem:[%s1299 + $0x38] sm:$0xff]
        %v1308 = vld [vmem:[%s1299 + $0x40] sm:$0xff]
        %v1309 = vld [vmem:[%s1299 + $0x48] sm:$0xff]
        %v1310 = vld [vmem:[%s1299 + $0x50] sm:$0xff]
        %v1311 = vld [vmem:[%s1299 + $0x58] sm:$0xff]
        %v1312 = vld [vmem:[%s1299 + $0x60] sm:$0xff]
        %v1313 = vld [vmem:[%s1299 + $0x68] sm:$0xff]
        %v1314 = vld [vmem:[%s1299 + $0x70] sm:$0xff]
        %v1315 = vld [vmem:[%s1299 + $0x78] sm:$0xff]
        %1316 = vmatprep.subr.mxu0 0.0
        %1317 = vmatpush1.msra.mxu0 %v1300
        %1318 = vmatprep.subr.mxu0 0.0
        %1319 = vmatpush1.msra.mxu0 %v1301
        %1320 = vmatprep.subr.mxu0 0.0
        %1321 = vmatpush1.msra.mxu0 %v1302
        %1322 = vmatprep.subr.mxu0 0.0
        %1323 = vmatpush1.msra.mxu0 %v1303
        %1324 = vmatprep.subr.mxu0 0.0
        %1325 = vmatpush1.msra.mxu0 %v1304
        %1326 = vmatprep.subr.mxu0 0.0
        %1327 = vmatpush1.msra.mxu0 %v1305
        %1328 = vmatprep.subr.mxu0 0.0
        %1329 = vmatpush1.msra.mxu0 %v1306
        %1330 = vmatprep.subr.mxu0 0.0
        %1331 = vmatpush1.msra.mxu0 %v1307
        %1332 = vmatprep.subr.mxu0 0.0
        %1333 = vmatpush1.msra.mxu0 %v1308
        %1334 = vmatprep.subr.mxu0 0.0
        %1335 = vmatpush1.msra.mxu0 %v1309
        %1336 = vmatprep.subr.mxu0 0.0
        %1337 = vmatpush1.msra.mxu0 %v1310
        %1338 = vmatprep.subr.mxu0 0.0
        %1339 = vmatpush1.msra.mxu0 %v1311
        %1340 = vmatprep.subr.mxu0 0.0
        %1341 = vmatpush1.msra.mxu0 %v1312
        %1342 = vmatprep.subr.mxu0 0.0
        %1343 = vmatpush1.msra.mxu0 %v1313
        %1344 = vmatprep.subr.mxu0 0.0
        %1345 = vmatpush1.msra.mxu0 %v1314
        %1346 = vmatprep.subr.mxu0 0.0
        %1347 = vmatpush1.msra.mxu0 %v1315
        %1348 = vmatprep.subr.mxu0 0.0
        %1349 = vmatpush1.msra.mxu0 0.0
        %1350 = vmatprep.subr.mxu0 0.0
        %1351 = vmatpush1.msra.mxu0 0.0
        %1352 = vmatprep.subr.mxu0 0.0
        %1353 = vmatpush1.msra.mxu0 0.0
        %1354 = vmatprep.subr.mxu0 0.0
        %1355 = vmatpush1.msra.mxu0 0.0
        %1356 = vmatprep.subr.mxu0 0.0
        %1357 = vmatpush1.msra.mxu0 0.0
        %1358 = vmatprep.subr.mxu0 0.0
        %1359 = vmatpush1.msra.mxu0 0.0
        %1360 = vmatprep.subr.mxu0 0.0
        %1361 = vmatpush1.msra.mxu0 0.0
        %1362 = vmatprep.subr.mxu0 0.0
        %1363 = vmatpush1.msra.mxu0 0.0
        %1364 = vmatprep.subr.mxu0 0.0
        %1365 = vmatpush1.msra.mxu0 0.0
        %1366 = vmatprep.subr.mxu0 0.0
        %1367 = vmatpush1.msra.mxu0 0.0
        %1368 = vmatprep.subr.mxu0 0.0
        %1369 = vmatpush1.msra.mxu0 0.0
        %1370 = vmatprep.subr.mxu0 0.0
        %1371 = vmatpush1.msra.mxu0 0.0
        %1372 = vmatprep.subr.mxu0 0.0
        %1373 = vmatpush1.msra.mxu0 0.0
        %1374 = vmatprep.subr.mxu0 0.0
        %1375 = vmatpush1.msra.mxu0 0.0
        %1376 = vmatprep.subr.mxu0 0.0
        %1377 = vmatpush1.msra.mxu0 0.0
        %1378 = vmatprep.subr.mxu0 0.0
        %1379 = vmatpush1.msra.mxu0 0.0
        %1380 = vmatprep.mubr.f32.mxu0 0.0
        %1381 = vmatmul.mubr.f32.gmra.mrb[0].mxu0 %v443
        %v1382 = vpop.f32.mrb[0].mxu0
        %v1383 = vadd.f32 0.0, %v1382
        %v1384 = vpop.f32.mrb[0].mxu0
        %1385 = vmatprep.mubr.f32.mxu0 0.0
        %1386 = vmatmul.mubr.f32.gmra.mrb[0].mxu0 %v444
        %v1387 = vpop.f32.mrb[0].mxu0
        %v1388 = vadd.f32 0.0, %v1387
        %v1389 = vpop.f32.mrb[0].mxu0
        %1390 = vmatprep.mubr.f32.mxu0 0.0
        %1391 = vmatmul.mubr.f32.gmra.mrb[0].mxu0 %v445
        %v1392 = vpop.f32.mrb[0].mxu0
        %v1393 = vadd.f32 0.0, %v1392
        %v1394 = vpop.f32.mrb[0].mxu0
        %1395 = vmatprep.mubr.f32.mxu0 0.0
        %1396 = vmatmul.mubr.f32.gmra.mrb[0].mxu0 %v446
        %v1397 = vpop.f32.mrb[0].mxu0
        %v1398 = vadd.f32 0.0, %v1397
        %v1399 = vpop.f32.mrb[0].mxu0
        %1400 = vmatprep.mubr.f32.mxu0 0.0
        %1401 = vmatmul.mubr.f32.gmra.mrb[0].mxu0 %v435
        %v1402 = vpop.f32.mrb[0].mxu0
        %v1403 = vadd.f32 0.0, %v1402
        %v1404 = vpop.f32.mrb[0].mxu0
        %1405 = vmatprep.mubr.f32.mxu0 0.0
        %1406 = vmatmul.mubr.f32.gmra.mrb[0].mxu0 %v436
        %v1407 = vpop.f32.mrb[0].mxu0
        %v1408 = vadd.f32 0.0, %v1407
        %v1409 = vpop.f32.mrb[0].mxu0
        %1410 = vmatprep.mubr.f32.mxu0 0.0
        %1411 = vmatmul.mubr.f32.gmra.mrb[0].mxu0 %v437
        %v1412 = vpop.f32.mrb[0].mxu0
        %v1413 = vadd.f32 0.0, %v1412
        %v1414 = vpop.f32.mrb[0].mxu0
        %1415 = vmatprep.mubr.f32.mxu0 0.0
        %1416 = vmatmul.mubr.f32.gmra.mrb[0].mxu0 %v438
        %v1417 = vpop.f32.mrb[0].mxu0
        %v1418 = vadd.f32 0.0, %v1417
        %v1419 = vpop.f32.mrb[0].mxu0
        %1420 = vdwg.mxu0
        %v1421 = vadd.f32 %v1291, %v1383
        %v1422 = vadd.f32 %v1292, %v1388
        %v1423 = vadd.f32 %v1293, %v1393
        %v1424 = vadd.f32 %v1294, %v1398
        %v1425 = vadd.f32 %v1295, %v1403
        %v1426 = vadd.f32 %v1296, %v1408
        %v1427 = vadd.f32 %v1297, %v1413
        %v1428 = vadd.f32 %v1298, %v1418
        %s1429 = scalar_lea.vmem [#allocation7], 896
        %v1430 = vld [vmem:[%s1429] sm:$0xff]
        %v1431 = vld [vmem:[%s1429 + $0x8] sm:$0xff]
        %v1432 = vld [vmem:[%s1429 + $0x10] sm:$0xff]
        %v1433 = vld [vmem:[%s1429 + $0x18] sm:$0xff]
        %v1434 = vld [vmem:[%s1429 + $0x20] sm:$0xff]
        %v1435 = vld [vmem:[%s1429 + $0x28] sm:$0xff]
        %v1436 = vld [vmem:[%s1429 + $0x30] sm:$0xff]
        %v1437 = vld [vmem:[%s1429 + $0x38] sm:$0xff]
        %v1438 = vld [vmem:[%s1429 + $0x40] sm:$0xff]
        %v1439 = vld [vmem:[%s1429 + $0x48] sm:$0xff]
        %v1440 = vld [vmem:[%s1429 + $0x50] sm:$0xff]
        %v1441 = vld [vmem:[%s1429 + $0x58] sm:$0xff]
        %v1442 = vld [vmem:[%s1429 + $0x60] sm:$0xff]
        %v1443 = vld [vmem:[%s1429 + $0x68] sm:$0xff]
        %v1444 = vld [vmem:[%s1429 + $0x70] sm:$0xff]
        %v1445 = vld [vmem:[%s1429 + $0x78] sm:$0xff]
        %v1450 = vrot.slane %v436, 1
        %v1451 = vsel %vm489, %v1038, %v1450
        %v1452 = vrot.slane %v437, 1
        %v1453 = vsel %vm489, %v1450, %v1452
        %v1454 = vrot.slane %v438, 1
        %v1455 = vsel %vm489, %v1452, %v1454
        %v1456 = vrot.slane 0.0, 1
        %v1457 = vsel %vm489, %v1454, %v1456
        %1462 = vmatprep.subr.mxu0 0.0
        %1463 = vmatpush1.msra.mxu0 %v1430
        %1464 = vmatprep.subr.mxu0 0.0
        %1465 = vmatpush1.msra.mxu0 %v1431
        %1466 = vmatprep.subr.mxu0 0.0
        %1467 = vmatpush1.msra.mxu0 %v1432
        %1468 = vmatprep.subr.mxu0 0.0
        %1469 = vmatpush1.msra.mxu0 %v1433
        %1470 = vmatprep.subr.mxu0 0.0
        %1471 = vmatpush1.msra.mxu0 %v1434
        %1472 = vmatprep.subr.mxu0 0.0
        %1473 = vmatpush1.msra.mxu0 %v1435
        %1474 = vmatprep.subr.mxu0 0.0
        %1475 = vmatpush1.msra.mxu0 %v1436
        %1476 = vmatprep.subr.mxu0 0.0
        %1477 = vmatpush1.msra.mxu0 %v1437
        %1478 = vmatprep.subr.mxu0 0.0
        %1479 = vmatpush1.msra.mxu0 %v1438
        %1480 = vmatprep.subr.mxu0 0.0
        %1481 = vmatpush1.msra.mxu0 %v1439
        %1482 = vmatprep.subr.mxu0 0.0
        %1483 = vmatpush1.msra.mxu0 %v1440
        %1484 = vmatprep.subr.mxu0 0.0
        %1485 = vmatpush1.msra.mxu0 %v1441
        %1486 = vmatprep.subr.mxu0 0.0
        %1487 = vmatpush1.msra.mxu0 %v1442
        %1488 = vmatprep.subr.mxu0 0.0
        %1489 = vmatpush1.msra.mxu0 %v1443
        %1490 = vmatprep.subr.mxu0 0.0
        %1491 = vmatpush1.msra.mxu0 %v1444
        %1492 = vmatprep.subr.mxu0 0.0
        %1493 = vmatpush1.msra.mxu0 %v1445
        %1494 = vmatprep.subr.mxu0 0.0
        %1495 = vmatpush1.msra.mxu0 0.0
        %1496 = vmatprep.subr.mxu0 0.0
        %1497 = vmatpush1.msra.mxu0 0.0
        %1498 = vmatprep.subr.mxu0 0.0
        %1499 = vmatpush1.msra.mxu0 0.0
        %1500 = vmatprep.subr.mxu0 0.0
        %1501 = vmatpush1.msra.mxu0 0.0
        %1502 = vmatprep.subr.mxu0 0.0
        %1503 = vmatpush1.msra.mxu0 0.0
        %1504 = vmatprep.subr.mxu0 0.0
        %1505 = vmatpush1.msra.mxu0 0.0
        %1506 = vmatprep.subr.mxu0 0.0
        %1507 = vmatpush1.msra.mxu0 0.0
        %1508 = vmatprep.subr.mxu0 0.0
        %1509 = vmatpush1.msra.mxu0 0.0
        %1510 = vmatprep.subr.mxu0 0.0
        %1511 = vmatpush1.msra.mxu0 0.0
        %1512 = vmatprep.subr.mxu0 0.0
        %1513 = vmatpush1.msra.mxu0 0.0
        %1514 = vmatprep.subr.mxu0 0.0
        %1515 = vmatpush1.msra.mxu0 0.0
        %1516 = vmatprep.subr.mxu0 0.0
        %1517 = vmatpush1.msra.mxu0 0.0
        %1518 = vmatprep.subr.mxu0 0.0
        %1519 = vmatpush1.msra.mxu0 0.0
        %1520 = vmatprep.subr.mxu0 0.0
        %1521 = vmatpush1.msra.mxu0 0.0
        %1522 = vmatprep.subr.mxu0 0.0
        %1523 = vmatpush1.msra.mxu0 0.0
        %1524 = vmatprep.subr.mxu0 0.0
        %1525 = vmatpush1.msra.mxu0 0.0
        %1526 = vmatprep.mubr.f32.mxu0 0.0
        %1527 = vmatmul.mubr.f32.gmra.mrb[0].mxu0 %v1033
        %v1528 = vpop.f32.mrb[0].mxu0
        %v1529 = vadd.f32 0.0, %v1528
        %v1530 = vpop.f32.mrb[0].mxu0
        %1531 = vmatprep.mubr.f32.mxu0 0.0
        %1532 = vmatmul.mubr.f32.gmra.mrb[0].mxu0 %v1035
        %v1533 = vpop.f32.mrb[0].mxu0
        %v1534 = vadd.f32 0.0, %v1533
        %v1535 = vpop.f32.mrb[0].mxu0
        %1536 = vmatprep.mubr.f32.mxu0 0.0
        %1537 = vmatmul.mubr.f32.gmra.mrb[0].mxu0 %v1037
        %v1538 = vpop.f32.mrb[0].mxu0
        %v1539 = vadd.f32 0.0, %v1538
        %v1540 = vpop.f32.mrb[0].mxu0
        %1541 = vmatprep.mubr.f32.mxu0 0.0
        %1542 = vmatmul.mubr.f32.gmra.mrb[0].mxu0 %v1039
        %v1543 = vpop.f32.mrb[0].mxu0
        %v1544 = vadd.f32 0.0, %v1543
        %v1545 = vpop.f32.mrb[0].mxu0
        %1546 = vmatprep.mubr.f32.mxu0 0.0
        %1547 = vmatmul.mubr.f32.gmra.mrb[0].mxu0 %v1451
        %v1548 = vpop.f32.mrb[0].mxu0
        %v1549 = vadd.f32 0.0, %v1548
        %v1550 = vpop.f32.mrb[0].mxu0
        %1551 = vmatprep.mubr.f32.mxu0 0.0
        %1552 = vmatmul.mubr.f32.gmra.mrb[0].mxu0 %v1453
        %v1553 = vpop.f32.mrb[0].mxu0
        %v1554 = vadd.f32 0.0, %v1553
        %v1555 = vpop.f32.mrb[0].mxu0
        %1556 = vmatprep.mubr.f32.mxu0 0.0
        %1557 = vmatmul.mubr.f32.gmra.mrb[0].mxu0 %v1455
        %v1558 = vpop.f32.mrb[0].mxu0
        %v1559 = vadd.f32 0.0, %v1558
        %v1560 = vpop.f32.mrb[0].mxu0
        %1561 = vmatprep.mubr.f32.mxu0 0.0
        %1562 = vmatmul.mubr.f32.gmra.mrb[0].mxu0 %v1457
        %v1563 = vpop.f32.mrb[0].mxu0
        %v1564 = vadd.f32 0.0, %v1563
        %v1565 = vpop.f32.mrb[0].mxu0
        %1566 = vdwg.mxu0
        %v1567 = vadd.f32 %v1421, %v1529
        %v1568 = vadd.f32 %v1422, %v1534
        %v1569 = vadd.f32 %v1423, %v1539
        %v1570 = vadd.f32 %v1424, %v1544
        %v1571 = vadd.f32 %v1425, %v1549
        %v1572 = vadd.f32 %v1426, %v1554
        %v1573 = vadd.f32 %v1427, %v1559
        %v1574 = vadd.f32 %v1428, %v1564
        %s1575 = scalar_lea.vmem [#allocation7], 1024
        %v1576 = vld [vmem:[%s1575] sm:$0xff]
        %v1577 = vld [vmem:[%s1575 + $0x8] sm:$0xff]
        %v1578 = vld [vmem:[%s1575 + $0x10] sm:$0xff]
        %v1579 = vld [vmem:[%s1575 + $0x18] sm:$0xff]
        %v1580 = vld [vmem:[%s1575 + $0x20] sm:$0xff]
        %v1581 = vld [vmem:[%s1575 + $0x28] sm:$0xff]
        %v1582 = vld [vmem:[%s1575 + $0x30] sm:$0xff]
        %v1583 = vld [vmem:[%s1575 + $0x38] sm:$0xff]
        %v1584 = vld [vmem:[%s1575 + $0x40] sm:$0xff]
        %v1585 = vld [vmem:[%s1575 + $0x48] sm:$0xff]
        %v1586 = vld [vmem:[%s1575 + $0x50] sm:$0xff]
        %v1587 = vld [vmem:[%s1575 + $0x58] sm:$0xff]
        %v1588 = vld [vmem:[%s1575 + $0x60] sm:$0xff]
        %v1589 = vld [vmem:[%s1575 + $0x68] sm:$0xff]
        %v1590 = vld [vmem:[%s1575 + $0x70] sm:$0xff]
        %v1591 = vld [vmem:[%s1575 + $0x78] sm:$0xff]
        %v1592 = vrot.slane %v436, 2
        %v1593 = vsel %vm742, %v1180, %v1592
        %v1594 = vrot.slane %v437, 2
        %v1595 = vsel %vm742, %v1592, %v1594
        %v1596 = vrot.slane %v438, 2
        %v1597 = vsel %vm742, %v1594, %v1596
        %v1598 = vrot.slane 0.0, 2
        %v1599 = vsel %vm742, %v1596, %v1598
        %1604 = vmatprep.subr.mxu0 0.0
        %1605 = vmatpush1.msra.mxu0 %v1576
        %1606 = vmatprep.subr.mxu0 0.0
        %1607 = vmatpush1.msra.mxu0 %v1577
        %1608 = vmatprep.subr.mxu0 0.0
        %1609 = vmatpush1.msra.mxu0 %v1578
        %1610 = vmatprep.subr.mxu0 0.0
        %1611 = vmatpush1.msra.mxu0 %v1579
        %1612 = vmatprep.subr.mxu0 0.0
        %1613 = vmatpush1.msra.mxu0 %v1580
        %1614 = vmatprep.subr.mxu0 0.0
        %1615 = vmatpush1.msra.mxu0 %v1581
        %1616 = vmatprep.subr.mxu0 0.0
        %1617 = vmatpush1.msra.mxu0 %v1582
        %1618 = vmatprep.subr.mxu0 0.0
        %1619 = vmatpush1.msra.mxu0 %v1583
        %1620 = vmatprep.subr.mxu0 0.0
        %1621 = vmatpush1.msra.mxu0 %v1584
        %1622 = vmatprep.subr.mxu0 0.0
        %1623 = vmatpush1.msra.mxu0 %v1585
        %1624 = vmatprep.subr.mxu0 0.0
        %1625 = vmatpush1.msra.mxu0 %v1586
        %1626 = vmatprep.subr.mxu0 0.0
        %1627 = vmatpush1.msra.mxu0 %v1587
        %1628 = vmatprep.subr.mxu0 0.0
        %1629 = vmatpush1.msra.mxu0 %v1588
        %1630 = vmatprep.subr.mxu0 0.0
        %1631 = vmatpush1.msra.mxu0 %v1589
        %1632 = vmatprep.subr.mxu0 0.0
        %1633 = vmatpush1.msra.mxu0 %v1590
        %1634 = vmatprep.subr.mxu0 0.0
        %1635 = vmatpush1.msra.mxu0 %v1591
        %1636 = vmatprep.subr.mxu0 0.0
        %1637 = vmatpush1.msra.mxu0 0.0
        %1638 = vmatprep.subr.mxu0 0.0
        %1639 = vmatpush1.msra.mxu0 0.0
        %1640 = vmatprep.subr.mxu0 0.0
        %1641 = vmatpush1.msra.mxu0 0.0
        %1642 = vmatprep.subr.mxu0 0.0
        %1643 = vmatpush1.msra.mxu0 0.0
        %1644 = vmatprep.subr.mxu0 0.0
        %1645 = vmatpush1.msra.mxu0 0.0
        %1646 = vmatprep.subr.mxu0 0.0
        %1647 = vmatpush1.msra.mxu0 0.0
        %1648 = vmatprep.subr.mxu0 0.0
        %1649 = vmatpush1.msra.mxu0 0.0
        %1650 = vmatprep.subr.mxu0 0.0
        %1651 = vmatpush1.msra.mxu0 0.0
        %1652 = vmatprep.subr.mxu0 0.0
        %1653 = vmatpush1.msra.mxu0 0.0
        %1654 = vmatprep.subr.mxu0 0.0
        %1655 = vmatpush1.msra.mxu0 0.0
        %1656 = vmatprep.subr.mxu0 0.0
        %1657 = vmatpush1.msra.mxu0 0.0
        %1658 = vmatprep.subr.mxu0 0.0
        %1659 = vmatpush1.msra.mxu0 0.0
        %1660 = vmatprep.subr.mxu0 0.0
        %1661 = vmatpush1.msra.mxu0 0.0
        %1662 = vmatprep.subr.mxu0 0.0
        %1663 = vmatpush1.msra.mxu0 0.0
        %1664 = vmatprep.subr.mxu0 0.0
        %1665 = vmatpush1.msra.mxu0 0.0
        %1666 = vmatprep.subr.mxu0 0.0
        %1667 = vmatpush1.msra.mxu0 0.0
        %1668 = vmatprep.mubr.f32.mxu0 0.0
        %1669 = vmatmul.mubr.f32.gmra.mrb[0].mxu0 %v1175
        %v1670 = vpop.f32.mrb[0].mxu0
        %v1671 = vadd.f32 0.0, %v1670
        %v1672 = vpop.f32.mrb[0].mxu0
        %1673 = vmatprep.mubr.f32.mxu0 0.0
        %1674 = vmatmul.mubr.f32.gmra.mrb[0].mxu0 %v1177
        %v1675 = vpop.f32.mrb[0].mxu0
        %v1676 = vadd.f32 0.0, %v1675
        %v1677 = vpop.f32.mrb[0].mxu0
        %1678 = vmatprep.mubr.f32.mxu0 0.0
        %1679 = vmatmul.mubr.f32.gmra.mrb[0].mxu0 %v1179
        %v1680 = vpop.f32.mrb[0].mxu0
        %v1681 = vadd.f32 0.0, %v1680
        %v1682 = vpop.f32.mrb[0].mxu0
        %1683 = vmatprep.mubr.f32.mxu0 0.0
        %1684 = vmatmul.mubr.f32.gmra.mrb[0].mxu0 %v1181
        %v1685 = vpop.f32.mrb[0].mxu0
        %v1686 = vadd.f32 0.0, %v1685
        %v1687 = vpop.f32.mrb[0].mxu0
        %1688 = vmatprep.mubr.f32.mxu0 0.0
        %1689 = vmatmul.mubr.f32.gmra.mrb[0].mxu0 %v1593
        %v1690 = vpop.f32.mrb[0].mxu0
        %v1691 = vadd.f32 0.0, %v1690
        %v1692 = vpop.f32.mrb[0].mxu0
        %1693 = vmatprep.mubr.f32.mxu0 0.0
        %1694 = vmatmul.mubr.f32.gmra.mrb[0].mxu0 %v1595
        %v1695 = vpop.f32.mrb[0].mxu0
        %v1696 = vadd.f32 0.0, %v1695
        %v1697 = vpop.f32.mrb[0].mxu0
        %1698 = vmatprep.mubr.f32.mxu0 0.0
        %1699 = vmatmul.mubr.f32.gmra.mrb[0].mxu0 %v1597
        %v1700 = vpop.f32.mrb[0].mxu0
        %v1701 = vadd.f32 0.0, %v1700
        %v1702 = vpop.f32.mrb[0].mxu0
        %1703 = vmatprep.mubr.f32.mxu0 0.0
        %1704 = vmatmul.mubr.f32.gmra.mrb[0].mxu0 %v1599
        %v1705 = vpop.f32.mrb[0].mxu0
        %v1706 = vadd.f32 0.0, %v1705
        %v1707 = vpop.f32.mrb[0].mxu0
        %1708 = vdwg.mxu0
        %v1709 = vadd.f32 %v1567, %v1671
        %v1710 = vadd.f32 %v1568, %v1676
        %v1711 = vadd.f32 %v1569, %v1681
        %v1712 = vadd.f32 %v1570, %v1686
        %v1713 = vadd.f32 %v1571, %v1691
        %v1714 = vadd.f32 %v1572, %v1696
        %v1715 = vadd.f32 %v1573, %v1701
        %v1716 = vadd.f32 %v1574, %v1706
        %v1717 = vld [vmem:[#allocation8] sm:$0x1]
        %v1719 = vlaneseq
        %v1720 = vshrl.u32 %v1719, 7
        %v1721 = vsub.s32 0, %v1720
        %v1722 = vrot.slane %v1717, %v1721
        %v1724 = vadd.f32 %v1709, %v1722
        %v1725 = vadd.f32 %v1710, %v1722
        %v1726 = vadd.f32 %v1711, %v1722
        %v1727 = vadd.f32 %v1712, %v1722
        %v1728 = vadd.f32 %v1713, %v1722
        %v1729 = vadd.f32 %v1714, %v1722
        %v1730 = vadd.f32 %v1715, %v1722
        %v1731 = vadd.f32 %v1716, %v1722
        %v1732 = vmax.f32 %v1724, 0.0
        %v1733 = vmax.f32 %v1725, 0.0
        %v1734 = vmax.f32 %v1726, 0.0
        %v1735 = vmax.f32 %v1727, 0.0
        %v1736 = vmax.f32 %v1728, 0.0
        %v1737 = vmax.f32 %v1729, 0.0
        %v1738 = vmax.f32 %v1730, 0.0
        %v1739 = vmax.f32 %v1731, 0.0
        %v1740 = vld [vmem:[#allocation10] sm:$0xff]
        %v1741 = vld [vmem:[#allocation10 + $0x8] sm:$0xff]
        %v1742 = vld [vmem:[#allocation10 + $0x10] sm:$0xff]
        %v1743 = vld [vmem:[#allocation10 + $0x18] sm:$0xff]
        %v1744 = vld [vmem:[#allocation10 + $0x20] sm:$0xff]
        %v1745 = vld [vmem:[#allocation10 + $0x28] sm:$0xff]
        %v1746 = vld [vmem:[#allocation10 + $0x30] sm:$0xff]
        %v1747 = vld [vmem:[#allocation10 + $0x38] sm:$0xff]
        %v1748 = vld [vmem:[#allocation10 + $0x40] sm:$0xff]
        %v1749 = vld [vmem:[#allocation10 + $0x48] sm:$0xff]
        %v1750 = vld [vmem:[#allocation10 + $0x50] sm:$0xff]
        %v1751 = vld [vmem:[#allocation10 + $0x58] sm:$0xff]
        %v1752 = vld [vmem:[#allocation10 + $0x60] sm:$0xff]
        %v1753 = vld [vmem:[#allocation10 + $0x68] sm:$0xff]
        %v1754 = vld [vmem:[#allocation10 + $0x70] sm:$0xff]
        %v1755 = vld [vmem:[#allocation10 + $0x78] sm:$0xff]
        %v1756 = vld [vmem:[#allocation11] sm:$0x1]
        %v1758 = vlaneseq
        %v1759 = vshrl.u32 %v1758, 7
        %v1760 = vsub.s32 0, %v1759
        %v1761 = vrot.slane %v1756, %v1760
        %1763 = vmatprep.subr.mxu0 0.0
        %1764 = vmatpush1.msra.mxu0 %v1740
        %1765 = vmatprep.subr.mxu0 0.0
        %1766 = vmatpush1.msra.mxu0 %v1741
        %1767 = vmatprep.subr.mxu0 0.0
        %1768 = vmatpush1.msra.mxu0 %v1742
        %1769 = vmatprep.subr.mxu0 0.0
        %1770 = vmatpush1.msra.mxu0 %v1743
        %1771 = vmatprep.subr.mxu0 0.0
        %1772 = vmatpush1.msra.mxu0 %v1744
        %1773 = vmatprep.subr.mxu0 0.0
        %1774 = vmatpush1.msra.mxu0 %v1745
        %1775 = vmatprep.subr.mxu0 0.0
        %1776 = vmatpush1.msra.mxu0 %v1746
        %1777 = vmatprep.subr.mxu0 0.0
        %1778 = vmatpush1.msra.mxu0 %v1747
        %1779 = vmatprep.subr.mxu0 0.0
        %1780 = vmatpush1.msra.mxu0 %v1748
        %1781 = vmatprep.subr.mxu0 0.0
        %1782 = vmatpush1.msra.mxu0 %v1749
        %1783 = vmatprep.subr.mxu0 0.0
        %1784 = vmatpush1.msra.mxu0 %v1750
        %1785 = vmatprep.subr.mxu0 0.0
        %1786 = vmatpush1.msra.mxu0 %v1751
        %1787 = vmatprep.subr.mxu0 0.0
        %1788 = vmatpush1.msra.mxu0 %v1752
        %1789 = vmatprep.subr.mxu0 0.0
        %1790 = vmatpush1.msra.mxu0 %v1753
        %1791 = vmatprep.subr.mxu0 0.0
        %1792 = vmatpush1.msra.mxu0 %v1754
        %1793 = vmatprep.subr.mxu0 0.0
        %1794 = vmatpush1.msra.mxu0 %v1755
        %1795 = vmatprep.subr.mxu0 0.0
        %1796 = vmatpush1.msra.mxu0 0.0
        %1797 = vmatprep.subr.mxu0 0.0
        %1798 = vmatpush1.msra.mxu0 0.0
        %1799 = vmatprep.subr.mxu0 0.0
        %1800 = vmatpush1.msra.mxu0 0.0
        %1801 = vmatprep.subr.mxu0 0.0
        %1802 = vmatpush1.msra.mxu0 0.0
        %1803 = vmatprep.subr.mxu0 0.0
        %1804 = vmatpush1.msra.mxu0 0.0
        %1805 = vmatprep.subr.mxu0 0.0
        %1806 = vmatpush1.msra.mxu0 0.0
        %1807 = vmatprep.subr.mxu0 0.0
        %1808 = vmatpush1.msra.mxu0 0.0
        %1809 = vmatprep.subr.mxu0 0.0
        %1810 = vmatpush1.msra.mxu0 0.0
        %1811 = vmatprep.subr.mxu0 0.0
        %1812 = vmatpush1.msra.mxu0 0.0
        %1813 = vmatprep.subr.mxu0 0.0
        %1814 = vmatpush1.msra.mxu0 0.0
        %1815 = vmatprep.subr.mxu0 0.0
        %1816 = vmatpush1.msra.mxu0 0.0
        %1817 = vmatprep.subr.mxu0 0.0
        %1818 = vmatpush1.msra.mxu0 0.0
        %1819 = vmatprep.subr.mxu0 0.0
        %1820 = vmatpush1.msra.mxu0 0.0
        %1821 = vmatprep.subr.mxu0 0.0
        %1822 = vmatpush1.msra.mxu0 0.0
        %1823 = vmatprep.subr.mxu0 0.0
        %1824 = vmatpush1.msra.mxu0 0.0
        %1825 = vmatprep.subr.mxu0 0.0
        %1826 = vmatpush1.msra.mxu0 0.0
        %1827 = vmatprep.mubr.f32.mxu0 0.0
        %1828 = vmatmul.mubr.f32.gmra.mrb[0].mxu0 %v1732
        %v1829 = vpop.f32.mrb[0].mxu0
        %v1830 = vadd.f32 %v1761, %v1829
        %v1831 = vpop.f32.mrb[0].mxu0
        %1832 = vmatprep.mubr.f32.mxu0 0.0
        %1833 = vmatmul.mubr.f32.gmra.mrb[0].mxu0 %v1733
        %v1834 = vpop.f32.mrb[0].mxu0
        %v1835 = vadd.f32 %v1761, %v1834
        %v1836 = vpop.f32.mrb[0].mxu0
        %1837 = vmatprep.mubr.f32.mxu0 0.0
        %1838 = vmatmul.mubr.f32.gmra.mrb[0].mxu0 %v1734
        %v1839 = vpop.f32.mrb[0].mxu0
        %v1840 = vadd.f32 %v1761, %v1839
        %v1841 = vpop.f32.mrb[0].mxu0
        %1842 = vmatprep.mubr.f32.mxu0 0.0
        %1843 = vmatmul.mubr.f32.gmra.mrb[0].mxu0 %v1735
        %v1844 = vpop.f32.mrb[0].mxu0
        %v1845 = vadd.f32 %v1761, %v1844
        %v1846 = vpop.f32.mrb[0].mxu0
        %1847 = vmatprep.mubr.f32.mxu0 0.0
        %1848 = vmatmul.mubr.f32.gmra.mrb[0].mxu0 %v1736
        %v1849 = vpop.f32.mrb[0].mxu0
        %v1850 = vadd.f32 %v1761, %v1849
        %v1851 = vpop.f32.mrb[0].mxu0
        %1852 = vmatprep.mubr.f32.mxu0 0.0
        %1853 = vmatmul.mubr.f32.gmra.mrb[0].mxu0 %v1737
        %v1854 = vpop.f32.mrb[0].mxu0
        %v1855 = vadd.f32 %v1761, %v1854
        %v1856 = vpop.f32.mrb[0].mxu0
        %1857 = vmatprep.mubr.f32.mxu0 0.0
        %1858 = vmatmul.mubr.f32.gmra.mrb[0].mxu0 %v1738
        %v1859 = vpop.f32.mrb[0].mxu0
        %v1860 = vadd.f32 %v1761, %v1859
        %v1861 = vpop.f32.mrb[0].mxu0
        %1862 = vmatprep.mubr.f32.mxu0 0.0
        %1863 = vmatmul.mubr.f32.gmra.mrb[0].mxu0 %v1739
        %v1864 = vpop.f32.mrb[0].mxu0
        %v1865 = vadd.f32 %v1761, %v1864
        %v1866 = vpop.f32.mrb[0].mxu0
        %1867 = vdwg.mxu0
        %v1868 = vld [vmem:[%s387] sm:$0xff]
        %v1869 = vld [vmem:[%s387 + $0x8] sm:$0xff]
        %v1870 = vld [vmem:[%s387 + $0x10] sm:$0xff]
        %v1871 = vld [vmem:[%s387 + $0x18] sm:$0xff]
        %v1872 = vld [vmem:[%s387 + $0x20] sm:$0xff]
        %v1873 = vld [vmem:[%s387 + $0x28] sm:$0xff]
        %v1874 = vld [vmem:[%s387 + $0x30] sm:$0xff]
        %v1875 = vld [vmem:[%s387 + $0x38] sm:$0xff]
        %vm1876 = vcmp.gt.f32.partialorder %v1868, 0.0
        %vm1877 = vcmp.gt.f32.partialorder %v1869, 0.0
        %vm1878 = vcmp.gt.f32.partialorder %v1870, 0.0
        %vm1879 = vcmp.gt.f32.partialorder %v1871, 0.0
        %vm1880 = vcmp.gt.f32.partialorder %v1872, 0.0
        %vm1881 = vcmp.gt.f32.partialorder %v1873, 0.0
        %vm1882 = vcmp.gt.f32.partialorder %v1874, 0.0
        %vm1883 = vcmp.gt.f32.partialorder %v1875, 0.0
        %v1884 = vsel %vm1876, 1, 0
        %v1885 = vsel %vm1877, 1, 0
        %v1886 = vsel %vm1878, 1, 0
        %v1887 = vsel %vm1879, 1, 0
        %v1888 = vsel %vm1880, 1, 0
        %v1889 = vsel %vm1881, 1, 0
        %v1890 = vsel %vm1882, 1, 0
        %v1891 = vsel %vm1883, 1, 0
        %1892 = vset.pattern.permute.xlu0 0
        %1893 = vperm.xlu0 %1892, %v1884
        %v1894 = vpop.permute.xlu0 %1893
        %1895 = vset.pattern.permute.xlu0 0
        %1896 = vperm.xlu0 %1895, %v1885
        %v1897 = vpop.permute.xlu0 %1896
        %1898 = vset.pattern.permute.xlu0 0
        %1899 = vperm.xlu0 %1898, %v1886
        %v1900 = vpop.permute.xlu0 %1899
        %1901 = vset.pattern.permute.xlu0 0
        %1902 = vperm.xlu0 %1901, %v1887
        %v1903 = vpop.permute.xlu0 %1902
        %1904 = vset.pattern.permute.xlu0 0
        %1905 = vperm.xlu0 %1904, %v1888
        %v1906 = vpop.permute.xlu0 %1905
        %1907 = vset.pattern.permute.xlu0 0
        %1908 = vperm.xlu0 %1907, %v1889
        %v1909 = vpop.permute.xlu0 %1908
        %1910 = vset.pattern.permute.xlu0 0
        %1911 = vperm.xlu0 %1910, %v1890
        %v1912 = vpop.permute.xlu0 %1911
        %1913 = vset.pattern.permute.xlu0 0
        %1914 = vperm.xlu0 %1913, %v1891
        %v1915 = vpop.permute.xlu0 %1914
        %vm1916 = vcmp.eq.s32.totalorder %v1894, 1
        %vm1917 = vcmp.eq.s32.totalorder %v1897, 1
        %vm1918 = vcmp.eq.s32.totalorder %v1900, 1
        %vm1919 = vcmp.eq.s32.totalorder %v1903, 1
        %vm1920 = vcmp.eq.s32.totalorder %v1906, 1
        %vm1921 = vcmp.eq.s32.totalorder %v1909, 1
        %vm1922 = vcmp.eq.s32.totalorder %v1912, 1
        %vm1923 = vcmp.eq.s32.totalorder %v1915, 1
        %v1924 = vsel %vm1916, %v1830, -1e+09
        %v1925 = vsel %vm1917, %v1835, -1e+09
        %v1926 = vsel %vm1918, %v1840, -1e+09
        %v1927 = vsel %vm1919, %v1845, -1e+09
        %v1928 = vsel %vm1920, %v1850, -1e+09
        %v1929 = vsel %vm1921, %v1855, -1e+09
        %v1930 = vsel %vm1922, %v1860, -1e+09
        %v1931 = vsel %vm1923, %v1865, -1e+09
        %1932 = vst [vmem:[%s427] sm:$0xff] %v1924
        %1933 = vst [vmem:[%s427 + $0x8] sm:$0xff] %v1925
        %1934 = vst [vmem:[%s427 + $0x10] sm:$0xff] %v1926
        %1935 = vst [vmem:[%s427 + $0x18] sm:$0xff] %v1927
        %1936 = vst [vmem:[%s427 + $0x20] sm:$0xff] %v1928
        %1937 = vst [vmem:[%s427 + $0x28] sm:$0xff] %v1929
        %1938 = vst [vmem:[%s427 + $0x30] sm:$0xff] %v1930
        %1939 = vst [vmem:[%s427 + $0x38] sm:$0xff] %v1931
        %s1940 = sand.u32 %s199, 1
        %s1941 = scalar_lea.sflag [#allocation4], %s1940
        %s1942 = sand.u32 %s199, 1
        %s1943 = smul.addr %s1942, 64
        %s1944 = scalar_lea.vmem [#allocation14], %s1943
        // Predicated region
        $region77: #{base_faster_rcnn_forward.4} parent=47 // pred_check
          %p1945 = pneg %p209
        $region78: #{base_faster_rcnn_forward.4} parent=47 // pred_check_branch
          %1947 = sbr.rel (%p1945) target = $region80
        $region79: #{base_faster_rcnn_forward.4} parent=47 // pred_region
          %s1948 = smul.u32 8, %s29
          %s1950 = ssub.s32 1024, 1024
          %1951 = vsyncadd %s1941, %s1950
          %s1952 = smul.addr %s1948, 128
          %s1953 = scalar_lea.hbm %s7, %s1952
          %s1954 = sshll.u32 %s1944, 4
          %s1955 = int_to_ptr.vmem [resolvable:$true] %s1954
          %1960 = dma.vmem_to_hbm [thread:$0]  %s1955, 1024, %s1953, %s1941, 128, 128, 8
        $region80: #{base_faster_rcnn_forward.4} parent=47 // pred_fallthru
          _
      $region48: #{base_faster_rcnn_forward.4} parent=5 // pred_fallthru
        _
      %p1961 = scmp.le.s32.totalorder 2, %s24
      // Predicated region
      $region81: #{base_faster_rcnn_forward.4} parent=5 // pred_check
        %p1962 = pneg %p1961
      $region82: #{base_faster_rcnn_forward.4} parent=5 // pred_check_branch
        %1964 = sbr.rel (%p1962) target = $region84
      $region83: #{base_faster_rcnn_forward.4} parent=5 // pred_region
        %s1965 = ssub.s32 %s24, 2
        // Predicated region
        $region85: #{base_faster_rcnn_forward.4} parent=83 // pred_check
          %p1966 = pneg %p215
        $region86: #{base_faster_rcnn_forward.4} parent=83 // pred_check_branch
          %1968 = sbr.rel (%p1966) target = $region88
        $region87: #{base_faster_rcnn_forward.4} parent=83 // pred_region
          %s1969 = sand.u32 %s200, 1
          %s1970 = scalar_lea.sflag [#allocation4], %s1969
          %s1971 = sand.u32 %s200, 1
          %s1972 = smul.addr %s1971, 64
          %s1973 = scalar_lea.vmem [#allocation14], %s1972
          %1974 = dma.done %s1970, 1024
        $region88: #{base_faster_rcnn_forward.4} parent=83 // pred_fallthru
          _
      $region84: #{base_faster_rcnn_forward.4} parent=5 // pred_fallthru
        _
    $region6: #{base_faster_rcnn_forward.4} parent=1 // loop_footer
      %s28 = sadd.s32 1, %s24
    $region7: #{base_faster_rcnn_forward.4} parent=1 // loop_footer_branch
      %23 = sbr.rel target = $region3
    $region8: #{base_faster_rcnn_forward.4} parent=1 // loop_exit
      _
    %1975 = vsyncpa [#allocation3], 1
    %s1976 = scalar_lea.sflag [#allocation3], 1
    %1977 = vsyncpa %s1976, 1
    %1978 = vsyncpa [#allocation6], 1
    %s1979 = scalar_lea.sflag [#allocation6], 1
    %1980 = vsyncpa %s1979, 1
    %1981 = vsyncpa [#allocation9], 1
    %1982 = vsyncpa [#allocation12], 1
    %1983 = vsyncpa [#allocation4], 1
    %s1984 = scalar_lea.sflag [#allocation4], 1
    %1985 = vsyncpa %s1984, 1

// kernel: base_faster_rcnn_forward.5
$region0: #{base_faster_rcnn_forward.5}
  #allocation0 [shape = 'u32[]', space=smem, size = 0x4, offset = 0x4, fixed_abs, tag = 'smem constant byte address 0x4 - core index']
  #allocation1 [shape = 'u32[144,128]{1,0:T(1,128)}', space=vmem, size = 0x12000, scoped, tag = 'internal scratch']
  %s0 = inlined_call_operand.hbm [shape: f32[8,784], index: 0, kind: input, shape index: {}]
  %s1 = inlined_call_operand.hbm [shape: f32[784,32], index: 1, kind: input, shape index: {}]
  %s2 = inlined_call_operand.hbm [shape: f32[1,32], index: 2, kind: input, shape index: {}]
  %s3 = inlined_call_operand.hbm [shape: f32[32,32], index: 3, kind: input, shape index: {}]
  %s4 = inlined_call_operand.hbm [shape: f32[1,32], index: 4, kind: input, shape index: {}]
  %s5 = inlined_call_operand.hbm [shape: f32[32,128], index: 5, kind: input, shape index: {}]
  %s6 = inlined_call_operand.hbm [shape: f32[1,128], index: 6, kind: input, shape index: {}]
  %s7 = inlined_call_operand.hbm [shape: f32[8,128], index: 7, kind: output, shape index: {}]
  %s8 = sld [smem:[#allocation0]]
  $region66: #{base_faster_rcnn_forward.5} parent=0
    _
  %s10 = ssub.s32 1, %s8
  %s11 = scalar_select 0, %s10, %s8
  $region1: #{base_faster_rcnn_forward.5} parent=0
    #allocation2 [shape = 'u8[28672]{0}', space=vmem, size = 0x7000, scoped, tag = 'input window, operand 0, single buffered']
    #allocation3 [shape = 's32[1]{0}', space=sflag, size = 0x4, scoped, tag = 'scoped memory for base_faster_rcnn_forward.5']
    #allocation4 [shape = 's32[1]{0}', space=sflag, size = 0x4, scoped, tag = 'scoped memory for base_faster_rcnn_forward.5']
    #allocation5 [shape = 'u8[401408]{0}', space=vmem, size = 0x62000, scoped, tag = 'input window, operand 1, single buffered']
    #allocation6 [shape = 's32[1]{0}', space=sflag, size = 0x4, scoped, tag = 'scoped memory for base_faster_rcnn_forward.5']
    #allocation7 [shape = 'u8[512]{0}', space=vmem, size = 0x400, scoped, tag = 'input window, operand 2, single buffered']
    #allocation8 [shape = 'u8[16384]{0}', space=vmem, size = 0x4000, scoped, tag = 'input window, operand 3, single buffered']
    #allocation9 [shape = 's32[1]{0}', space=sflag, size = 0x4, scoped, tag = 'scoped memory for base_faster_rcnn_forward.5']
    #allocation10 [shape = 'u8[512]{0}', space=vmem, size = 0x400, scoped, tag = 'input window, operand 4, single buffered']
    #allocation11 [shape = 'u8[16384]{0}', space=vmem, size = 0x4000, scoped, tag = 'input window, operand 5, single buffered']
    #allocation12 [shape = 's32[1]{0}', space=sflag, size = 0x4, scoped, tag = 'scoped memory for base_faster_rcnn_forward.5']
    #allocation13 [shape = 'u8[512]{0}', space=vmem, size = 0x400, scoped, tag = 'input window, operand 6, single buffered']
    #allocation14 [shape = 'u8[4096]{0}', space=vmem, size = 0x1000, scoped, tag = 'output window, operand 0, single buffered']
    %12 = vsyncpa [#allocation3], 0
    %13 = vsyncpa [#allocation6], 0
    %14 = vsyncpa [#allocation9], 0
    %15 = vsyncpa [#allocation12], 0
    %16 = vsyncpa [#allocation4], 0
    // Predicated region
    $region2: #{base_faster_rcnn_forward.5} parent=1 // pred_check
      _
    $region3: #{base_faster_rcnn_forward.5} parent=1 // pred_check_branch
      %18 = sbr.rel (0) target = $region5
    $region4: #{base_faster_rcnn_forward.5} parent=1 // pred_region
      %s20 = ssub.s32 896, 896
      %21 = vsyncadd [#allocation3], %s20
      %s23 = sshll.u32 [#allocation2], 4
      %s24 = int_to_ptr.vmem [resolvable:$true] %s23
      %26 = dma.hbm_to_vmem [thread:$0]  %s0, 896, %s24, [#allocation3]
    $region5: #{base_faster_rcnn_forward.5} parent=1 // pred_fallthru
      _
    // Predicated region
    $region6: #{base_faster_rcnn_forward.5} parent=1 // pred_check
      _
    $region7: #{base_faster_rcnn_forward.5} parent=1 // pred_check_branch
      %28 = sbr.rel (0) target = $region9
    $region8: #{base_faster_rcnn_forward.5} parent=1 // pred_region
      %s30 = ssub.s32 12544, 12544
      %31 = vsyncadd [#allocation6], %s30
      %s32 = sshll.u32 [#allocation5], 4
      %s33 = int_to_ptr.vmem [resolvable:$true] %s32
      %38 = dma.hbm_to_vmem [thread:$0]  %s1, 12544, %s33, [#allocation6], 128, 128, 8
    $region9: #{base_faster_rcnn_forward.5} parent=1 // pred_fallthru
      _
    // Predicated region
    $region10: #{base_faster_rcnn_forward.5} parent=1 // pred_check
      _
    $region11: #{base_faster_rcnn_forward.5} parent=1 // pred_check_branch
      %40 = sbr.rel (0) target = $region13
    $region12: #{base_faster_rcnn_forward.5} parent=1 // pred_region
      %s42 = ssub.s32 16, 16
      %43 = vsyncadd [#allocation6], %s42
      %s45 = sshll.u32 [#allocation7], 4
      %s46 = int_to_ptr.vmem [resolvable:$true] %s45
      %48 = dma.hbm_to_vmem [thread:$0]  %s2, 16, %s46, [#allocation6]
    $region13: #{base_faster_rcnn_forward.5} parent=1 // pred_fallthru
      _
    // Predicated region
    $region14: #{base_faster_rcnn_forward.5} parent=1 // pred_check
      _
    $region15: #{base_faster_rcnn_forward.5} parent=1 // pred_check_branch
      %50 = sbr.rel (0) target = $region17
    $region16: #{base_faster_rcnn_forward.5} parent=1 // pred_region
      %s52 = ssub.s32 512, 512
      %53 = vsyncadd [#allocation9], %s52
      %s54 = sshll.u32 [#allocation8], 4
      %s55 = int_to_ptr.vmem [resolvable:$true] %s54
      %60 = dma.hbm_to_vmem [thread:$0]  %s3, 512, %s55, [#allocation9], 128, 128, 8
    $region17: #{base_faster_rcnn_forward.5} parent=1 // pred_fallthru
      _
    // Predicated region
    $region18: #{base_faster_rcnn_forward.5} parent=1 // pred_check
      _
    $region19: #{base_faster_rcnn_forward.5} parent=1 // pred_check_branch
      %62 = sbr.rel (0) target = $region21
    $region20: #{base_faster_rcnn_forward.5} parent=1 // pred_region
      %s64 = ssub.s32 16, 16
      %65 = vsyncadd [#allocation9], %s64
      %s67 = sshll.u32 [#allocation10], 4
      %s68 = int_to_ptr.vmem [resolvable:$true] %s67
      %70 = dma.hbm_to_vmem [thread:$0]  %s4, 16, %s68, [#allocation9]
    $region21: #{base_faster_rcnn_forward.5} parent=1 // pred_fallthru
      _
    // Predicated region
    $region22: #{base_faster_rcnn_forward.5} parent=1 // pred_check
      _
    $region23: #{base_faster_rcnn_forward.5} parent=1 // pred_check_branch
      %72 = sbr.rel (0) target = $region25
    $region24: #{base_faster_rcnn_forward.5} parent=1 // pred_region
      %s74 = ssub.s32 512, 512
      %75 = vsyncadd [#allocation12], %s74
      %s76 = sshll.u32 [#allocation11], 4
      %s77 = int_to_ptr.vmem [resolvable:$true] %s76
      %82 = dma.hbm_to_vmem [thread:$0]  %s5, 512, %s77, [#allocation12], 128, 128, 8
    $region25: #{base_faster_rcnn_forward.5} parent=1 // pred_fallthru
      _
    // Predicated region
    $region26: #{base_faster_rcnn_forward.5} parent=1 // pred_check
      _
    $region27: #{base_faster_rcnn_forward.5} parent=1 // pred_check_branch
      %84 = sbr.rel (0) target = $region29
    $region28: #{base_faster_rcnn_forward.5} parent=1 // pred_region
      %s86 = ssub.s32 16, 16
      %87 = vsyncadd [#allocation12], %s86
      %s89 = sshll.u32 [#allocation13], 4
      %s90 = int_to_ptr.vmem [resolvable:$true] %s89
      %92 = dma.hbm_to_vmem [thread:$0]  %s6, 16, %s90, [#allocation12]
    $region29: #{base_faster_rcnn_forward.5} parent=1 // pred_fallthru
      _
    // Predicated region
    $region30: #{base_faster_rcnn_forward.5} parent=1 // pred_check
      _
    $region31: #{base_faster_rcnn_forward.5} parent=1 // pred_check_branch
      %94 = sbr.rel (0) target = $region33
    $region32: #{base_faster_rcnn_forward.5} parent=1 // pred_region
      %95 = dma.done [#allocation3], 896
    $region33: #{base_faster_rcnn_forward.5} parent=1 // pred_fallthru
      _
    // Predicated region
    $region34: #{base_faster_rcnn_forward.5} parent=1 // pred_check
      _
    $region35: #{base_faster_rcnn_forward.5} parent=1 // pred_check_branch
      %97 = sbr.rel (0) target = $region37
    $region36: #{base_faster_rcnn_forward.5} parent=1 // pred_region
      %98 = dma.done [#allocation6], 12544
    $region37: #{base_faster_rcnn_forward.5} parent=1 // pred_fallthru
      _
    // Predicated region
    $region38: #{base_faster_rcnn_forward.5} parent=1 // pred_check
      _
    $region39: #{base_faster_rcnn_forward.5} parent=1 // pred_check_branch
      %100 = sbr.rel (0) target = $region41
    $region40: #{base_faster_rcnn_forward.5} parent=1 // pred_region
      %101 = dma.done [#allocation6], 16
    $region41: #{base_faster_rcnn_forward.5} parent=1 // pred_fallthru
      _
    // Predicated region
    $region42: #{base_faster_rcnn_forward.5} parent=1 // pred_check
      _
    $region43: #{base_faster_rcnn_forward.5} parent=1 // pred_check_branch
      %103 = sbr.rel (0) target = $region45
    $region44: #{base_faster_rcnn_forward.5} parent=1 // pred_region
      %104 = dma.done [#allocation9], 512
    $region45: #{base_faster_rcnn_forward.5} parent=1 // pred_fallthru
      _
    // Predicated region
    $region46: #{base_faster_rcnn_forward.5} parent=1 // pred_check
      _
    $region47: #{base_faster_rcnn_forward.5} parent=1 // pred_check_branch
      %106 = sbr.rel (0) target = $region49
    $region48: #{base_faster_rcnn_forward.5} parent=1 // pred_region
      %107 = dma.done [#allocation9], 16
    $region49: #{base_faster_rcnn_forward.5} parent=1 // pred_fallthru
      _
    // Predicated region
    $region50: #{base_faster_rcnn_forward.5} parent=1 // pred_check
      _
    $region51: #{base_faster_rcnn_forward.5} parent=1 // pred_check_branch
      %109 = sbr.rel (0) target = $region53
    $region52: #{base_faster_rcnn_forward.5} parent=1 // pred_region
      %110 = dma.done [#allocation12], 512
    $region53: #{base_faster_rcnn_forward.5} parent=1 // pred_fallthru
      _
    // Predicated region
    $region54: #{base_faster_rcnn_forward.5} parent=1 // pred_check
      _
    $region55: #{base_faster_rcnn_forward.5} parent=1 // pred_check_branch
      %112 = sbr.rel (0) target = $region57
    $region56: #{base_faster_rcnn_forward.5} parent=1 // pred_region
      %113 = dma.done [#allocation12], 16
    $region57: #{base_faster_rcnn_forward.5} parent=1 // pred_fallthru
      _
    %v114 = vld [vmem:[#allocation2] sm:$0xff]
    %v115 = vld [vmem:[#allocation2 + $0x8] sm:$0xff]
    %v116 = vld [vmem:[#allocation2 + $0x10] sm:$0xff]
    %v117 = vld [vmem:[#allocation2 + $0x18] sm:$0xff]
    %v118 = vld [vmem:[#allocation2 + $0x20] sm:$0xff]
    %v119 = vld [vmem:[#allocation2 + $0x28] sm:$0xff]
    %v120 = vld [vmem:[#allocation2 + $0x30] sm:$0xff]
    %v121 = vld [vmem:[#allocation5] sm:$0xff]
    %v122 = vld [vmem:[#allocation5 + $0x8] sm:$0xff]
    %v123 = vld [vmem:[#allocation5 + $0x10] sm:$0xff]
    %v124 = vld [vmem:[#allocation5 + $0x18] sm:$0xff]
    %v125 = vld [vmem:[#allocation5 + $0x20] sm:$0xff]
    %v126 = vld [vmem:[#allocation5 + $0x28] sm:$0xff]
    %v127 = vld [vmem:[#allocation5 + $0x30] sm:$0xff]
    %v128 = vld [vmem:[#allocation5 + $0x38] sm:$0xff]
    %v129 = vld [vmem:[#allocation5 + $0x40] sm:$0xff]
    %v130 = vld [vmem:[#allocation5 + $0x48] sm:$0xff]
    %v131 = vld [vmem:[#allocation5 + $0x50] sm:$0xff]
    %v132 = vld [vmem:[#allocation5 + $0x58] sm:$0xff]
    %v133 = vld [vmem:[#allocation5 + $0x60] sm:$0xff]
    %v134 = vld [vmem:[#allocation5 + $0x68] sm:$0xff]
    %v135 = vld [vmem:[#allocation5 + $0x70] sm:$0xff]
    %v136 = vld [vmem:[#allocation5 + $0x78] sm:$0xff]
    %v137 = vld [vmem:[#allocation5 + $0x80] sm:$0xff]
    %v138 = vld [vmem:[#allocation5 + $0x88] sm:$0xff]
    %v139 = vld [vmem:[#allocation5 + $0x90] sm:$0xff]
    %v140 = vld [vmem:[#allocation5 + $0x98] sm:$0xff]
    %v141 = vld [vmem:[#allocation5 + $0xa0] sm:$0xff]
    %v142 = vld [vmem:[#allocation5 + $0xa8] sm:$0xff]
    %v143 = vld [vmem:[#allocation5 + $0xb0] sm:$0xff]
    %v144 = vld [vmem:[#allocation5 + $0xb8] sm:$0xff]
    %v145 = vld [vmem:[#allocation5 + $0xc0] sm:$0xff]
    %v146 = vld [vmem:[#allocation5 + $0xc8] sm:$0xff]
    %v147 = vld [vmem:[#allocation5 + $0xd0] sm:$0xff]
    %v148 = vld [vmem:[#allocation5 + $0xd8] sm:$0xff]
    %v149 = vld [vmem:[#allocation5 + $0xe0] sm:$0xff]
    %v150 = vld [vmem:[#allocation5 + $0xe8] sm:$0xff]
    %v151 = vld [vmem:[#allocation5 + $0xf0] sm:$0xff]
    %v152 = vld [vmem:[#allocation5 + $0xf8] sm:$0xff]
    %v153 = vld [vmem:[#allocation5 + $0x100] sm:$0xff]
    %v154 = vld [vmem:[#allocation5 + $0x108] sm:$0xff]
    %v155 = vld [vmem:[#allocation5 + $0x110] sm:$0xff]
    %v156 = vld [vmem:[#allocation5 + $0x118] sm:$0xff]
    %v157 = vld [vmem:[#allocation5 + $0x120] sm:$0xff]
    %v158 = vld [vmem:[#allocation5 + $0x128] sm:$0xff]
    %v159 = vld [vmem:[#allocation5 + $0x130] sm:$0xff]
    %v160 = vld [vmem:[#allocation5 + $0x138] sm:$0xff]
    %v161 = vld [vmem:[#allocation5 + $0x140] sm:$0xff]
    %v162 = vld [vmem:[#allocation5 + $0x148] sm:$0xff]
    %v163 = vld [vmem:[#allocation5 + $0x150] sm:$0xff]
    %v164 = vld [vmem:[#allocation5 + $0x158] sm:$0xff]
    %v165 = vld [vmem:[#allocation5 + $0x160] sm:$0xff]
    %v166 = vld [vmem:[#allocation5 + $0x168] sm:$0xff]
    %v167 = vld [vmem:[#allocation5 + $0x170] sm:$0xff]
    %v168 = vld [vmem:[#allocation5 + $0x178] sm:$0xff]
    %v169 = vld [vmem:[#allocation5 + $0x180] sm:$0xff]
    %v170 = vld [vmem:[#allocation5 + $0x188] sm:$0xff]
    %v171 = vld [vmem:[#allocation5 + $0x190] sm:$0xff]
    %v172 = vld [vmem:[#allocation5 + $0x198] sm:$0xff]
    %v173 = vld [vmem:[#allocation5 + $0x1a0] sm:$0xff]
    %v174 = vld [vmem:[#allocation5 + $0x1a8] sm:$0xff]
    %v175 = vld [vmem:[#allocation5 + $0x1b0] sm:$0xff]
    %v176 = vld [vmem:[#allocation5 + $0x1b8] sm:$0xff]
    %v177 = vld [vmem:[#allocation5 + $0x1c0] sm:$0xff]
    %v178 = vld [vmem:[#allocation5 + $0x1c8] sm:$0xff]
    %v179 = vld [vmem:[#allocation5 + $0x1d0] sm:$0xff]
    %v180 = vld [vmem:[#allocation5 + $0x1d8] sm:$0xff]
    %v181 = vld [vmem:[#allocation5 + $0x1e0] sm:$0xff]
    %v182 = vld [vmem:[#allocation5 + $0x1e8] sm:$0xff]
    %v183 = vld [vmem:[#allocation5 + $0x1f0] sm:$0xff]
    %v184 = vld [vmem:[#allocation5 + $0x1f8] sm:$0xff]
    %v185 = vld [vmem:[#allocation5 + $0x200] sm:$0xff]
    %v186 = vld [vmem:[#allocation5 + $0x208] sm:$0xff]
    %v187 = vld [vmem:[#allocation5 + $0x210] sm:$0xff]
    %v188 = vld [vmem:[#allocation5 + $0x218] sm:$0xff]
    %v189 = vld [vmem:[#allocation5 + $0x220] sm:$0xff]
    %v190 = vld [vmem:[#allocation5 + $0x228] sm:$0xff]
    %v191 = vld [vmem:[#allocation5 + $0x230] sm:$0xff]
    %v192 = vld [vmem:[#allocation5 + $0x238] sm:$0xff]
    %v193 = vld [vmem:[#allocation5 + $0x240] sm:$0xff]
    %v194 = vld [vmem:[#allocation5 + $0x248] sm:$0xff]
    %v195 = vld [vmem:[#allocation5 + $0x250] sm:$0xff]
    %v196 = vld [vmem:[#allocation5 + $0x258] sm:$0xff]
    %v197 = vld [vmem:[#allocation5 + $0x260] sm:$0xff]
    %v198 = vld [vmem:[#allocation5 + $0x268] sm:$0xff]
    %v199 = vld [vmem:[#allocation5 + $0x270] sm:$0xff]
    %v200 = vld [vmem:[#allocation5 + $0x278] sm:$0xff]
    %v201 = vld [vmem:[#allocation5 + $0x280] sm:$0xff]
    %v202 = vld [vmem:[#allocation5 + $0x288] sm:$0xff]
    %v203 = vld [vmem:[#allocation5 + $0x290] sm:$0xff]
    %v204 = vld [vmem:[#allocation5 + $0x298] sm:$0xff]
    %v205 = vld [vmem:[#allocation5 + $0x2a0] sm:$0xff]
    %v206 = vld [vmem:[#allocation5 + $0x2a8] sm:$0xff]
    %v207 = vld [vmem:[#allocation5 + $0x2b0] sm:$0xff]
    %v208 = vld [vmem:[#allocation5 + $0x2b8] sm:$0xff]
    %v209 = vld [vmem:[#allocation5 + $0x2c0] sm:$0xff]
    %v210 = vld [vmem:[#allocation5 + $0x2c8] sm:$0xff]
    %v211 = vld [vmem:[#allocation5 + $0x2d0] sm:$0xff]
    %v212 = vld [vmem:[#allocation5 + $0x2d8] sm:$0xff]
    %v213 = vld [vmem:[#allocation5 + $0x2e0] sm:$0xff]
    %v214 = vld [vmem:[#allocation5 + $0x2e8] sm:$0xff]
    %v215 = vld [vmem:[#allocation5 + $0x2f0] sm:$0xff]
    %v216 = vld [vmem:[#allocation5 + $0x2f8] sm:$0xff]
    %v217 = vld [vmem:[#allocation5 + $0x300] sm:$0xff]
    %v218 = vld [vmem:[#allocation5 + $0x308] sm:$0xff]
    %v219 = vld [vmem:[#allocation7] sm:$0x1]
    %v221 = vlaneseq
    %v222 = vshrl.u32 %v221, 7
    %v223 = vsub.s32 0, %v222
    %v224 = vrot.slane %v219, %v223
    %vm226 = vcmask 130048
    %v228 = vsel %vm226, %v120, 0
    %230 = vmatprep.subr.mxu0 0.0
    %231 = vmatpush1.msra.mxu0 %v121
    %232 = vmatprep.subr.mxu0 0.0
    %233 = vmatpush1.msra.mxu0 %v122
    %234 = vmatprep.subr.mxu0 0.0
    %235 = vmatpush1.msra.mxu0 %v123
    %236 = vmatprep.subr.mxu0 0.0
    %237 = vmatpush1.msra.mxu0 %v124
    %238 = vmatprep.subr.mxu0 0.0
    %239 = vmatpush1.msra.mxu0 %v125
    %240 = vmatprep.subr.mxu0 0.0
    %241 = vmatpush1.msra.mxu0 %v126
    %242 = vmatprep.subr.mxu0 0.0
    %243 = vmatpush1.msra.mxu0 %v127
    %244 = vmatprep.subr.mxu0 0.0
    %245 = vmatpush1.msra.mxu0 %v128
    %246 = vmatprep.subr.mxu0 0.0
    %247 = vmatpush1.msra.mxu0 %v129
    %248 = vmatprep.subr.mxu0 0.0
    %249 = vmatpush1.msra.mxu0 %v130
    %250 = vmatprep.subr.mxu0 0.0
    %251 = vmatpush1.msra.mxu0 %v131
    %252 = vmatprep.subr.mxu0 0.0
    %253 = vmatpush1.msra.mxu0 %v132
    %254 = vmatprep.subr.mxu0 0.0
    %255 = vmatpush1.msra.mxu0 %v133
    %256 = vmatprep.subr.mxu0 0.0
    %257 = vmatpush1.msra.mxu0 %v134
    %258 = vmatprep.subr.mxu0 0.0
    %259 = vmatpush1.msra.mxu0 %v135
    %260 = vmatprep.subr.mxu0 0.0
    %261 = vmatpush1.msra.mxu0 %v136
    %262 = vmatprep.subr.mxu0 0.0
    %263 = vmatpush1.msra.mxu0 %v137
    %264 = vmatprep.subr.mxu0 0.0
    %265 = vmatpush1.msra.mxu0 %v138
    %266 = vmatprep.subr.mxu0 0.0
    %267 = vmatpush1.msra.mxu0 %v139
    %268 = vmatprep.subr.mxu0 0.0
    %269 = vmatpush1.msra.mxu0 %v140
    %270 = vmatprep.subr.mxu0 0.0
    %271 = vmatpush1.msra.mxu0 %v141
    %272 = vmatprep.subr.mxu0 0.0
    %273 = vmatpush1.msra.mxu0 %v142
    %274 = vmatprep.subr.mxu0 0.0
    %275 = vmatpush1.msra.mxu0 %v143
    %276 = vmatprep.subr.mxu0 0.0
    %277 = vmatpush1.msra.mxu0 %v144
    %278 = vmatprep.subr.mxu0 0.0
    %279 = vmatpush1.msra.mxu0 %v145
    %280 = vmatprep.subr.mxu0 0.0
    %281 = vmatpush1.msra.mxu0 %v146
    %282 = vmatprep.subr.mxu0 0.0
    %283 = vmatpush1.msra.mxu0 %v147
    %284 = vmatprep.subr.mxu0 0.0
    %285 = vmatpush1.msra.mxu0 %v148
    %286 = vmatprep.subr.mxu0 0.0
    %287 = vmatpush1.msra.mxu0 %v149
    %288 = vmatprep.subr.mxu0 0.0
    %289 = vmatpush1.msra.mxu0 %v150
    %290 = vmatprep.subr.mxu0 0.0
    %291 = vmatpush1.msra.mxu0 %v151
    %292 = vmatprep.subr.mxu0 0.0
    %293 = vmatpush1.msra.mxu0 %v152
    %294 = vmatprep.mubr.f32.mxu0 %v115
    %295 = vmatmul.mubr.f32.gmra.mrb[0].mxu0 %v114
    %v296 = vpop.f32.mrb[0].mxu0
    %v297 = vadd.f32 %v224, %v296
    %v298 = vpop.f32.mrb[0].mxu0
    %299 = vdwg.mxu0
    %300 = vmatprep.subr.mxu0 0.0
    %301 = vmatpush1.msra.mxu0 %v153
    %302 = vmatprep.subr.mxu0 0.0
    %303 = vmatpush1.msra.mxu0 %v154
    %304 = vmatprep.subr.mxu0 0.0
    %305 = vmatpush1.msra.mxu0 %v155
    %306 = vmatprep.subr.mxu0 0.0
    %307 = vmatpush1.msra.mxu0 %v156
    %308 = vmatprep.subr.mxu0 0.0
    %309 = vmatpush1.msra.mxu0 %v157
    %310 = vmatprep.subr.mxu0 0.0
    %311 = vmatpush1.msra.mxu0 %v158
    %312 = vmatprep.subr.mxu0 0.0
    %313 = vmatpush1.msra.mxu0 %v159
    %314 = vmatprep.subr.mxu0 0.0
    %315 = vmatpush1.msra.mxu0 %v160
    %316 = vmatprep.subr.mxu0 0.0
    %317 = vmatpush1.msra.mxu0 %v161
    %318 = vmatprep.subr.mxu0 0.0
    %319 = vmatpush1.msra.mxu0 %v162
    %320 = vmatprep.subr.mxu0 0.0
    %321 = vmatpush1.msra.mxu0 %v163
    %322 = vmatprep.subr.mxu0 0.0
    %323 = vmatpush1.msra.mxu0 %v164
    %324 = vmatprep.subr.mxu0 0.0
    %325 = vmatpush1.msra.mxu0 %v165
    %326 = vmatprep.subr.mxu0 0.0
    %327 = vmatpush1.msra.mxu0 %v166
    %328 = vmatprep.subr.mxu0 0.0
    %329 = vmatpush1.msra.mxu0 %v167
    %330 = vmatprep.subr.mxu0 0.0
    %331 = vmatpush1.msra.mxu0 %v168
    %332 = vmatprep.subr.mxu0 0.0
    %333 = vmatpush1.msra.mxu0 %v169
    %334 = vmatprep.subr.mxu0 0.0
    %335 = vmatpush1.msra.mxu0 %v170
    %336 = vmatprep.subr.mxu0 0.0
    %337 = vmatpush1.msra.mxu0 %v171
    %338 = vmatprep.subr.mxu0 0.0
    %339 = vmatpush1.msra.mxu0 %v172
    %340 = vmatprep.subr.mxu0 0.0
    %341 = vmatpush1.msra.mxu0 %v173
    %342 = vmatprep.subr.mxu0 0.0
    %343 = vmatpush1.msra.mxu0 %v174
    %344 = vmatprep.subr.mxu0 0.0
    %345 = vmatpush1.msra.mxu0 %v175
    %346 = vmatprep.subr.mxu0 0.0
    %347 = vmatpush1.msra.mxu0 %v176
    %348 = vmatprep.subr.mxu0 0.0
    %349 = vmatpush1.msra.mxu0 %v177
    %350 = vmatprep.subr.mxu0 0.0
    %351 = vmatpush1.msra.mxu0 %v178
    %352 = vmatprep.subr.mxu0 0.0
    %353 = vmatpush1.msra.mxu0 %v179
    %354 = vmatprep.subr.mxu0 0.0
    %355 = vmatpush1.msra.mxu0 %v180
    %356 = vmatprep.subr.mxu0 0.0
    %357 = vmatpush1.msra.mxu0 %v181
    %358 = vmatprep.subr.mxu0 0.0
    %359 = vmatpush1.msra.mxu0 %v182
    %360 = vmatprep.subr.mxu0 0.0
    %361 = vmatpush1.msra.mxu0 %v183
    %362 = vmatprep.subr.mxu0 0.0
    %363 = vmatpush1.msra.mxu0 %v184
    %364 = vmatprep.mubr.f32.mxu0 %v117
    %365 = vmatmul.mubr.f32.gmra.mrb[0].mxu0 %v116
    %v366 = vpop.f32.mrb[0].mxu0
    %v367 = vadd.f32 %v297, %v366
    %v368 = vpop.f32.mrb[0].mxu0
    %369 = vdwg.mxu0
    %370 = vmatprep.subr.mxu0 0.0
    %371 = vmatpush1.msra.mxu0 %v185
    %372 = vmatprep.subr.mxu0 0.0
    %373 = vmatpush1.msra.mxu0 %v186
    %374 = vmatprep.subr.mxu0 0.0
    %375 = vmatpush1.msra.mxu0 %v187
    %376 = vmatprep.subr.mxu0 0.0
    %377 = vmatpush1.msra.mxu0 %v188
    %378 = vmatprep.subr.mxu0 0.0
    %379 = vmatpush1.msra.mxu0 %v189
    %380 = vmatprep.subr.mxu0 0.0
    %381 = vmatpush1.msra.mxu0 %v190
    %382 = vmatprep.subr.mxu0 0.0
    %383 = vmatpush1.msra.mxu0 %v191
    %384 = vmatprep.subr.mxu0 0.0
    %385 = vmatpush1.msra.mxu0 %v192
    %386 = vmatprep.subr.mxu0 0.0
    %387 = vmatpush1.msra.mxu0 %v193
    %388 = vmatprep.subr.mxu0 0.0
    %389 = vmatpush1.msra.mxu0 %v194
    %390 = vmatprep.subr.mxu0 0.0
    %391 = vmatpush1.msra.mxu0 %v195
    %392 = vmatprep.subr.mxu0 0.0
    %393 = vmatpush1.msra.mxu0 %v196
    %394 = vmatprep.subr.mxu0 0.0
    %395 = vmatpush1.msra.mxu0 %v197
    %396 = vmatprep.subr.mxu0 0.0
    %397 = vmatpush1.msra.mxu0 %v198
    %398 = vmatprep.subr.mxu0 0.0
    %399 = vmatpush1.msra.mxu0 %v199
    %400 = vmatprep.subr.mxu0 0.0
    %401 = vmatpush1.msra.mxu0 %v200
    %402 = vmatprep.subr.mxu0 0.0
    %403 = vmatpush1.msra.mxu0 %v201
    %404 = vmatprep.subr.mxu0 0.0
    %405 = vmatpush1.msra.mxu0 %v202
    %406 = vmatprep.subr.mxu0 0.0
    %407 = vmatpush1.msra.mxu0 %v203
    %408 = vmatprep.subr.mxu0 0.0
    %409 = vmatpush1.msra.mxu0 %v204
    %410 = vmatprep.subr.mxu0 0.0
    %411 = vmatpush1.msra.mxu0 %v205
    %412 = vmatprep.subr.mxu0 0.0
    %413 = vmatpush1.msra.mxu0 %v206
    %414 = vmatprep.subr.mxu0 0.0
    %415 = vmatpush1.msra.mxu0 %v207
    %416 = vmatprep.subr.mxu0 0.0
    %417 = vmatpush1.msra.mxu0 %v208
    %418 = vmatprep.subr.mxu0 0.0
    %419 = vmatpush1.msra.mxu0 %v209
    %420 = vmatprep.subr.mxu0 0.0
    %421 = vmatpush1.msra.mxu0 %v210
    %422 = vmatprep.subr.mxu0 0.0
    %423 = vmatpush1.msra.mxu0 %v211
    %424 = vmatprep.subr.mxu0 0.0
    %425 = vmatpush1.msra.mxu0 %v212
    %426 = vmatprep.subr.mxu0 0.0
    %427 = vmatpush1.msra.mxu0 %v213
    %428 = vmatprep.subr.mxu0 0.0
    %429 = vmatpush1.msra.mxu0 %v214
    %430 = vmatprep.subr.mxu0 0.0
    %431 = vmatpush1.msra.mxu0 %v215
    %432 = vmatprep.subr.mxu0 0.0
    %433 = vmatpush1.msra.mxu0 %v216
    %434 = vmatprep.mubr.f32.mxu0 %v119
    %435 = vmatmul.mubr.f32.gmra.mrb[0].mxu0 %v118
    %v436 = vpop.f32.mrb[0].mxu0
    %v437 = vadd.f32 %v367, %v436
    %v438 = vpop.f32.mrb[0].mxu0
    %439 = vdwg.mxu0
    %440 = vmatprep.subr.mxu0 0.0
    %441 = vmatpush1.msra.mxu0 %v217
    %442 = vmatprep.subr.mxu0 0.0
    %443 = vmatpush1.msra.mxu0 %v218
    %444 = vmatprep.subr.mxu0 0.0
    %445 = vmatpush1.msra.mxu0 0.0
    %446 = vmatprep.subr.mxu0 0.0
    %447 = vmatpush1.msra.mxu0 0.0
    %448 = vmatprep.subr.mxu0 0.0
    %449 = vmatpush1.msra.mxu0 0.0
    %450 = vmatprep.subr.mxu0 0.0
    %451 = vmatpush1.msra.mxu0 0.0
    %452 = vmatprep.subr.mxu0 0.0
    %453 = vmatpush1.msra.mxu0 0.0
    %454 = vmatprep.subr.mxu0 0.0
    %455 = vmatpush1.msra.mxu0 0.0
    %456 = vmatprep.subr.mxu0 0.0
    %457 = vmatpush1.msra.mxu0 0.0
    %458 = vmatprep.subr.mxu0 0.0
    %459 = vmatpush1.msra.mxu0 0.0
    %460 = vmatprep.subr.mxu0 0.0
    %461 = vmatpush1.msra.mxu0 0.0
    %462 = vmatprep.subr.mxu0 0.0
    %463 = vmatpush1.msra.mxu0 0.0
    %464 = vmatprep.subr.mxu0 0.0
    %465 = vmatpush1.msra.mxu0 0.0
    %466 = vmatprep.subr.mxu0 0.0
    %467 = vmatpush1.msra.mxu0 0.0
    %468 = vmatprep.subr.mxu0 0.0
    %469 = vmatpush1.msra.mxu0 0.0
    %470 = vmatprep.subr.mxu0 0.0
    %471 = vmatpush1.msra.mxu0 0.0
    %472 = vmatprep.subr.mxu0 0.0
    %473 = vmatpush1.msra.mxu0 0.0
    %474 = vmatprep.subr.mxu0 0.0
    %475 = vmatpush1.msra.mxu0 0.0
    %476 = vmatprep.subr.mxu0 0.0
    %477 = vmatpush1.msra.mxu0 0.0
    %478 = vmatprep.subr.mxu0 0.0
    %479 = vmatpush1.msra.mxu0 0.0
    %480 = vmatprep.subr.mxu0 0.0
    %481 = vmatpush1.msra.mxu0 0.0
    %482 = vmatprep.subr.mxu0 0.0
    %483 = vmatpush1.msra.mxu0 0.0
    %484 = vmatprep.subr.mxu0 0.0
    %485 = vmatpush1.msra.mxu0 0.0
    %486 = vmatprep.subr.mxu0 0.0
    %487 = vmatpush1.msra.mxu0 0.0
    %488 = vmatprep.subr.mxu0 0.0
    %489 = vmatpush1.msra.mxu0 0.0
    %490 = vmatprep.subr.mxu0 0.0
    %491 = vmatpush1.msra.mxu0 0.0
    %492 = vmatprep.subr.mxu0 0.0
    %493 = vmatpush1.msra.mxu0 0.0
    %494 = vmatprep.subr.mxu0 0.0
    %495 = vmatpush1.msra.mxu0 0.0
    %496 = vmatprep.subr.mxu0 0.0
    %497 = vmatpush1.msra.mxu0 0.0
    %498 = vmatprep.subr.mxu0 0.0
    %499 = vmatpush1.msra.mxu0 0.0
    %500 = vmatprep.subr.mxu0 0.0
    %501 = vmatpush1.msra.mxu0 0.0
    %502 = vmatprep.subr.mxu0 0.0
    %503 = vmatpush1.msra.mxu0 0.0
    %504 = vmatprep.mubr.f32.mxu0 0.0
    %505 = vmatmul.mubr.f32.gmra.mrb[0].mxu0 %v228
    %v506 = vpop.f32.mrb[0].mxu0
    %v507 = vadd.f32 %v437, %v506
    %v508 = vpop.f32.mrb[0].mxu0
    %509 = vdwg.mxu0
    %v510 = vmax.f32 %v507, 0.0
    %v511 = vld [vmem:[#allocation8] sm:$0xff]
    %v512 = vld [vmem:[#allocation8 + $0x8] sm:$0xff]
    %v513 = vld [vmem:[#allocation8 + $0x10] sm:$0xff]
    %v514 = vld [vmem:[#allocation8 + $0x18] sm:$0xff]
    %v515 = vld [vmem:[#allocation10] sm:$0x1]
    %v517 = vlaneseq
    %v518 = vshrl.u32 %v517, 7
    %v519 = vsub.s32 0, %v518
    %v520 = vrot.slane %v515, %v519
    %vm522 = vcmask 261120
    %v524 = vsel %vm522, %v510, 0
    %526 = vmatprep.subr.mxu0 0.0
    %527 = vmatpush1.msra.mxu0 %v511
    %528 = vmatprep.subr.mxu0 0.0
    %529 = vmatpush1.msra.mxu0 %v512
    %530 = vmatprep.subr.mxu0 0.0
    %531 = vmatpush1.msra.mxu0 %v513
    %532 = vmatprep.subr.mxu0 0.0
    %533 = vmatpush1.msra.mxu0 %v514
    %534 = vmatprep.subr.mxu0 0.0
    %535 = vmatpush1.msra.mxu0 0.0
    %536 = vmatprep.subr.mxu0 0.0
    %537 = vmatpush1.msra.mxu0 0.0
    %538 = vmatprep.subr.mxu0 0.0
    %539 = vmatpush1.msra.mxu0 0.0
    %540 = vmatprep.subr.mxu0 0.0
    %541 = vmatpush1.msra.mxu0 0.0
    %542 = vmatprep.subr.mxu0 0.0
    %543 = vmatpush1.msra.mxu0 0.0
    %544 = vmatprep.subr.mxu0 0.0
    %545 = vmatpush1.msra.mxu0 0.0
    %546 = vmatprep.subr.mxu0 0.0
    %547 = vmatpush1.msra.mxu0 0.0
    %548 = vmatprep.subr.mxu0 0.0
    %549 = vmatpush1.msra.mxu0 0.0
    %550 = vmatprep.subr.mxu0 0.0
    %551 = vmatpush1.msra.mxu0 0.0
    %552 = vmatprep.subr.mxu0 0.0
    %553 = vmatpush1.msra.mxu0 0.0
    %554 = vmatprep.subr.mxu0 0.0
    %555 = vmatpush1.msra.mxu0 0.0
    %556 = vmatprep.subr.mxu0 0.0
    %557 = vmatpush1.msra.mxu0 0.0
    %558 = vmatprep.subr.mxu0 0.0
    %559 = vmatpush1.msra.mxu0 0.0
    %560 = vmatprep.subr.mxu0 0.0
    %561 = vmatpush1.msra.mxu0 0.0
    %562 = vmatprep.subr.mxu0 0.0
    %563 = vmatpush1.msra.mxu0 0.0
    %564 = vmatprep.subr.mxu0 0.0
    %565 = vmatpush1.msra.mxu0 0.0
    %566 = vmatprep.subr.mxu0 0.0
    %567 = vmatpush1.msra.mxu0 0.0
    %568 = vmatprep.subr.mxu0 0.0
    %569 = vmatpush1.msra.mxu0 0.0
    %570 = vmatprep.subr.mxu0 0.0
    %571 = vmatpush1.msra.mxu0 0.0
    %572 = vmatprep.subr.mxu0 0.0
    %573 = vmatpush1.msra.mxu0 0.0
    %574 = vmatprep.subr.mxu0 0.0
    %575 = vmatpush1.msra.mxu0 0.0
    %576 = vmatprep.subr.mxu0 0.0
    %577 = vmatpush1.msra.mxu0 0.0
    %578 = vmatprep.subr.mxu0 0.0
    %579 = vmatpush1.msra.mxu0 0.0
    %580 = vmatprep.subr.mxu0 0.0
    %581 = vmatpush1.msra.mxu0 0.0
    %582 = vmatprep.subr.mxu0 0.0
    %583 = vmatpush1.msra.mxu0 0.0
    %584 = vmatprep.subr.mxu0 0.0
    %585 = vmatpush1.msra.mxu0 0.0
    %586 = vmatprep.subr.mxu0 0.0
    %587 = vmatpush1.msra.mxu0 0.0
    %588 = vmatprep.subr.mxu0 0.0
    %589 = vmatpush1.msra.mxu0 0.0
    %590 = vmatprep.mubr.f32.mxu0 0.0
    %591 = vmatmul.mubr.f32.gmra.mrb[0].mxu0 %v524
    %v592 = vpop.f32.mrb[0].mxu0
    %v593 = vadd.f32 %v520, %v592
    %v594 = vpop.f32.mrb[0].mxu0
    %595 = vdwg.mxu0
    %v596 = vmax.f32 %v593, 0.0
    %v597 = vld [vmem:[#allocation11] sm:$0xff]
    %v598 = vld [vmem:[#allocation11 + $0x8] sm:$0xff]
    %v599 = vld [vmem:[#allocation11 + $0x10] sm:$0xff]
    %v600 = vld [vmem:[#allocation11 + $0x18] sm:$0xff]
    %v601 = vld [vmem:[#allocation13] sm:$0x1]
    %v603 = vlaneseq
    %v604 = vshrl.u32 %v603, 7
    %v605 = vsub.s32 0, %v604
    %v606 = vrot.slane %v601, %v605
    %v609 = vsel %vm522, %v596, 0
    %611 = vmatprep.subr.mxu0 0.0
    %612 = vmatpush1.msra.mxu0 %v597
    %613 = vmatprep.subr.mxu0 0.0
    %614 = vmatpush1.msra.mxu0 %v598
    %615 = vmatprep.subr.mxu0 0.0
    %616 = vmatpush1.msra.mxu0 %v599
    %617 = vmatprep.subr.mxu0 0.0
    %618 = vmatpush1.msra.mxu0 %v600
    %619 = vmatprep.subr.mxu0 0.0
    %620 = vmatpush1.msra.mxu0 0.0
    %621 = vmatprep.subr.mxu0 0.0
    %622 = vmatpush1.msra.mxu0 0.0
    %623 = vmatprep.subr.mxu0 0.0
    %624 = vmatpush1.msra.mxu0 0.0
    %625 = vmatprep.subr.mxu0 0.0
    %626 = vmatpush1.msra.mxu0 0.0
    %627 = vmatprep.subr.mxu0 0.0
    %628 = vmatpush1.msra.mxu0 0.0
    %629 = vmatprep.subr.mxu0 0.0
    %630 = vmatpush1.msra.mxu0 0.0
    %631 = vmatprep.subr.mxu0 0.0
    %632 = vmatpush1.msra.mxu0 0.0
    %633 = vmatprep.subr.mxu0 0.0
    %634 = vmatpush1.msra.mxu0 0.0
    %635 = vmatprep.subr.mxu0 0.0
    %636 = vmatpush1.msra.mxu0 0.0
    %637 = vmatprep.subr.mxu0 0.0
    %638 = vmatpush1.msra.mxu0 0.0
    %639 = vmatprep.subr.mxu0 0.0
    %640 = vmatpush1.msra.mxu0 0.0
    %641 = vmatprep.subr.mxu0 0.0
    %642 = vmatpush1.msra.mxu0 0.0
    %643 = vmatprep.subr.mxu0 0.0
    %644 = vmatpush1.msra.mxu0 0.0
    %645 = vmatprep.subr.mxu0 0.0
    %646 = vmatpush1.msra.mxu0 0.0
    %647 = vmatprep.subr.mxu0 0.0
    %648 = vmatpush1.msra.mxu0 0.0
    %649 = vmatprep.subr.mxu0 0.0
    %650 = vmatpush1.msra.mxu0 0.0
    %651 = vmatprep.subr.mxu0 0.0
    %652 = vmatpush1.msra.mxu0 0.0
    %653 = vmatprep.subr.mxu0 0.0
    %654 = vmatpush1.msra.mxu0 0.0
    %655 = vmatprep.subr.mxu0 0.0
    %656 = vmatpush1.msra.mxu0 0.0
    %657 = vmatprep.subr.mxu0 0.0
    %658 = vmatpush1.msra.mxu0 0.0
    %659 = vmatprep.subr.mxu0 0.0
    %660 = vmatpush1.msra.mxu0 0.0
    %661 = vmatprep.subr.mxu0 0.0
    %662 = vmatpush1.msra.mxu0 0.0
    %663 = vmatprep.subr.mxu0 0.0
    %664 = vmatpush1.msra.mxu0 0.0
    %665 = vmatprep.subr.mxu0 0.0
    %666 = vmatpush1.msra.mxu0 0.0
    %667 = vmatprep.subr.mxu0 0.0
    %668 = vmatpush1.msra.mxu0 0.0
    %669 = vmatprep.subr.mxu0 0.0
    %670 = vmatpush1.msra.mxu0 0.0
    %671 = vmatprep.subr.mxu0 0.0
    %672 = vmatpush1.msra.mxu0 0.0
    %673 = vmatprep.subr.mxu0 0.0
    %674 = vmatpush1.msra.mxu0 0.0
    %675 = vmatprep.mubr.f32.mxu0 0.0
    %676 = vmatmul.mubr.f32.gmra.mrb[0].mxu0 %v609
    %v677 = vpop.f32.mrb[0].mxu0
    %v678 = vadd.f32 %v606, %v677
    %v679 = vpop.f32.mrb[0].mxu0
    %680 = vdwg.mxu0
    %681 = vst [vmem:[#allocation14] sm:$0xff] %v678
    // Predicated region
    $region58: #{base_faster_rcnn_forward.5} parent=1 // pred_check
      _
    $region59: #{base_faster_rcnn_forward.5} parent=1 // pred_check_branch
      %683 = sbr.rel (0) target = $region61
    $region60: #{base_faster_rcnn_forward.5} parent=1 // pred_region
      %s685 = ssub.s32 128, 128
      %686 = vsyncadd [#allocation4], %s685
      %s688 = sshll.u32 [#allocation14], 4
      %s689 = int_to_ptr.vmem [resolvable:$true] %s688
      %691 = dma.vmem_to_hbm [thread:$0]  %s689, 128, %s7, [#allocation4]
    $region61: #{base_faster_rcnn_forward.5} parent=1 // pred_fallthru
      _
    // Predicated region
    $region62: #{base_faster_rcnn_forward.5} parent=1 // pred_check
      _
    $region63: #{base_faster_rcnn_forward.5} parent=1 // pred_check_branch
      %693 = sbr.rel (0) target = $region65
    $region64: #{base_faster_rcnn_forward.5} parent=1 // pred_region
      %694 = dma.done [#allocation4], 128
    $region65: #{base_faster_rcnn_forward.5} parent=1 // pred_fallthru
      _
    %695 = vsyncpa [#allocation3], 1
    %696 = vsyncpa [#allocation6], 1
    %697 = vsyncpa [#allocation9], 1
    %698 = vsyncpa [#allocation12], 1
    %699 = vsyncpa [#allocation4], 1

</llo_original>
